<compile_context>
chip_gen: v6e
topology: v6e:2x2x1
jax: 0.10.0
libtpu: 0.0.40
codegen_flags: <defaults>
</compile_context>

<pallas_src>
import math

import jax
import jax.numpy as jnp
from jax.experimental import pallas as pl
from jax.experimental.pallas import tpu as pltpu

# ----------------------------- model config ---------------------------------
BATCH = 2
TOK_LEN = 8             # caption token length
PREFIX_LENGTH = 4       # <= 10  -> clip_project is the 2-layer MLP with Tanh
PREFIX_SIZE = 32        # CLIP feature size (512 in the real model)
EMBED = 32              # gpt_embedding_size (768 in real GPT-2)
N_HEAD = 2
HEAD_DIM = EMBED // N_HEAD
N_LAYER = 2
VOCAB = 64
N_POS = 32
SEQ = PREFIX_LENGTH + TOK_LEN           # 12 real positions per sequence
S_PAD = 16                              # padded per-batch slab rows (mult of 8)
VOCAB_PAD = 128                         # lane-dense logits width (mult of 128)
CLIP_HID = EMBED * PREFIX_LENGTH // 2   # clip_project hidden width


# ----------------------------- fused Pallas kernel --------------------------
def _fused_forward_kernel(
    tok_ref,          # (S_PAD, 1) int32, -1 marks non-token rows
    prefix_ref,       # (1, 1, PREFIX_SIZE)
    wte_ref,          # (VOCAB_PAD, E) embedding table (padded vocab rows = 0)
    wteT_ref,         # (E, VOCAB_PAD) host-transposed tied LM head
    wpe_ref,          # (N_POS, E)
    cw1_ref, cb1_ref,                                      # clip_project layer 1
    cw2_ref, cb2_ref,                                      # (P, hid, E), (P, E)
    ln1g_ref, ln1b_ref, qkvw_ref, qkvb_ref,                # per-layer (stacked)
    aprojw_ref, aprojb_ref, ln2g_ref, ln2b_ref,
    fcw_ref, fcb_ref, mprojw_ref, mprojb_ref,
    lnfg_ref, lnfb_ref,                                    # final LN
    o_ref,            # (S_PAD, VOCAB_PAD) logits for this batch element
):
    f32 = jnp.float32
    neg_inf = f32(-1e9)  # safe in f32 (diagonal always unmasked); dtype-aware min if bf16

    def ln(x, g, b):
        mu = jnp.mean(x, axis=-1, keepdims=True)
        xc = x - mu
        var = jnp.mean(xc * xc, axis=-1, keepdims=True)
        return xc * jax.lax.rsqrt(var + 1e-5) * g + b

    def dot(a, b):
        return jnp.dot(a, b, preferred_element_type=f32)

    def dot_t(a, b):  # a @ b.T without materializing a transpose
        return jax.lax.dot_general(
            a, b, (((1,), (1,)), ((), ())), preferred_element_type=f32)

    def gelu_new(x):  # GPT-2 "gelu_new"
        c = math.sqrt(2.0 / math.pi)
        return 0.5 * x * (1.0 + jnp.tanh(c * (x + 0.044715 * x * x * x)))

    # ---- clip_project(prefix) = Linear -> Tanh -> Linear -------------------
    # cw2 is pre-arranged (P, hid, E) host-side so each output row is already
    # row-major; one aligned P-row slab, no lane sub-slicing of a (1, P*E) vec.
    h1 = jnp.tanh(dot(prefix_ref[0], cw1_ref[...]) + cb1_ref[...])    # (1, hid)
    prefix_rows = jnp.concatenate(
        [dot(h1, cw2_ref[p]) for p in range(PREFIX_LENGTH)], axis=0)  # (P, E)
    prefix_rows = prefix_rows + cb2_ref[...]
    prefix_slab = jnp.concatenate(
        [prefix_rows, jnp.zeros((S_PAD - PREFIX_LENGTH, EMBED), f32)], axis=0)

    # ---- wte(tokens): single one-hot matmul (no serialized row gathers) ----
    vocab_iota = jax.lax.broadcasted_iota(jnp.int32, (S_PAD, VOCAB_PAD), 1)
    onehot = (vocab_iota == tok_ref[...]).astype(f32)       # (S_PAD, VOCAB_PAD)
    tok_emb = dot(onehot, wte_ref[...])                     # (S_PAD, E); -1 rows -> 0

    # ---- embeddings + positions (broadcast add, no concat) -----------------
    h = prefix_slab + tok_emb + wpe_ref[0:S_PAD, :]         # (S_PAD, E)

    # ---- transformer blocks -------------------------------------------------
    scale = 1.0 / math.sqrt(HEAD_DIM)
    row_ids = jax.lax.broadcasted_iota(jnp.int32, (S_PAD, S_PAD), 0)
    col_ids = jax.lax.broadcasted_iota(jnp.int32, (S_PAD, S_PAD), 1)
    causal = col_ids <= row_ids   # also masks padding columns for real queries

    # Static unroll is fine at N_LAYER=2; switch to lax.fori_loop past ~4 layers
    # (weights already stacked on a leading axis).
    for l in range(N_LAYER):
        # -- causal self-attention: per-head output folded into the projection
        ln1 = ln(h, ln1g_ref[l], ln1b_ref[l])
        qkv = dot(ln1, qkvw_ref[l]) + qkvb_ref[l]           # (S_PAD, 3E)
        aprojw_l = aprojw_ref[l]                            # (E, E)
        acc = jnp.zeros((S_PAD, EMBED), f32)
        for hh in range(N_HEAD):
            lo = hh * HEAD_DIM
            q = qkv[:, lo:lo + HEAD_DIM]
            k = qkv[:, EMBED + lo:EMBED + lo + HEAD_DIM]
            v = qkv[:, 2 * EMBED + lo:2 * EMBED + lo + HEAD_DIM]
            s = dot_t(q, k) * scale                         # (S_PAD, S_PAD)
            s = jnp.where(causal, s, neg_inf)
            m = jnp.max(s, axis=-1, keepdims=True)
            p = jnp.exp(s - m)
            p = p * pl.reciprocal(jnp.sum(p, axis=-1, keepdims=True), approx=True)
            acc = acc + dot(dot(p, v), aprojw_l[lo:lo + HEAD_DIM, :])
        h = acc + aprojb_ref[l] + h                         # + residual

        # -- MLP
        ln2 = ln(h, ln2g_ref[l], ln2b_ref[l])
        ff = gelu_new(dot(ln2, fcw_ref[l]) + fcb_ref[l])    # (S_PAD, 4E)
        h = dot(ff, mprojw_ref[l]) + mprojb_ref[l] + h      # + residual

    # ---- final LN + tied LM head (pre-transposed, lane-dense 128-wide store)
    hf = ln(h, lnfg_ref[...], lnfb_ref[...])
    o_ref[...] = dot(hf, wteT_ref[...]).astype(o_ref.dtype)


# ----------------------------- params ---------------------------------------
def init_params(key):
    def nrm(k, shape, std=0.02):
        return (std * jax.random.normal(k, shape)).astype(jnp.float32)

    k = jax.random.split(key, 8)
    out_dim = EMBED * PREFIX_LENGTH
    zeros = lambda s: jnp.zeros(s, jnp.float32)
    ones = lambda s: jnp.ones(s, jnp.float32)
    return {
        "wte": nrm(k[0], (VOCAB, EMBED)),
        "wpe": nrm(k[1], (N_POS, EMBED), std=0.01),
        # clip_project MLP: (PREFIX_SIZE, E*L//2, E*L) with Tanh between
        "clip_w1": nrm(k[2], (PREFIX_SIZE, CLIP_HID)),
        "clip_b1": zeros((1, CLIP_HID)),
        "clip_w2": nrm(k[3], (CLIP_HID, out_dim)),
        "clip_b2": zeros((1, out_dim)),
        # transformer blocks, stacked along a leading layer axis
        "ln1_g": ones((N_LAYER, 1, EMBED)),
        "ln1_b": zeros((N_LAYER, 1, EMBED)),
        "attn_w": nrm(k[4], (N_LAYER, EMBED, 3 * EMBED)),
        "attn_b": zeros((N_LAYER, 1, 3 * EMBED)),
        "attn_proj_w": nrm(k[5], (N_LAYER, EMBED, EMBED)),
        "attn_proj_b": zeros((N_LAYER, 1, EMBED)),
        "ln2_g": ones((N_LAYER, 1, EMBED)),
        "ln2_b": zeros((N_LAYER, 1, EMBED)),
        "fc_w": nrm(k[6], (N_LAYER, EMBED, 4 * EMBED)),
        "fc_b": zeros((N_LAYER, 1, 4 * EMBED)),
        "mlp_proj_w": nrm(k[7], (N_LAYER, 4 * EMBED, EMBED)),
        "mlp_proj_b": zeros((N_LAYER, 1, EMBED)),
        "lnf_g": ones((1, EMBED)),
        "lnf_b": zeros((1, EMBED)),
    }


# ----------------------------- wrapper ---------------------------------------
def _const_index_map(ndim):
    return lambda b: (0,) * ndim


def _const_spec(arr):
    # whole-array block, same block for every grid step (Pallas skips re-copies)
    return pl.BlockSpec(arr.shape, _const_index_map(arr.ndim))


def clip_caption_forward(params, tokens, prefix, mask=None, labels=None):
    """Matches ClipCaptionModel.forward (labels=None, mask=None path): GPT-2 LM
    logits over the concatenated [prefix_projections ; token_embeddings] seq."""
    # TODO(synk): cross-entropy loss when `labels` is given and attention_mask
    # handling (this mirrors the labels=None, mask=None forward).
    B, T = tokens.shape

    # ---- cheap host-side (XLA) prep -----------------------------------------
    wte_pad = jnp.pad(params["wte"], ((0, VOCAB_PAD - VOCAB), (0, 0)))   # (128, E)
    wte_lmh = wte_pad.T                                                  # (E, 128), tied
    cw2_r = params["clip_w2"].reshape(CLIP_HID, PREFIX_LENGTH, EMBED)
    cw2_r = jnp.transpose(cw2_r, (1, 0, 2))                              # (P, hid, E)
    cb2_r = params["clip_b2"].reshape(PREFIX_LENGTH, EMBED)              # (P, E)
    # tokens padded into per-batch S_PAD rows; -1 -> all-zero one-hot row
    tok_full = jnp.full((B, S_PAD), -1, jnp.int32)
    tok_full = tok_full.at[:, PREFIX_LENGTH:PREFIX_LENGTH + T].set(
        tokens.astype(jnp.int32))
    tok_flat = tok_full.reshape(B * S_PAD, 1)
    prefix3 = prefix.reshape(B, 1, PREFIX_SIZE)

    inputs = [
        tok_flat, prefix3, wte_pad, wte_lmh, params["wpe"],
        params["clip_w1"], params["clip_b1"], cw2_r, cb2_r,
        params["ln1_g"], params["ln1_b"], params["attn_w"], params["attn_b"],
        params["attn_proj_w"], params["attn_proj_b"],
        params["ln2_g"], params["ln2_b"], params["fc_w"], params["fc_b"],
        params["mlp_proj_w"], params["mlp_proj_b"],
        params["lnf_g"], params["lnf_b"],
    ]
    in_specs = (
        [pl.BlockSpec((S_PAD, 1), lambda b: (b, 0)),            # tokens: per batch
         pl.BlockSpec((1, 1, PREFIX_SIZE), lambda b: (b, 0, 0))]  # prefix: per batch
        + [_const_spec(a) for a in inputs[2:]])                 # weights: resident

    logits_pad = pl.pallas_call(
        _fused_forward_kernel,
        out_shape=jax.ShapeDtypeStruct((B * S_PAD, VOCAB_PAD), jnp.float32),
        grid=(B,),
        in_specs=in_specs,
        out_specs=pl.BlockSpec((S_PAD, VOCAB_PAD), lambda b: (b, 0)),
        compiler_params=pltpu.CompilerParams(
            dimension_semantics=("parallel",)),   # v7x: one batch per TensorCore
    )(*inputs)

    # strip sequence padding rows and vocab padding lanes
    return logits_pad.reshape(B, S_PAD, VOCAB_PAD)[:, :SEQ, :VOCAB]


if __name__ == "__main__":
    key = jax.random.PRNGKey(0)
    kp, kt, kx = jax.random.split(key, 3)
    params = init_params(kp)
    tokens = jax.random.randint(kt, (BATCH, TOK_LEN), 0, VOCAB, dtype=jnp.int32)
    prefix = jax.random.normal(kx, (BATCH, PREFIX_SIZE), dtype=jnp.float32)

    fwd = jax.jit(clip_caption_forward)
    logits = fwd(params, tokens, prefix)
    jax.block_until_ready(logits)
    assert logits.shape == (BATCH, SEQ, VOCAB)
    assert bool(jnp.all(jnp.isfinite(logits)))
    print("KERNEL_OK")
</pallas_src>

<mosaic_0001>
module attributes {stable_mosaic.version = 11 : i64} {
  func.func @_fused_forward_kernel(%arg0: i32, %arg1: memref<16x1xi32, #tpu.memory_space<vmem>>, %arg2: memref<1x1x32xf32, #tpu.memory_space<vmem>>, %arg3: memref<128x32xf32, #tpu.memory_space<vmem>>, %arg4: memref<32x128xf32, #tpu.memory_space<vmem>>, %arg5: memref<32x32xf32, #tpu.memory_space<vmem>>, %arg6: memref<32x64xf32, #tpu.memory_space<vmem>>, %arg7: memref<1x64xf32, #tpu.memory_space<vmem>>, %arg8: memref<4x64x32xf32, #tpu.memory_space<vmem>>, %arg9: memref<4x32xf32, #tpu.memory_space<vmem>>, %arg10: memref<2x1x32xf32, #tpu.memory_space<vmem>>, %arg11: memref<2x1x32xf32, #tpu.memory_space<vmem>>, %arg12: memref<2x32x96xf32, #tpu.memory_space<vmem>>, %arg13: memref<2x1x96xf32, #tpu.memory_space<vmem>>, %arg14: memref<2x32x32xf32, #tpu.memory_space<vmem>>, %arg15: memref<2x1x32xf32, #tpu.memory_space<vmem>>, %arg16: memref<2x1x32xf32, #tpu.memory_space<vmem>>, %arg17: memref<2x1x32xf32, #tpu.memory_space<vmem>>, %arg18: memref<2x32x128xf32, #tpu.memory_space<vmem>>, %arg19: memref<2x1x128xf32, #tpu.memory_space<vmem>>, %arg20: memref<2x128x32xf32, #tpu.memory_space<vmem>>, %arg21: memref<2x1x32xf32, #tpu.memory_space<vmem>>, %arg22: memref<1x32xf32, #tpu.memory_space<vmem>>, %arg23: memref<1x32xf32, #tpu.memory_space<vmem>>, %arg24: memref<16x128xf32, #tpu.memory_space<vmem>>) attributes {dimension_semantics = [#tpu.dimension_semantics<parallel>], iteration_bounds = array<i64: 2>, scalar_prefetch = 0 : i64, scratch_operands = 0 : i64, tpu.core_type = #tpu.core_type<tc>, window_params = [{transform_indices = @transform_0, window_bounds = array<i64: 16, 1>}, {transform_indices = @transform_1, window_bounds = array<i64: 1, 1, 32>}, {pipeline_mode = #tpu.pipeline_mode<synchronous>, transform_indices = @transform_2, window_bounds = array<i64: 128, 32>}, {pipeline_mode = #tpu.pipeline_mode<synchronous>, transform_indices = @transform_3, window_bounds = array<i64: 32, 128>}, {pipeline_mode = #tpu.pipeline_mode<synchronous>, transform_indices = @transform_4, window_bounds = array<i64: 32, 32>}, {pipeline_mode = #tpu.pipeline_mode<synchronous>, transform_indices = @transform_5, window_bounds = array<i64: 32, 64>}, {pipeline_mode = #tpu.pipeline_mode<synchronous>, transform_indices = @transform_6, window_bounds = array<i64: 1, 64>}, {pipeline_mode = #tpu.pipeline_mode<synchronous>, transform_indices = @transform_7, window_bounds = array<i64: 4, 64, 32>}, {pipeline_mode = #tpu.pipeline_mode<synchronous>, transform_indices = @transform_8, window_bounds = array<i64: 4, 32>}, {pipeline_mode = #tpu.pipeline_mode<synchronous>, transform_indices = @transform_9, window_bounds = array<i64: 2, 1, 32>}, {pipeline_mode = #tpu.pipeline_mode<synchronous>, transform_indices = @transform_10, window_bounds = array<i64: 2, 1, 32>}, {pipeline_mode = #tpu.pipeline_mode<synchronous>, transform_indices = @transform_11, window_bounds = array<i64: 2, 32, 96>}, {pipeline_mode = #tpu.pipeline_mode<synchronous>, transform_indices = @transform_12, window_bounds = array<i64: 2, 1, 96>}, {pipeline_mode = #tpu.pipeline_mode<synchronous>, transform_indices = @transform_13, window_bounds = array<i64: 2, 32, 32>}, {pipeline_mode = #tpu.pipeline_mode<synchronous>, transform_indices = @transform_14, window_bounds = array<i64: 2, 1, 32>}, {pipeline_mode = #tpu.pipeline_mode<synchronous>, transform_indices = @transform_15, window_bounds = array<i64: 2, 1, 32>}, {pipeline_mode = #tpu.pipeline_mode<synchronous>, transform_indices = @transform_16, window_bounds = array<i64: 2, 1, 32>}, {pipeline_mode = #tpu.pipeline_mode<synchronous>, transform_indices = @transform_17, window_bounds = array<i64: 2, 32, 128>}, {pipeline_mode = #tpu.pipeline_mode<synchronous>, transform_indices = @transform_18, window_bounds = array<i64: 2, 1, 128>}, {pipeline_mode = #tpu.pipeline_mode<synchronous>, transform_indices = @transform_19, window_bounds = array<i64: 2, 128, 32>}, {pipeline_mode = #tpu.pipeline_mode<synchronous>, transform_indices = @transform_20, window_bounds = array<i64: 2, 1, 32>}, {pipeline_mode = #tpu.pipeline_mode<synchronous>, transform_indices = @transform_21, window_bounds = array<i64: 1, 32>}, {pipeline_mode = #tpu.pipeline_mode<synchronous>, transform_indices = @transform_22, window_bounds = array<i64: 1, 32>}, {transform_indices = @transform_23, window_bounds = array<i64: 16, 128>}]} {
    %c0 = arith.constant 0 : index
    %c0_0 = arith.constant 0 : index
    %c0_1 = arith.constant 0 : index
    %0 = vector.load %arg2[%c0, %c0_0, %c0_1] : memref<1x1x32xf32, #tpu.memory_space<vmem>>, vector<1x1x32xf32>
    %1 = vector.shape_cast %0 : vector<1x1x32xf32> to vector<1x32xf32>
    %c0_2 = arith.constant 0 : index
    %c0_3 = arith.constant 0 : index
    %2 = vector.load %arg6[%c0_2, %c0_3] : memref<32x64xf32, #tpu.memory_space<vmem>>, vector<32x64xf32>
    %cst = arith.constant dense<0.000000e+00> : vector<1x64xf32>
    %3 = tpu.matmul %1, %2, %cst {dimension_numbers = #tpu.dot_dimension_numbers<[1], [0], [0], [1], [0, 0, 1, 1], [], []>} : vector<1x32xf32>, vector<32x64xf32>, vector<1x64xf32> -> vector<1x64xf32>
    %c0_4 = arith.constant 0 : index
    %c0_5 = arith.constant 0 : index
    %4 = vector.load %arg7[%c0_4, %c0_5] : memref<1x64xf32, #tpu.memory_space<vmem>>, vector<1x64xf32>
    %5 = arith.addf %3, %4 : vector<1x64xf32>
    %6 = math.tanh %5 : vector<1x64xf32>
    %c0_6 = arith.constant 0 : index
    %c0_7 = arith.constant 0 : index
    %c0_8 = arith.constant 0 : index
    %7 = vector.load %arg8[%c0_6, %c0_7, %c0_8] : memref<4x64x32xf32, #tpu.memory_space<vmem>>, vector<1x64x32xf32>
    %8 = vector.shape_cast %7 : vector<1x64x32xf32> to vector<64x32xf32>
    %cst_9 = arith.constant dense<0.000000e+00> : vector<1x32xf32>
    %9 = tpu.matmul %6, %8, %cst_9 {dimension_numbers = #tpu.dot_dimension_numbers<[1], [0], [0], [1], [0, 0, 1, 1], [], []>} : vector<1x64xf32>, vector<64x32xf32>, vector<1x32xf32> -> vector<1x32xf32>
    %c1 = arith.constant 1 : index
    %c0_10 = arith.constant 0 : index
    %c0_11 = arith.constant 0 : index
    %10 = vector.load %arg8[%c1, %c0_10, %c0_11] : memref<4x64x32xf32, #tpu.memory_space<vmem>>, vector<1x64x32xf32>
    %11 = vector.shape_cast %10 : vector<1x64x32xf32> to vector<64x32xf32>
    %cst_12 = arith.constant dense<0.000000e+00> : vector<1x32xf32>
    %12 = tpu.matmul %6, %11, %cst_12 {dimension_numbers = #tpu.dot_dimension_numbers<[1], [0], [0], [1], [0, 0, 1, 1], [], []>} : vector<1x64xf32>, vector<64x32xf32>, vector<1x32xf32> -> vector<1x32xf32>
    %c2 = arith.constant 2 : index
    %c0_13 = arith.constant 0 : index
    %c0_14 = arith.constant 0 : index
    %13 = vector.load %arg8[%c2, %c0_13, %c0_14] : memref<4x64x32xf32, #tpu.memory_space<vmem>>, vector<1x64x32xf32>
    %14 = vector.shape_cast %13 : vector<1x64x32xf32> to vector<64x32xf32>
    %cst_15 = arith.constant dense<0.000000e+00> : vector<1x32xf32>
    %15 = tpu.matmul %6, %14, %cst_15 {dimension_numbers = #tpu.dot_dimension_numbers<[1], [0], [0], [1], [0, 0, 1, 1], [], []>} : vector<1x64xf32>, vector<64x32xf32>, vector<1x32xf32> -> vector<1x32xf32>
    %c3 = arith.constant 3 : index
    %c0_16 = arith.constant 0 : index
    %c0_17 = arith.constant 0 : index
    %16 = vector.load %arg8[%c3, %c0_16, %c0_17] : memref<4x64x32xf32, #tpu.memory_space<vmem>>, vector<1x64x32xf32>
    %17 = vector.shape_cast %16 : vector<1x64x32xf32> to vector<64x32xf32>
    %cst_18 = arith.constant dense<0.000000e+00> : vector<1x32xf32>
    %18 = tpu.matmul %6, %17, %cst_18 {dimension_numbers = #tpu.dot_dimension_numbers<[1], [0], [0], [1], [0, 0, 1, 1], [], []>} : vector<1x64xf32>, vector<64x32xf32>, vector<1x32xf32> -> vector<1x32xf32>
    %19 = tpu.concatenate %9, %12, %15, %18 in 0 : vector<1x32xf32>, vector<1x32xf32>, vector<1x32xf32>, vector<1x32xf32> -> vector<4x32xf32>
    %c0_19 = arith.constant 0 : index
    %c0_20 = arith.constant 0 : index
    %20 = vector.load %arg9[%c0_19, %c0_20] : memref<4x32xf32, #tpu.memory_space<vmem>>, vector<4x32xf32>
    %21 = arith.addf %19, %20 : vector<4x32xf32>
    %cst_21 = arith.constant 0.000000e+00 : f32
    %22 = vector.broadcast %cst_21 : f32 to vector<12x32xf32>
    %23 = tpu.concatenate %21, %22 in 0 : vector<4x32xf32>, vector<12x32xf32> -> vector<16x32xf32>
    %24 = tpu.iota {dimensions = array<i32: 1>} : vector<16x128xi32>
    %c0_22 = arith.constant 0 : index
    %c0_23 = arith.constant 0 : index
    %25 = vector.load %arg1[%c0_22, %c0_23] : memref<16x1xi32, #tpu.memory_space<vmem>>, vector<16x1xi32>
    %26 = vector.broadcast %25 : vector<16x1xi32> to vector<16x128xi32>
    %27 = arith.cmpi eq, %24, %26 : vector<16x128xi32>
    %28 = arith.extui %27 : vector<16x128xi1> to vector<16x128xi32>
    %29 = arith.sitofp %28 : vector<16x128xi32> to vector<16x128xf32>
    %c0_24 = arith.constant 0 : index
    %c0_25 = arith.constant 0 : index
    %30 = vector.load %arg3[%c0_24, %c0_25] : memref<128x32xf32, #tpu.memory_space<vmem>>, vector<128x32xf32>
    %cst_26 = arith.constant dense<0.000000e+00> : vector<16x32xf32>
    %31 = tpu.matmul %29, %30, %cst_26 {dimension_numbers = #tpu.dot_dimension_numbers<[1], [0], [0], [1], [0, 0, 1, 1], [], []>} : vector<16x128xf32>, vector<128x32xf32>, vector<16x32xf32> -> vector<16x32xf32>
    %32 = arith.addf %23, %31 : vector<16x32xf32>
    %c0_27 = arith.constant 0 : index
    %c0_28 = arith.constant 0 : index
    %33 = vector.load %arg5[%c0_27, %c0_28] : memref<32x32xf32, #tpu.memory_space<vmem>>, vector<16x32xf32>
    %34 = arith.addf %32, %33 : vector<16x32xf32>
    %35 = tpu.iota {dimensions = array<i32: 0>} : vector<16x16xi32>
    %36 = tpu.iota {dimensions = array<i32: 1>} : vector<16x16xi32>
    %37 = arith.cmpi sle, %36, %35 : vector<16x16xi32>
    %c0_29 = arith.constant 0 : index
    %c0_30 = arith.constant 0 : index
    %c0_31 = arith.constant 0 : index
    %38 = vector.load %arg10[%c0_29, %c0_30, %c0_31] : memref<2x1x32xf32, #tpu.memory_space<vmem>>, vector<1x1x32xf32>
    %39 = vector.shape_cast %38 : vector<1x1x32xf32> to vector<1x32xf32>
    %c0_32 = arith.constant 0 : index
    %c0_33 = arith.constant 0 : index
    %c0_34 = arith.constant 0 : index
    %40 = vector.load %arg11[%c0_32, %c0_33, %c0_34] : memref<2x1x32xf32, #tpu.memory_space<vmem>>, vector<1x1x32xf32>
    %41 = vector.shape_cast %40 : vector<1x1x32xf32> to vector<1x32xf32>
    %cst_35 = arith.constant dense<0.000000e+00> : vector<16xf32>
    %42 = vector.multi_reduction <add>, %34, %cst_35 [1] : vector<16x32xf32> to vector<16xf32>
    %43 = vector.shape_cast %42 : vector<16xf32> to vector<16x1xf32>
    %cst_36 = arith.constant 3.200000e+01 : f32
    %44 = vector.broadcast %cst_36 : f32 to vector<16x1xf32>
    %45 = arith.divf %43, %44 : vector<16x1xf32>
    %46 = vector.broadcast %45 : vector<16x1xf32> to vector<16x32xf32>
    %47 = arith.subf %34, %46 : vector<16x32xf32>
    %48 = arith.mulf %47, %47 : vector<16x32xf32>
    %cst_37 = arith.constant dense<0.000000e+00> : vector<16xf32>
    %49 = vector.multi_reduction <add>, %48, %cst_37 [1] : vector<16x32xf32> to vector<16xf32>
    %50 = vector.shape_cast %49 : vector<16xf32> to vector<16x1xf32>
    %cst_38 = arith.constant 3.200000e+01 : f32
    %51 = vector.broadcast %cst_38 : f32 to vector<16x1xf32>
    %52 = arith.divf %50, %51 : vector<16x1xf32>
    %cst_39 = arith.constant 9.99999974E-6 : f32
    %53 = vector.broadcast %cst_39 : f32 to vector<16x1xf32>
    %54 = arith.addf %52, %53 : vector<16x1xf32>
    %55 = math.rsqrt %54 : vector<16x1xf32>
    %56 = vector.broadcast %55 : vector<16x1xf32> to vector<16x32xf32>
    %57 = arith.mulf %47, %56 : vector<16x32xf32>
    %58 = vector.broadcast %39 : vector<1x32xf32> to vector<16x32xf32>
    %59 = arith.mulf %57, %58 : vector<16x32xf32>
    %60 = vector.broadcast %41 : vector<1x32xf32> to vector<16x32xf32>
    %61 = arith.addf %59, %60 : vector<16x32xf32>
    %c0_40 = arith.constant 0 : index
    %c0_41 = arith.constant 0 : index
    %c0_42 = arith.constant 0 : index
    %62 = vector.load %arg12[%c0_40, %c0_41, %c0_42] : memref<2x32x96xf32, #tpu.memory_space<vmem>>, vector<1x32x96xf32>
    %63 = vector.shape_cast %62 : vector<1x32x96xf32> to vector<32x96xf32>
    %cst_43 = arith.constant dense<0.000000e+00> : vector<16x96xf32>
    %64 = tpu.matmul %61, %63, %cst_43 {dimension_numbers = #tpu.dot_dimension_numbers<[1], [0], [0], [1], [0, 0, 1, 1], [], []>} : vector<16x32xf32>, vector<32x96xf32>, vector<16x96xf32> -> vector<16x96xf32>
    %c0_44 = arith.constant 0 : index
    %c0_45 = arith.constant 0 : index
    %c0_46 = arith.constant 0 : index
    %65 = vector.load %arg13[%c0_44, %c0_45, %c0_46] : memref<2x1x96xf32, #tpu.memory_space<vmem>>, vector<1x1x96xf32>
    %66 = vector.shape_cast %65 : vector<1x1x96xf32> to vector<1x96xf32>
    %67 = vector.broadcast %66 : vector<1x96xf32> to vector<16x96xf32>
    %68 = arith.addf %64, %67 : vector<16x96xf32>
    %c0_47 = arith.constant 0 : index
    %c0_48 = arith.constant 0 : index
    %c0_49 = arith.constant 0 : index
    %69 = vector.load %arg14[%c0_47, %c0_48, %c0_49] : memref<2x32x32xf32, #tpu.memory_space<vmem>>, vector<1x32x32xf32>
    %70 = vector.shape_cast %69 : vector<1x32x32xf32> to vector<32x32xf32>
    %cst_50 = arith.constant 0.000000e+00 : f32
    %71 = vector.broadcast %cst_50 : f32 to vector<16x32xf32>
    %72 = vector.extract_strided_slice %68 {offsets = [0, 0], sizes = [16, 16], strides = [1, 1]} : vector<16x96xf32> to vector<16x16xf32>
    %73 = vector.extract_strided_slice %68 {offsets = [0, 32], sizes = [16, 16], strides = [1, 1]} : vector<16x96xf32> to vector<16x16xf32>
    %74 = vector.extract_strided_slice %68 {offsets = [0, 64], sizes = [16, 16], strides = [1, 1]} : vector<16x96xf32> to vector<16x16xf32>
    %cst_51 = arith.constant dense<0.000000e+00> : vector<16x16xf32>
    %75 = tpu.matmul %72, %73, %cst_51 {dimension_numbers = #tpu.dot_dimension_numbers<[1], [1], [0], [0], [0, 0, 1, 0], [], []>} : vector<16x16xf32>, vector<16x16xf32>, vector<16x16xf32> -> vector<16x16xf32>
    %cst_52 = arith.constant 2.500000e-01 : f32
    %76 = vector.broadcast %cst_52 : f32 to vector<16x16xf32>
    %77 = arith.mulf %75, %76 : vector<16x16xf32>
    %cst_53 = arith.constant -1.000000e+09 : f32
    %78 = vector.broadcast %cst_53 : f32 to vector<16x16xf32>
    %79 = arith.select %37, %77, %78 : vector<16x16xi1>, vector<16x16xf32>
    %cst_54 = arith.constant dense<0xFF800000> : vector<16xf32>
    %80 = vector.multi_reduction <maximumf>, %79, %cst_54 [1] : vector<16x16xf32> to vector<16xf32>
    %81 = vector.shape_cast %80 : vector<16xf32> to vector<16x1xf32>
    %82 = vector.broadcast %81 : vector<16x1xf32> to vector<16x16xf32>
    %83 = arith.subf %79, %82 : vector<16x16xf32>
    %84 = math.exp %83 : vector<16x16xf32>
    %cst_55 = arith.constant dense<0.000000e+00> : vector<16xf32>
    %85 = vector.multi_reduction <add>, %84, %cst_55 [1] : vector<16x16xf32> to vector<16xf32>
    %86 = vector.shape_cast %85 : vector<16xf32> to vector<16x1xf32>
    %87 = tpu.reciprocal %86 {approx = true} : vector<16x1xf32> -> vector<16x1xf32>
    %88 = vector.broadcast %87 : vector<16x1xf32> to vector<16x16xf32>
    %89 = arith.mulf %84, %88 : vector<16x16xf32>
    %cst_56 = arith.constant dense<0.000000e+00> : vector<16x16xf32>
    %90 = tpu.matmul %89, %74, %cst_56 {dimension_numbers = #tpu.dot_dimension_numbers<[1], [0], [0], [1], [0, 0, 1, 1], [], []>} : vector<16x16xf32>, vector<16x16xf32>, vector<16x16xf32> -> vector<16x16xf32>
    %91 = vector.extract_strided_slice %70 {offsets = [0, 0], sizes = [16, 32], strides = [1, 1]} : vector<32x32xf32> to vector<16x32xf32>
    %cst_57 = arith.constant dense<0.000000e+00> : vector<16x32xf32>
    %92 = tpu.matmul %90, %91, %cst_57 {dimension_numbers = #tpu.dot_dimension_numbers<[1], [0], [0], [1], [0, 0, 1, 1], [], []>} : vector<16x16xf32>, vector<16x32xf32>, vector<16x32xf32> -> vector<16x32xf32>
    %93 = arith.addf %71, %92 : vector<16x32xf32>
    %94 = vector.extract_strided_slice %68 {offsets = [0, 16], sizes = [16, 16], strides = [1, 1]} : vector<16x96xf32> to vector<16x16xf32>
    %95 = vector.extract_strided_slice %68 {offsets = [0, 48], sizes = [16, 16], strides = [1, 1]} : vector<16x96xf32> to vector<16x16xf32>
    %96 = vector.extract_strided_slice %68 {offsets = [0, 80], sizes = [16, 16], strides = [1, 1]} : vector<16x96xf32> to vector<16x16xf32>
    %cst_58 = arith.constant dense<0.000000e+00> : vector<16x16xf32>
    %97 = tpu.matmul %94, %95, %cst_58 {dimension_numbers = #tpu.dot_dimension_numbers<[1], [1], [0], [0], [0, 0, 1, 0], [], []>} : vector<16x16xf32>, vector<16x16xf32>, vector<16x16xf32> -> vector<16x16xf32>
    %cst_59 = arith.constant 2.500000e-01 : f32
    %98 = vector.broadcast %cst_59 : f32 to vector<16x16xf32>
    %99 = arith.mulf %97, %98 : vector<16x16xf32>
    %cst_60 = arith.constant -1.000000e+09 : f32
    %100 = vector.broadcast %cst_60 : f32 to vector<16x16xf32>
    %101 = arith.select %37, %99, %100 : vector<16x16xi1>, vector<16x16xf32>
    %cst_61 = arith.constant dense<0xFF800000> : vector<16xf32>
    %102 = vector.multi_reduction <maximumf>, %101, %cst_61 [1] : vector<16x16xf32> to vector<16xf32>
    %103 = vector.shape_cast %102 : vector<16xf32> to vector<16x1xf32>
    %104 = vector.broadcast %103 : vector<16x1xf32> to vector<16x16xf32>
    %105 = arith.subf %101, %104 : vector<16x16xf32>
    %106 = math.exp %105 : vector<16x16xf32>
    %cst_62 = arith.constant dense<0.000000e+00> : vector<16xf32>
    %107 = vector.multi_reduction <add>, %106, %cst_62 [1] : vector<16x16xf32> to vector<16xf32>
    %108 = vector.shape_cast %107 : vector<16xf32> to vector<16x1xf32>
    %109 = tpu.reciprocal %108 {approx = true} : vector<16x1xf32> -> vector<16x1xf32>
    %110 = vector.broadcast %109 : vector<16x1xf32> to vector<16x16xf32>
    %111 = arith.mulf %106, %110 : vector<16x16xf32>
    %cst_63 = arith.constant dense<0.000000e+00> : vector<16x16xf32>
    %112 = tpu.matmul %111, %96, %cst_63 {dimension_numbers = #tpu.dot_dimension_numbers<[1], [0], [0], [1], [0, 0, 1, 1], [], []>} : vector<16x16xf32>, vector<16x16xf32>, vector<16x16xf32> -> vector<16x16xf32>
    %113 = vector.extract_strided_slice %70 {offsets = [16, 0], sizes = [16, 32], strides = [1, 1]} : vector<32x32xf32> to vector<16x32xf32>
    %cst_64 = arith.constant dense<0.000000e+00> : vector<16x32xf32>
    %114 = tpu.matmul %112, %113, %cst_64 {dimension_numbers = #tpu.dot_dimension_numbers<[1], [0], [0], [1], [0, 0, 1, 1], [], []>} : vector<16x16xf32>, vector<16x32xf32>, vector<16x32xf32> -> vector<16x32xf32>
    %115 = arith.addf %93, %114 : vector<16x32xf32>
    %c0_65 = arith.constant 0 : index
    %c0_66 = arith.constant 0 : index
    %c0_67 = arith.constant 0 : index
    %116 = vector.load %arg15[%c0_65, %c0_66, %c0_67] : memref<2x1x32xf32, #tpu.memory_space<vmem>>, vector<1x1x32xf32>
    %117 = vector.shape_cast %116 : vector<1x1x32xf32> to vector<1x32xf32>
    %118 = vector.broadcast %117 : vector<1x32xf32> to vector<16x32xf32>
    %119 = arith.addf %115, %118 : vector<16x32xf32>
    %120 = arith.addf %119, %34 : vector<16x32xf32>
    %c0_68 = arith.constant 0 : index
    %c0_69 = arith.constant 0 : index
    %c0_70 = arith.constant 0 : index
    %121 = vector.load %arg16[%c0_68, %c0_69, %c0_70] : memref<2x1x32xf32, #tpu.memory_space<vmem>>, vector<1x1x32xf32>
    %122 = vector.shape_cast %121 : vector<1x1x32xf32> to vector<1x32xf32>
    %c0_71 = arith.constant 0 : index
    %c0_72 = arith.constant 0 : index
    %c0_73 = arith.constant 0 : index
    %123 = vector.load %arg17[%c0_71, %c0_72, %c0_73] : memref<2x1x32xf32, #tpu.memory_space<vmem>>, vector<1x1x32xf32>
    %124 = vector.shape_cast %123 : vector<1x1x32xf32> to vector<1x32xf32>
    %cst_74 = arith.constant dense<0.000000e+00> : vector<16xf32>
    %125 = vector.multi_reduction <add>, %120, %cst_74 [1] : vector<16x32xf32> to vector<16xf32>
    %126 = vector.shape_cast %125 : vector<16xf32> to vector<16x1xf32>
    %cst_75 = arith.constant 3.200000e+01 : f32
    %127 = vector.broadcast %cst_75 : f32 to vector<16x1xf32>
    %128 = arith.divf %126, %127 : vector<16x1xf32>
    %129 = vector.broadcast %128 : vector<16x1xf32> to vector<16x32xf32>
    %130 = arith.subf %120, %129 : vector<16x32xf32>
    %131 = arith.mulf %130, %130 : vector<16x32xf32>
    %cst_76 = arith.constant dense<0.000000e+00> : vector<16xf32>
    %132 = vector.multi_reduction <add>, %131, %cst_76 [1] : vector<16x32xf32> to vector<16xf32>
    %133 = vector.shape_cast %132 : vector<16xf32> to vector<16x1xf32>
    %cst_77 = arith.constant 3.200000e+01 : f32
    %134 = vector.broadcast %cst_77 : f32 to vector<16x1xf32>
    %135 = arith.divf %133, %134 : vector<16x1xf32>
    %cst_78 = arith.constant 9.99999974E-6 : f32
    %136 = vector.broadcast %cst_78 : f32 to vector<16x1xf32>
    %137 = arith.addf %135, %136 : vector<16x1xf32>
    %138 = math.rsqrt %137 : vector<16x1xf32>
    %139 = vector.broadcast %138 : vector<16x1xf32> to vector<16x32xf32>
    %140 = arith.mulf %130, %139 : vector<16x32xf32>
    %141 = vector.broadcast %122 : vector<1x32xf32> to vector<16x32xf32>
    %142 = arith.mulf %140, %141 : vector<16x32xf32>
    %143 = vector.broadcast %124 : vector<1x32xf32> to vector<16x32xf32>
    %144 = arith.addf %142, %143 : vector<16x32xf32>
    %c0_79 = arith.constant 0 : index
    %c0_80 = arith.constant 0 : index
    %c0_81 = arith.constant 0 : index
    %145 = vector.load %arg18[%c0_79, %c0_80, %c0_81] : memref<2x32x128xf32, #tpu.memory_space<vmem>>, vector<1x32x128xf32>
    %146 = vector.shape_cast %145 : vector<1x32x128xf32> to vector<32x128xf32>
    %cst_82 = arith.constant dense<0.000000e+00> : vector<16x128xf32>
    %147 = tpu.matmul %144, %146, %cst_82 {dimension_numbers = #tpu.dot_dimension_numbers<[1], [0], [0], [1], [0, 0, 1, 1], [], []>} : vector<16x32xf32>, vector<32x128xf32>, vector<16x128xf32> -> vector<16x128xf32>
    %c0_83 = arith.constant 0 : index
    %c0_84 = arith.constant 0 : index
    %c0_85 = arith.constant 0 : index
    %148 = vector.load %arg19[%c0_83, %c0_84, %c0_85] : memref<2x1x128xf32, #tpu.memory_space<vmem>>, vector<1x1x128xf32>
    %149 = vector.shape_cast %148 : vector<1x1x128xf32> to vector<1x128xf32>
    %150 = vector.broadcast %149 : vector<1x128xf32> to vector<16x128xf32>
    %151 = arith.addf %147, %150 : vector<16x128xf32>
    %cst_86 = arith.constant 5.000000e-01 : f32
    %152 = vector.broadcast %cst_86 : f32 to vector<16x128xf32>
    %153 = arith.mulf %152, %151 : vector<16x128xf32>
    %cst_87 = arith.constant 4.471500e-02 : f32
    %154 = vector.broadcast %cst_87 : f32 to vector<16x128xf32>
    %155 = arith.mulf %154, %151 : vector<16x128xf32>
    %156 = arith.mulf %155, %151 : vector<16x128xf32>
    %157 = arith.mulf %156, %151 : vector<16x128xf32>
    %158 = arith.addf %151, %157 : vector<16x128xf32>
    %cst_88 = arith.constant 0.797884583 : f32
    %159 = vector.broadcast %cst_88 : f32 to vector<16x128xf32>
    %160 = arith.mulf %159, %158 : vector<16x128xf32>
    %161 = math.tanh %160 : vector<16x128xf32>
    %cst_89 = arith.constant 1.000000e+00 : f32
    %162 = vector.broadcast %cst_89 : f32 to vector<16x128xf32>
    %163 = arith.addf %162, %161 : vector<16x128xf32>
    %164 = arith.mulf %153, %163 : vector<16x128xf32>
    %c0_90 = arith.constant 0 : index
    %c0_91 = arith.constant 0 : index
    %c0_92 = arith.constant 0 : index
    %165 = vector.load %arg20[%c0_90, %c0_91, %c0_92] : memref<2x128x32xf32, #tpu.memory_space<vmem>>, vector<1x128x32xf32>
    %166 = vector.shape_cast %165 : vector<1x128x32xf32> to vector<128x32xf32>
    %cst_93 = arith.constant dense<0.000000e+00> : vector<16x32xf32>
    %167 = tpu.matmul %164, %166, %cst_93 {dimension_numbers = #tpu.dot_dimension_numbers<[1], [0], [0], [1], [0, 0, 1, 1], [], []>} : vector<16x128xf32>, vector<128x32xf32>, vector<16x32xf32> -> vector<16x32xf32>
    %c0_94 = arith.constant 0 : index
    %c0_95 = arith.constant 0 : index
    %c0_96 = arith.constant 0 : index
    %168 = vector.load %arg21[%c0_94, %c0_95, %c0_96] : memref<2x1x32xf32, #tpu.memory_space<vmem>>, vector<1x1x32xf32>
    %169 = vector.shape_cast %168 : vector<1x1x32xf32> to vector<1x32xf32>
    %170 = vector.broadcast %169 : vector<1x32xf32> to vector<16x32xf32>
    %171 = arith.addf %167, %170 : vector<16x32xf32>
    %172 = arith.addf %171, %120 : vector<16x32xf32>
    %c1_97 = arith.constant 1 : index
    %c0_98 = arith.constant 0 : index
    %c0_99 = arith.constant 0 : index
    %173 = vector.load %arg10[%c1_97, %c0_98, %c0_99] : memref<2x1x32xf32, #tpu.memory_space<vmem>>, vector<1x1x32xf32>
    %174 = vector.shape_cast %173 : vector<1x1x32xf32> to vector<1x32xf32>
    %c1_100 = arith.constant 1 : index
    %c0_101 = arith.constant 0 : index
    %c0_102 = arith.constant 0 : index
    %175 = vector.load %arg11[%c1_100, %c0_101, %c0_102] : memref<2x1x32xf32, #tpu.memory_space<vmem>>, vector<1x1x32xf32>
    %176 = vector.shape_cast %175 : vector<1x1x32xf32> to vector<1x32xf32>
    %cst_103 = arith.constant dense<0.000000e+00> : vector<16xf32>
    %177 = vector.multi_reduction <add>, %172, %cst_103 [1] : vector<16x32xf32> to vector<16xf32>
    %178 = vector.shape_cast %177 : vector<16xf32> to vector<16x1xf32>
    %cst_104 = arith.constant 3.200000e+01 : f32
    %179 = vector.broadcast %cst_104 : f32 to vector<16x1xf32>
    %180 = arith.divf %178, %179 : vector<16x1xf32>
    %181 = vector.broadcast %180 : vector<16x1xf32> to vector<16x32xf32>
    %182 = arith.subf %172, %181 : vector<16x32xf32>
    %183 = arith.mulf %182, %182 : vector<16x32xf32>
    %cst_105 = arith.constant dense<0.000000e+00> : vector<16xf32>
    %184 = vector.multi_reduction <add>, %183, %cst_105 [1] : vector<16x32xf32> to vector<16xf32>
    %185 = vector.shape_cast %184 : vector<16xf32> to vector<16x1xf32>
    %cst_106 = arith.constant 3.200000e+01 : f32
    %186 = vector.broadcast %cst_106 : f32 to vector<16x1xf32>
    %187 = arith.divf %185, %186 : vector<16x1xf32>
    %cst_107 = arith.constant 9.99999974E-6 : f32
    %188 = vector.broadcast %cst_107 : f32 to vector<16x1xf32>
    %189 = arith.addf %187, %188 : vector<16x1xf32>
    %190 = math.rsqrt %189 : vector<16x1xf32>
    %191 = vector.broadcast %190 : vector<16x1xf32> to vector<16x32xf32>
    %192 = arith.mulf %182, %191 : vector<16x32xf32>
    %193 = vector.broadcast %174 : vector<1x32xf32> to vector<16x32xf32>
    %194 = arith.mulf %192, %193 : vector<16x32xf32>
    %195 = vector.broadcast %176 : vector<1x32xf32> to vector<16x32xf32>
    %196 = arith.addf %194, %195 : vector<16x32xf32>
    %c1_108 = arith.constant 1 : index
    %c0_109 = arith.constant 0 : index
    %c0_110 = arith.constant 0 : index
    %197 = vector.load %arg12[%c1_108, %c0_109, %c0_110] : memref<2x32x96xf32, #tpu.memory_space<vmem>>, vector<1x32x96xf32>
    %198 = vector.shape_cast %197 : vector<1x32x96xf32> to vector<32x96xf32>
    %cst_111 = arith.constant dense<0.000000e+00> : vector<16x96xf32>
    %199 = tpu.matmul %196, %198, %cst_111 {dimension_numbers = #tpu.dot_dimension_numbers<[1], [0], [0], [1], [0, 0, 1, 1], [], []>} : vector<16x32xf32>, vector<32x96xf32>, vector<16x96xf32> -> vector<16x96xf32>
    %c1_112 = arith.constant 1 : index
    %c0_113 = arith.constant 0 : index
    %c0_114 = arith.constant 0 : index
    %200 = vector.load %arg13[%c1_112, %c0_113, %c0_114] : memref<2x1x96xf32, #tpu.memory_space<vmem>>, vector<1x1x96xf32>
    %201 = vector.shape_cast %200 : vector<1x1x96xf32> to vector<1x96xf32>
    %202 = vector.broadcast %201 : vector<1x96xf32> to vector<16x96xf32>
    %203 = arith.addf %199, %202 : vector<16x96xf32>
    %c1_115 = arith.constant 1 : index
    %c0_116 = arith.constant 0 : index
    %c0_117 = arith.constant 0 : index
    %204 = vector.load %arg14[%c1_115, %c0_116, %c0_117] : memref<2x32x32xf32, #tpu.memory_space<vmem>>, vector<1x32x32xf32>
    %205 = vector.shape_cast %204 : vector<1x32x32xf32> to vector<32x32xf32>
    %cst_118 = arith.constant 0.000000e+00 : f32
    %206 = vector.broadcast %cst_118 : f32 to vector<16x32xf32>
    %207 = vector.extract_strided_slice %203 {offsets = [0, 0], sizes = [16, 16], strides = [1, 1]} : vector<16x96xf32> to vector<16x16xf32>
    %208 = vector.extract_strided_slice %203 {offsets = [0, 32], sizes = [16, 16], strides = [1, 1]} : vector<16x96xf32> to vector<16x16xf32>
    %209 = vector.extract_strided_slice %203 {offsets = [0, 64], sizes = [16, 16], strides = [1, 1]} : vector<16x96xf32> to vector<16x16xf32>
    %cst_119 = arith.constant dense<0.000000e+00> : vector<16x16xf32>
    %210 = tpu.matmul %207, %208, %cst_119 {dimension_numbers = #tpu.dot_dimension_numbers<[1], [1], [0], [0], [0, 0, 1, 0], [], []>} : vector<16x16xf32>, vector<16x16xf32>, vector<16x16xf32> -> vector<16x16xf32>
    %cst_120 = arith.constant 2.500000e-01 : f32
    %211 = vector.broadcast %cst_120 : f32 to vector<16x16xf32>
    %212 = arith.mulf %210, %211 : vector<16x16xf32>
    %cst_121 = arith.constant -1.000000e+09 : f32
    %213 = vector.broadcast %cst_121 : f32 to vector<16x16xf32>
    %214 = arith.select %37, %212, %213 : vector<16x16xi1>, vector<16x16xf32>
    %cst_122 = arith.constant dense<0xFF800000> : vector<16xf32>
    %215 = vector.multi_reduction <maximumf>, %214, %cst_122 [1] : vector<16x16xf32> to vector<16xf32>
    %216 = vector.shape_cast %215 : vector<16xf32> to vector<16x1xf32>
    %217 = vector.broadcast %216 : vector<16x1xf32> to vector<16x16xf32>
    %218 = arith.subf %214, %217 : vector<16x16xf32>
    %219 = math.exp %218 : vector<16x16xf32>
    %cst_123 = arith.constant dense<0.000000e+00> : vector<16xf32>
    %220 = vector.multi_reduction <add>, %219, %cst_123 [1] : vector<16x16xf32> to vector<16xf32>
    %221 = vector.shape_cast %220 : vector<16xf32> to vector<16x1xf32>
    %222 = tpu.reciprocal %221 {approx = true} : vector<16x1xf32> -> vector<16x1xf32>
    %223 = vector.broadcast %222 : vector<16x1xf32> to vector<16x16xf32>
    %224 = arith.mulf %219, %223 : vector<16x16xf32>
    %cst_124 = arith.constant dense<0.000000e+00> : vector<16x16xf32>
    %225 = tpu.matmul %224, %209, %cst_124 {dimension_numbers = #tpu.dot_dimension_numbers<[1], [0], [0], [1], [0, 0, 1, 1], [], []>} : vector<16x16xf32>, vector<16x16xf32>, vector<16x16xf32> -> vector<16x16xf32>
    %226 = vector.extract_strided_slice %205 {offsets = [0, 0], sizes = [16, 32], strides = [1, 1]} : vector<32x32xf32> to vector<16x32xf32>
    %cst_125 = arith.constant dense<0.000000e+00> : vector<16x32xf32>
    %227 = tpu.matmul %225, %226, %cst_125 {dimension_numbers = #tpu.dot_dimension_numbers<[1], [0], [0], [1], [0, 0, 1, 1], [], []>} : vector<16x16xf32>, vector<16x32xf32>, vector<16x32xf32> -> vector<16x32xf32>
    %228 = arith.addf %206, %227 : vector<16x32xf32>
    %229 = vector.extract_strided_slice %203 {offsets = [0, 16], sizes = [16, 16], strides = [1, 1]} : vector<16x96xf32> to vector<16x16xf32>
    %230 = vector.extract_strided_slice %203 {offsets = [0, 48], sizes = [16, 16], strides = [1, 1]} : vector<16x96xf32> to vector<16x16xf32>
    %231 = vector.extract_strided_slice %203 {offsets = [0, 80], sizes = [16, 16], strides = [1, 1]} : vector<16x96xf32> to vector<16x16xf32>
    %cst_126 = arith.constant dense<0.000000e+00> : vector<16x16xf32>
    %232 = tpu.matmul %229, %230, %cst_126 {dimension_numbers = #tpu.dot_dimension_numbers<[1], [1], [0], [0], [0, 0, 1, 0], [], []>} : vector<16x16xf32>, vector<16x16xf32>, vector<16x16xf32> -> vector<16x16xf32>
    %cst_127 = arith.constant 2.500000e-01 : f32
    %233 = vector.broadcast %cst_127 : f32 to vector<16x16xf32>
    %234 = arith.mulf %232, %233 : vector<16x16xf32>
    %cst_128 = arith.constant -1.000000e+09 : f32
    %235 = vector.broadcast %cst_128 : f32 to vector<16x16xf32>
    %236 = arith.select %37, %234, %235 : vector<16x16xi1>, vector<16x16xf32>
    %cst_129 = arith.constant dense<0xFF800000> : vector<16xf32>
    %237 = vector.multi_reduction <maximumf>, %236, %cst_129 [1] : vector<16x16xf32> to vector<16xf32>
    %238 = vector.shape_cast %237 : vector<16xf32> to vector<16x1xf32>
    %239 = vector.broadcast %238 : vector<16x1xf32> to vector<16x16xf32>
    %240 = arith.subf %236, %239 : vector<16x16xf32>
    %241 = math.exp %240 : vector<16x16xf32>
    %cst_130 = arith.constant dense<0.000000e+00> : vector<16xf32>
    %242 = vector.multi_reduction <add>, %241, %cst_130 [1] : vector<16x16xf32> to vector<16xf32>
    %243 = vector.shape_cast %242 : vector<16xf32> to vector<16x1xf32>
    %244 = tpu.reciprocal %243 {approx = true} : vector<16x1xf32> -> vector<16x1xf32>
    %245 = vector.broadcast %244 : vector<16x1xf32> to vector<16x16xf32>
    %246 = arith.mulf %241, %245 : vector<16x16xf32>
    %cst_131 = arith.constant dense<0.000000e+00> : vector<16x16xf32>
    %247 = tpu.matmul %246, %231, %cst_131 {dimension_numbers = #tpu.dot_dimension_numbers<[1], [0], [0], [1], [0, 0, 1, 1], [], []>} : vector<16x16xf32>, vector<16x16xf32>, vector<16x16xf32> -> vector<16x16xf32>
    %248 = vector.extract_strided_slice %205 {offsets = [16, 0], sizes = [16, 32], strides = [1, 1]} : vector<32x32xf32> to vector<16x32xf32>
    %cst_132 = arith.constant dense<0.000000e+00> : vector<16x32xf32>
    %249 = tpu.matmul %247, %248, %cst_132 {dimension_numbers = #tpu.dot_dimension_numbers<[1], [0], [0], [1], [0, 0, 1, 1], [], []>} : vector<16x16xf32>, vector<16x32xf32>, vector<16x32xf32> -> vector<16x32xf32>
    %250 = arith.addf %228, %249 : vector<16x32xf32>
    %c1_133 = arith.constant 1 : index
    %c0_134 = arith.constant 0 : index
    %c0_135 = arith.constant 0 : index
    %251 = vector.load %arg15[%c1_133, %c0_134, %c0_135] : memref<2x1x32xf32, #tpu.memory_space<vmem>>, vector<1x1x32xf32>
    %252 = vector.shape_cast %251 : vector<1x1x32xf32> to vector<1x32xf32>
    %253 = vector.broadcast %252 : vector<1x32xf32> to vector<16x32xf32>
    %254 = arith.addf %250, %253 : vector<16x32xf32>
    %255 = arith.addf %254, %172 : vector<16x32xf32>
    %c1_136 = arith.constant 1 : index
    %c0_137 = arith.constant 0 : index
    %c0_138 = arith.constant 0 : index
    %256 = vector.load %arg16[%c1_136, %c0_137, %c0_138] : memref<2x1x32xf32, #tpu.memory_space<vmem>>, vector<1x1x32xf32>
    %257 = vector.shape_cast %256 : vector<1x1x32xf32> to vector<1x32xf32>
    %c1_139 = arith.constant 1 : index
    %c0_140 = arith.constant 0 : index
    %c0_141 = arith.constant 0 : index
    %258 = vector.load %arg17[%c1_139, %c0_140, %c0_141] : memref<2x1x32xf32, #tpu.memory_space<vmem>>, vector<1x1x32xf32>
    %259 = vector.shape_cast %258 : vector<1x1x32xf32> to vector<1x32xf32>
    %cst_142 = arith.constant dense<0.000000e+00> : vector<16xf32>
    %260 = vector.multi_reduction <add>, %255, %cst_142 [1] : vector<16x32xf32> to vector<16xf32>
    %261 = vector.shape_cast %260 : vector<16xf32> to vector<16x1xf32>
    %cst_143 = arith.constant 3.200000e+01 : f32
    %262 = vector.broadcast %cst_143 : f32 to vector<16x1xf32>
    %263 = arith.divf %261, %262 : vector<16x1xf32>
    %264 = vector.broadcast %263 : vector<16x1xf32> to vector<16x32xf32>
    %265 = arith.subf %255, %264 : vector<16x32xf32>
    %266 = arith.mulf %265, %265 : vector<16x32xf32>
    %cst_144 = arith.constant dense<0.000000e+00> : vector<16xf32>
    %267 = vector.multi_reduction <add>, %266, %cst_144 [1] : vector<16x32xf32> to vector<16xf32>
    %268 = vector.shape_cast %267 : vector<16xf32> to vector<16x1xf32>
    %cst_145 = arith.constant 3.200000e+01 : f32
    %269 = vector.broadcast %cst_145 : f32 to vector<16x1xf32>
    %270 = arith.divf %268, %269 : vector<16x1xf32>
    %cst_146 = arith.constant 9.99999974E-6 : f32
    %271 = vector.broadcast %cst_146 : f32 to vector<16x1xf32>
    %272 = arith.addf %270, %271 : vector<16x1xf32>
    %273 = math.rsqrt %272 : vector<16x1xf32>
    %274 = vector.broadcast %273 : vector<16x1xf32> to vector<16x32xf32>
    %275 = arith.mulf %265, %274 : vector<16x32xf32>
    %276 = vector.broadcast %257 : vector<1x32xf32> to vector<16x32xf32>
    %277 = arith.mulf %275, %276 : vector<16x32xf32>
    %278 = vector.broadcast %259 : vector<1x32xf32> to vector<16x32xf32>
    %279 = arith.addf %277, %278 : vector<16x32xf32>
    %c1_147 = arith.constant 1 : index
    %c0_148 = arith.constant 0 : index
    %c0_149 = arith.constant 0 : index
    %280 = vector.load %arg18[%c1_147, %c0_148, %c0_149] : memref<2x32x128xf32, #tpu.memory_space<vmem>>, vector<1x32x128xf32>
    %281 = vector.shape_cast %280 : vector<1x32x128xf32> to vector<32x128xf32>
    %cst_150 = arith.constant dense<0.000000e+00> : vector<16x128xf32>
    %282 = tpu.matmul %279, %281, %cst_150 {dimension_numbers = #tpu.dot_dimension_numbers<[1], [0], [0], [1], [0, 0, 1, 1], [], []>} : vector<16x32xf32>, vector<32x128xf32>, vector<16x128xf32> -> vector<16x128xf32>
    %c1_151 = arith.constant 1 : index
    %c0_152 = arith.constant 0 : index
    %c0_153 = arith.constant 0 : index
    %283 = vector.load %arg19[%c1_151, %c0_152, %c0_153] : memref<2x1x128xf32, #tpu.memory_space<vmem>>, vector<1x1x128xf32>
    %284 = vector.shape_cast %283 : vector<1x1x128xf32> to vector<1x128xf32>
    %285 = vector.broadcast %284 : vector<1x128xf32> to vector<16x128xf32>
    %286 = arith.addf %282, %285 : vector<16x128xf32>
    %cst_154 = arith.constant 5.000000e-01 : f32
    %287 = vector.broadcast %cst_154 : f32 to vector<16x128xf32>
    %288 = arith.mulf %287, %286 : vector<16x128xf32>
    %cst_155 = arith.constant 4.471500e-02 : f32
    %289 = vector.broadcast %cst_155 : f32 to vector<16x128xf32>
    %290 = arith.mulf %289, %286 : vector<16x128xf32>
    %291 = arith.mulf %290, %286 : vector<16x128xf32>
    %292 = arith.mulf %291, %286 : vector<16x128xf32>
    %293 = arith.addf %286, %292 : vector<16x128xf32>
    %cst_156 = arith.constant 0.797884583 : f32
    %294 = vector.broadcast %cst_156 : f32 to vector<16x128xf32>
    %295 = arith.mulf %294, %293 : vector<16x128xf32>
    %296 = math.tanh %295 : vector<16x128xf32>
    %cst_157 = arith.constant 1.000000e+00 : f32
    %297 = vector.broadcast %cst_157 : f32 to vector<16x128xf32>
    %298 = arith.addf %297, %296 : vector<16x128xf32>
    %299 = arith.mulf %288, %298 : vector<16x128xf32>
    %c1_158 = arith.constant 1 : index
    %c0_159 = arith.constant 0 : index
    %c0_160 = arith.constant 0 : index
    %300 = vector.load %arg20[%c1_158, %c0_159, %c0_160] : memref<2x128x32xf32, #tpu.memory_space<vmem>>, vector<1x128x32xf32>
    %301 = vector.shape_cast %300 : vector<1x128x32xf32> to vector<128x32xf32>
    %cst_161 = arith.constant dense<0.000000e+00> : vector<16x32xf32>
    %302 = tpu.matmul %299, %301, %cst_161 {dimension_numbers = #tpu.dot_dimension_numbers<[1], [0], [0], [1], [0, 0, 1, 1], [], []>} : vector<16x128xf32>, vector<128x32xf32>, vector<16x32xf32> -> vector<16x32xf32>
    %c1_162 = arith.constant 1 : index
    %c0_163 = arith.constant 0 : index
    %c0_164 = arith.constant 0 : index
    %303 = vector.load %arg21[%c1_162, %c0_163, %c0_164] : memref<2x1x32xf32, #tpu.memory_space<vmem>>, vector<1x1x32xf32>
    %304 = vector.shape_cast %303 : vector<1x1x32xf32> to vector<1x32xf32>
    %305 = vector.broadcast %304 : vector<1x32xf32> to vector<16x32xf32>
    %306 = arith.addf %302, %305 : vector<16x32xf32>
    %307 = arith.addf %306, %255 : vector<16x32xf32>
    %c0_165 = arith.constant 0 : index
    %c0_166 = arith.constant 0 : index
    %308 = vector.load %arg22[%c0_165, %c0_166] : memref<1x32xf32, #tpu.memory_space<vmem>>, vector<1x32xf32>
    %c0_167 = arith.constant 0 : index
    %c0_168 = arith.constant 0 : index
    %309 = vector.load %arg23[%c0_167, %c0_168] : memref<1x32xf32, #tpu.memory_space<vmem>>, vector<1x32xf32>
    %cst_169 = arith.constant dense<0.000000e+00> : vector<16xf32>
    %310 = vector.multi_reduction <add>, %307, %cst_169 [1] : vector<16x32xf32> to vector<16xf32>
    %311 = vector.shape_cast %310 : vector<16xf32> to vector<16x1xf32>
    %cst_170 = arith.constant 3.200000e+01 : f32
    %312 = vector.broadcast %cst_170 : f32 to vector<16x1xf32>
    %313 = arith.divf %311, %312 : vector<16x1xf32>
    %314 = vector.broadcast %313 : vector<16x1xf32> to vector<16x32xf32>
    %315 = arith.subf %307, %314 : vector<16x32xf32>
    %316 = arith.mulf %315, %315 : vector<16x32xf32>
    %cst_171 = arith.constant dense<0.000000e+00> : vector<16xf32>
    %317 = vector.multi_reduction <add>, %316, %cst_171 [1] : vector<16x32xf32> to vector<16xf32>
    %318 = vector.shape_cast %317 : vector<16xf32> to vector<16x1xf32>
    %cst_172 = arith.constant 3.200000e+01 : f32
    %319 = vector.broadcast %cst_172 : f32 to vector<16x1xf32>
    %320 = arith.divf %318, %319 : vector<16x1xf32>
    %cst_173 = arith.constant 9.99999974E-6 : f32
    %321 = vector.broadcast %cst_173 : f32 to vector<16x1xf32>
    %322 = arith.addf %320, %321 : vector<16x1xf32>
    %323 = math.rsqrt %322 : vector<16x1xf32>
    %324 = vector.broadcast %323 : vector<16x1xf32> to vector<16x32xf32>
    %325 = arith.mulf %315, %324 : vector<16x32xf32>
    %326 = vector.broadcast %308 : vector<1x32xf32> to vector<16x32xf32>
    %327 = arith.mulf %325, %326 : vector<16x32xf32>
    %328 = vector.broadcast %309 : vector<1x32xf32> to vector<16x32xf32>
    %329 = arith.addf %327, %328 : vector<16x32xf32>
    %c0_174 = arith.constant 0 : index
    %c0_175 = arith.constant 0 : index
    %330 = vector.load %arg4[%c0_174, %c0_175] : memref<32x128xf32, #tpu.memory_space<vmem>>, vector<32x128xf32>
    %cst_176 = arith.constant dense<0.000000e+00> : vector<16x128xf32>
    %331 = tpu.matmul %329, %330, %cst_176 {dimension_numbers = #tpu.dot_dimension_numbers<[1], [0], [0], [1], [0, 0, 1, 1], [], []>} : vector<16x32xf32>, vector<32x128xf32>, vector<16x128xf32> -> vector<16x128xf32>
    %c0_177 = arith.constant 0 : index
    %c0_178 = arith.constant 0 : index
    %332 = vector.load %arg24[%c0_177, %c0_178] : memref<16x128xf32, #tpu.memory_space<vmem>>, vector<16x128xf32>
    tpu.vector_store %arg24[%c0_177, %c0_178], %331 {strides = array<i32>} : memref<16x128xf32, #tpu.memory_space<vmem>>, vector<16x128xf32>,
    return
  }
  func.func @transform_0(%arg0: i32) -> (i32, i32) {
    %c0_i32 = arith.constant 0 : i32
    %c0_i32_0 = arith.constant 0 : i32
    return %arg0, %c0_i32 : i32, i32
  }
  func.func @transform_1(%arg0: i32) -> (i32, i32, i32) {
    %c0_i32 = arith.constant 0 : i32
    %c0_i32_0 = arith.constant 0 : i32
    %c0_i32_1 = arith.constant 0 : i32
    return %arg0, %c0_i32, %c0_i32_0 : i32, i32, i32
  }
  func.func @transform_2(%arg0: i32) -> (i32, i32) {
    %c0_i32 = arith.constant 0 : i32
    %c0_i32_0 = arith.constant 0 : i32
    %c0_i32_1 = arith.constant 0 : i32
    return %c0_i32, %c0_i32_0 : i32, i32
  }
  func.func @transform_3(%arg0: i32) -> (i32, i32) {
    %c0_i32 = arith.constant 0 : i32
    %c0_i32_0 = arith.constant 0 : i32
    %c0_i32_1 = arith.constant 0 : i32
    return %c0_i32, %c0_i32_0 : i32, i32
  }
  func.func @transform_4(%arg0: i32) -> (i32, i32) {
    %c0_i32 = arith.constant 0 : i32
    %c0_i32_0 = arith.constant 0 : i32
    %c0_i32_1 = arith.constant 0 : i32
    return %c0_i32, %c0_i32_0 : i32, i32
  }
  func.func @transform_5(%arg0: i32) -> (i32, i32) {
    %c0_i32 = arith.constant 0 : i32
    %c0_i32_0 = arith.constant 0 : i32
    %c0_i32_1 = arith.constant 0 : i32
    return %c0_i32, %c0_i32_0 : i32, i32
  }
  func.func @transform_6(%arg0: i32) -> (i32, i32) {
    %c0_i32 = arith.constant 0 : i32
    %c0_i32_0 = arith.constant 0 : i32
    %c0_i32_1 = arith.constant 0 : i32
    return %c0_i32, %c0_i32_0 : i32, i32
  }
  func.func @transform_7(%arg0: i32) -> (i32, i32, i32) {
    %c0_i32 = arith.constant 0 : i32
    %c0_i32_0 = arith.constant 0 : i32
    %c0_i32_1 = arith.constant 0 : i32
    %c0_i32_2 = arith.constant 0 : i32
    return %c0_i32, %c0_i32_0, %c0_i32_1 : i32, i32, i32
  }
  func.func @transform_8(%arg0: i32) -> (i32, i32) {
    %c0_i32 = arith.constant 0 : i32
    %c0_i32_0 = arith.constant 0 : i32
    %c0_i32_1 = arith.constant 0 : i32
    return %c0_i32, %c0_i32_0 : i32, i32
  }
  func.func @transform_9(%arg0: i32) -> (i32, i32, i32) {
    %c0_i32 = arith.constant 0 : i32
    %c0_i32_0 = arith.constant 0 : i32
    %c0_i32_1 = arith.constant 0 : i32
    %c0_i32_2 = arith.constant 0 : i32
    return %c0_i32, %c0_i32_0, %c0_i32_1 : i32, i32, i32
  }
  func.func @transform_10(%arg0: i32) -> (i32, i32, i32) {
    %c0_i32 = arith.constant 0 : i32
    %c0_i32_0 = arith.constant 0 : i32
    %c0_i32_1 = arith.constant 0 : i32
    %c0_i32_2 = arith.constant 0 : i32
    return %c0_i32, %c0_i32_0, %c0_i32_1 : i32, i32, i32
  }
  func.func @transform_11(%arg0: i32) -> (i32, i32, i32) {
    %c0_i32 = arith.constant 0 : i32
    %c0_i32_0 = arith.constant 0 : i32
    %c0_i32_1 = arith.constant 0 : i32
    %c0_i32_2 = arith.constant 0 : i32
    return %c0_i32, %c0_i32_0, %c0_i32_1 : i32, i32, i32
  }
  func.func @transform_12(%arg0: i32) -> (i32, i32, i32) {
    %c0_i32 = arith.constant 0 : i32
    %c0_i32_0 = arith.constant 0 : i32
    %c0_i32_1 = arith.constant 0 : i32
    %c0_i32_2 = arith.constant 0 : i32
    return %c0_i32, %c0_i32_0, %c0_i32_1 : i32, i32, i32
  }
  func.func @transform_13(%arg0: i32) -> (i32, i32, i32) {
    %c0_i32 = arith.constant 0 : i32
    %c0_i32_0 = arith.constant 0 : i32
    %c0_i32_1 = arith.constant 0 : i32
    %c0_i32_2 = arith.constant 0 : i32
    return %c0_i32, %c0_i32_0, %c0_i32_1 : i32, i32, i32
  }
  func.func @transform_14(%arg0: i32) -> (i32, i32, i32) {
    %c0_i32 = arith.constant 0 : i32
    %c0_i32_0 = arith.constant 0 : i32
    %c0_i32_1 = arith.constant 0 : i32
    %c0_i32_2 = arith.constant 0 : i32
    return %c0_i32, %c0_i32_0, %c0_i32_1 : i32, i32, i32
  }
  func.func @transform_15(%arg0: i32) -> (i32, i32, i32) {
    %c0_i32 = arith.constant 0 : i32
    %c0_i32_0 = arith.constant 0 : i32
    %c0_i32_1 = arith.constant 0 : i32
    %c0_i32_2 = arith.constant 0 : i32
    return %c0_i32, %c0_i32_0, %c0_i32_1 : i32, i32, i32
  }
  func.func @transform_16(%arg0: i32) -> (i32, i32, i32) {
    %c0_i32 = arith.constant 0 : i32
    %c0_i32_0 = arith.constant 0 : i32
    %c0_i32_1 = arith.constant 0 : i32
    %c0_i32_2 = arith.constant 0 : i32
    return %c0_i32, %c0_i32_0, %c0_i32_1 : i32, i32, i32
  }
  func.func @transform_17(%arg0: i32) -> (i32, i32, i32) {
    %c0_i32 = arith.constant 0 : i32
    %c0_i32_0 = arith.constant 0 : i32
    %c0_i32_1 = arith.constant 0 : i32
    %c0_i32_2 = arith.constant 0 : i32
    return %c0_i32, %c0_i32_0, %c0_i32_1 : i32, i32, i32
  }
  func.func @transform_18(%arg0: i32) -> (i32, i32, i32) {
    %c0_i32 = arith.constant 0 : i32
    %c0_i32_0 = arith.constant 0 : i32
    %c0_i32_1 = arith.constant 0 : i32
    %c0_i32_2 = arith.constant 0 : i32
    return %c0_i32, %c0_i32_0, %c0_i32_1 : i32, i32, i32
  }
  func.func @transform_19(%arg0: i32) -> (i32, i32, i32) {
    %c0_i32 = arith.constant 0 : i32
    %c0_i32_0 = arith.constant 0 : i32
    %c0_i32_1 = arith.constant 0 : i32
    %c0_i32_2 = arith.constant 0 : i32
    return %c0_i32, %c0_i32_0, %c0_i32_1 : i32, i32, i32
  }
  func.func @transform_20(%arg0: i32) -> (i32, i32, i32) {
    %c0_i32 = arith.constant 0 : i32
    %c0_i32_0 = arith.constant 0 : i32
    %c0_i32_1 = arith.constant 0 : i32
    %c0_i32_2 = arith.constant 0 : i32
    return %c0_i32, %c0_i32_0, %c0_i32_1 : i32, i32, i32
  }
  func.func @transform_21(%arg0: i32) -> (i32, i32) {
    %c0_i32 = arith.constant 0 : i32
    %c0_i32_0 = arith.constant 0 : i32
    %c0_i32_1 = arith.constant 0 : i32
    return %c0_i32, %c0_i32_0 : i32, i32
  }
  func.func @transform_22(%arg0: i32) -> (i32, i32) {
    %c0_i32 = arith.constant 0 : i32
    %c0_i32_0 = arith.constant 0 : i32
    %c0_i32_1 = arith.constant 0 : i32
    return %c0_i32, %c0_i32_0 : i32, i32
  }
  func.func @transform_23(%arg0: i32) -> (i32, i32) {
    %c0_i32 = arith.constant 0 : i32
    %c0_i32_0 = arith.constant 0 : i32
    return %arg0, %c0_i32 : i32, i32
  }
}

</mosaic_0001>

<llo_original>
// kernel: clip_caption_forward.1
$region0: #{clip_caption_forward.1}
  #allocation0 [shape = 'u32[]', space=smem, size = 0x4, offset = 0x4, fixed_abs, tag = 'smem constant byte address 0x4 - core index']
  #allocation1 [shape = 'u32[144,128]{1,0:T(1,128)}', space=vmem, size = 0x12000, scoped, tag = 'internal scratch']
  %s0 = inlined_call_operand.vmem [shape: s32[32,1], index: 0, kind: input, shape index: {}]
  %s1 = inlined_call_operand.vmem [shape: f32[2,1,32], index: 1, kind: input, shape index: {}]
  %s2 = inlined_call_operand.vmem [shape: f32[128,32], index: 2, kind: input, shape index: {}]
  %s3 = inlined_call_operand.vmem [shape: f32[32,128], index: 3, kind: input, shape index: {}]
  %s4 = inlined_call_operand.vmem [shape: f32[32,32], index: 4, kind: input, shape index: {}]
  %s5 = inlined_call_operand.vmem [shape: f32[32,64], index: 5, kind: input, shape index: {}]
  %s6 = inlined_call_operand.vmem [shape: f32[1,64], index: 6, kind: input, shape index: {}]
  %s7 = inlined_call_operand.vmem [shape: f32[4,64,32], index: 7, kind: input, shape index: {}]
  %s8 = inlined_call_operand.vmem [shape: f32[4,32], index: 8, kind: input, shape index: {}]
  %s9 = inlined_call_operand.vmem [shape: f32[2,1,32], index: 9, kind: input, shape index: {}]
  %s10 = inlined_call_operand.vmem [shape: f32[2,1,32], index: 10, kind: input, shape index: {}]
  %s11 = inlined_call_operand.vmem [shape: f32[2,32,96], index: 11, kind: input, shape index: {}]
  %s12 = inlined_call_operand.vmem [shape: f32[2,1,96], index: 12, kind: input, shape index: {}]
  %s13 = inlined_call_operand.vmem [shape: f32[2,32,32], index: 13, kind: input, shape index: {}]
  %s14 = inlined_call_operand.vmem [shape: f32[2,1,32], index: 14, kind: input, shape index: {}]
  %s15 = inlined_call_operand.vmem [shape: f32[2,1,32], index: 15, kind: input, shape index: {}]
  %s16 = inlined_call_operand.vmem [shape: f32[2,1,32], index: 16, kind: input, shape index: {}]
  %s17 = inlined_call_operand.vmem [shape: f32[2,32,128], index: 17, kind: input, shape index: {}]
  %s18 = inlined_call_operand.vmem [shape: f32[2,1,128], index: 18, kind: input, shape index: {}]
  %s19 = inlined_call_operand.vmem [shape: f32[2,128,32], index: 19, kind: input, shape index: {}]
  %s20 = inlined_call_operand.vmem [shape: f32[2,1,32], index: 20, kind: input, shape index: {}]
  %s21 = inlined_call_operand.vmem [shape: f32[1,32], index: 21, kind: input, shape index: {}]
  %s22 = inlined_call_operand.vmem [shape: f32[1,32], index: 22, kind: input, shape index: {}]
  %s23 = inlined_call_operand.vmem [shape: f32[32,128], index: 23, kind: output, shape index: {}]
  %s24 = sld [smem:[#allocation0]]
  $region125: #{clip_caption_forward.1} parent=0
    _
  %s26 = ssub.s32 1, %s24
  %s27 = scalar_select 0, %s26, %s24
  loop: start=0, step=1, limit=4
  $region2: #{clip_caption_forward.1} parent=0 // loop_pre_header
    _
  $region3: #{clip_caption_forward.1} parent=0 // loop_header
    %s29 = sphi 0, %s33
    %p30 = scmp.ge.s32.totalorder %s29, 4
    %s39 = sphi 0, %s41
    %s42 = sphi 0, %s39
    %s43 = sphi 0, %s42
    %s59 = sphi 0, %s43
    %s65 = sphi 0, %s67
    %s68 = sphi 0, %s65
    %s69 = sphi 0, %s68
    %s85 = sphi 0, %s69
    %s89 = sphi 0, %s89
    %s91 = sphi 0, %s89
    %s92 = sphi 0, %s91
    %s106 = sphi 0, %s92
    %s110 = sphi 0, %s110
    %s112 = sphi 0, %s110
    %s113 = sphi 0, %s112
    %s127 = sphi 0, %s113
    %s131 = sphi 0, %s131
    %s133 = sphi 0, %s131
    %s134 = sphi 0, %s133
    %s148 = sphi 0, %s134
    %s152 = sphi 0, %s152
    %s154 = sphi 0, %s152
    %s155 = sphi 0, %s154
    %s169 = sphi 0, %s155
    %s173 = sphi 0, %s173
    %s175 = sphi 0, %s173
    %s176 = sphi 0, %s175
    %s190 = sphi 0, %s176
    %s194 = sphi 0, %s194
    %s196 = sphi 0, %s194
    %s197 = sphi 0, %s196
    %s211 = sphi 0, %s197
    %s215 = sphi 0, %s215
    %s217 = sphi 0, %s215
    %s218 = sphi 0, %s217
    %s232 = sphi 0, %s218
    %s236 = sphi 0, %s236
    %s238 = sphi 0, %s236
    %s239 = sphi 0, %s238
    %s253 = sphi 0, %s239
    %s257 = sphi 0, %s257
    %s259 = sphi 0, %s257
    %s260 = sphi 0, %s259
    %s274 = sphi 0, %s260
    %s278 = sphi 0, %s278
    %s280 = sphi 0, %s278
    %s281 = sphi 0, %s280
    %s295 = sphi 0, %s281
    %s299 = sphi 0, %s299
    %s301 = sphi 0, %s299
    %s302 = sphi 0, %s301
    %s316 = sphi 0, %s302
    %s320 = sphi 0, %s320
    %s322 = sphi 0, %s320
    %s323 = sphi 0, %s322
    %s337 = sphi 0, %s323
    %s341 = sphi 0, %s341
    %s343 = sphi 0, %s341
    %s344 = sphi 0, %s343
    %s358 = sphi 0, %s344
    %s362 = sphi 0, %s362
    %s364 = sphi 0, %s362
    %s365 = sphi 0, %s364
    %s379 = sphi 0, %s365
    %s383 = sphi 0, %s383
    %s385 = sphi 0, %s383
    %s386 = sphi 0, %s385
    %s400 = sphi 0, %s386
    %s404 = sphi 0, %s404
    %s406 = sphi 0, %s404
    %s407 = sphi 0, %s406
    %s421 = sphi 0, %s407
    %s425 = sphi 0, %s425
    %s427 = sphi 0, %s425
    %s428 = sphi 0, %s427
    %s442 = sphi 0, %s428
    %s446 = sphi 0, %s446
    %s448 = sphi 0, %s446
    %s449 = sphi 0, %s448
    %s463 = sphi 0, %s449
    %s467 = sphi 0, %s467
    %s469 = sphi 0, %s467
    %s470 = sphi 0, %s469
    %s484 = sphi 0, %s470
    %s488 = sphi 0, %s488
    %s490 = sphi 0, %s488
    %s491 = sphi 0, %s490
    %s505 = sphi 0, %s491
    %s509 = sphi 0, %s509
    %s511 = sphi 0, %s509
    %s512 = sphi 0, %s511
    %s526 = sphi 0, %s512
    %s532 = sphi 0, %s534
    %s535 = sphi 0, %s532
    %s536 = sphi 0, %s535
    %s552 = sphi 0, %s536
  $region4: #{clip_caption_forward.1} parent=0 // loop_header_branch
    %32 = sbr.rel (%p30) target = $region8
  $region5: #{clip_caption_forward.1} parent=0 // loop_body
    %s34 = ssub.s32 %s29, 1
    %s35 = ssub.s32 %s29, 2
    %s36 = sadd.s32 %s29, 1
    %s37 = ssub.s32 %s29, %s36
    %p38 = scmp.eq.s32.totalorder %s37, 0
    %s40 = sadd.s32 %s39, 1
    %s41 = scalar_select %p38, %s39, %s40
    %p44 = pneg %p38
    %p45 = scmp.eq.s32.totalorder %s29, 1
    %p46 = por %p44, %p45
    %p47 = scmp.ne.s32.totalorder %s39, %s42
    %p48 = scmp.eq.s32.totalorder %s29, 0
    %p49 = por %p47, %p48
    %p50 = scmp.ne.s32.totalorder %s39, %s42
    %p51 = scmp.eq.s32.totalorder %s34, 1
    %p52 = por %p50, %p51
    %p53 = scmp.ne.s32.totalorder %s42, %s43
    %p54 = scmp.eq.s32.totalorder %s34, 0
    %p55 = por %p53, %p54
    %p56 = scmp.ne.s32.totalorder %s42, %s43
    %p57 = scmp.eq.s32.totalorder %s35, 1
    %p58 = por %p56, %p57
    %p60 = scmp.ne.s32.totalorder %s43, %s59
    %p61 = scmp.eq.s32.totalorder %s35, 0
    %p62 = por %p60, %p61
    %s63 = ssub.s32 %s29, %s36
    %p64 = scmp.eq.s32.totalorder %s63, 0
    %s66 = sadd.s32 %s65, 1
    %s67 = scalar_select %p64, %s65, %s66
    %p70 = pneg %p64
    %p71 = scmp.eq.s32.totalorder %s29, 1
    %p72 = por %p70, %p71
    %p73 = scmp.ne.s32.totalorder %s65, %s68
    %p74 = scmp.eq.s32.totalorder %s29, 0
    %p75 = por %p73, %p74
    %p76 = scmp.ne.s32.totalorder %s65, %s68
    %p77 = scmp.eq.s32.totalorder %s34, 1
    %p78 = por %p76, %p77
    %p79 = scmp.ne.s32.totalorder %s68, %s69
    %p80 = scmp.eq.s32.totalorder %s34, 0
    %p81 = por %p79, %p80
    %p82 = scmp.ne.s32.totalorder %s68, %s69
    %p83 = scmp.eq.s32.totalorder %s35, 1
    %p84 = por %p82, %p83
    %p86 = scmp.ne.s32.totalorder %s69, %s85
    %p87 = scmp.eq.s32.totalorder %s35, 0
    %p88 = por %p86, %p87
    %s90 = sadd.s32 %s89, 1
    %p93 = scmp.eq.s32.totalorder %s29, 1
    %p94 = scmp.ne.s32.totalorder %s89, %s91
    %p95 = scmp.eq.s32.totalorder %s29, 0
    %p96 = por %p94, %p95
    %p97 = scmp.ne.s32.totalorder %s89, %s91
    %p98 = scmp.eq.s32.totalorder %s34, 1
    %p99 = por %p97, %p98
    %p100 = scmp.ne.s32.totalorder %s91, %s92
    %p101 = scmp.eq.s32.totalorder %s34, 0
    %p102 = por %p100, %p101
    %p103 = scmp.ne.s32.totalorder %s91, %s92
    %p104 = scmp.eq.s32.totalorder %s35, 1
    %p105 = por %p103, %p104
    %p107 = scmp.ne.s32.totalorder %s92, %s106
    %p108 = scmp.eq.s32.totalorder %s35, 0
    %p109 = por %p107, %p108
    %s111 = sadd.s32 %s110, 1
    %p114 = scmp.eq.s32.totalorder %s29, 1
    %p115 = scmp.ne.s32.totalorder %s110, %s112
    %p116 = scmp.eq.s32.totalorder %s29, 0
    %p117 = por %p115, %p116
    %p118 = scmp.ne.s32.totalorder %s110, %s112
    %p119 = scmp.eq.s32.totalorder %s34, 1
    %p120 = por %p118, %p119
    %p121 = scmp.ne.s32.totalorder %s112, %s113
    %p122 = scmp.eq.s32.totalorder %s34, 0
    %p123 = por %p121, %p122
    %p124 = scmp.ne.s32.totalorder %s112, %s113
    %p125 = scmp.eq.s32.totalorder %s35, 1
    %p126 = por %p124, %p125
    %p128 = scmp.ne.s32.totalorder %s113, %s127
    %p129 = scmp.eq.s32.totalorder %s35, 0
    %p130 = por %p128, %p129
    %s132 = sadd.s32 %s131, 1
    %p135 = scmp.eq.s32.totalorder %s29, 1
    %p136 = scmp.ne.s32.totalorder %s131, %s133
    %p137 = scmp.eq.s32.totalorder %s29, 0
    %p138 = por %p136, %p137
    %p139 = scmp.ne.s32.totalorder %s131, %s133
    %p140 = scmp.eq.s32.totalorder %s34, 1
    %p141 = por %p139, %p140
    %p142 = scmp.ne.s32.totalorder %s133, %s134
    %p143 = scmp.eq.s32.totalorder %s34, 0
    %p144 = por %p142, %p143
    %p145 = scmp.ne.s32.totalorder %s133, %s134
    %p146 = scmp.eq.s32.totalorder %s35, 1
    %p147 = por %p145, %p146
    %p149 = scmp.ne.s32.totalorder %s134, %s148
    %p150 = scmp.eq.s32.totalorder %s35, 0
    %p151 = por %p149, %p150
    %s153 = sadd.s32 %s152, 1
    %p156 = scmp.eq.s32.totalorder %s29, 1
    %p157 = scmp.ne.s32.totalorder %s152, %s154
    %p158 = scmp.eq.s32.totalorder %s29, 0
    %p159 = por %p157, %p158
    %p160 = scmp.ne.s32.totalorder %s152, %s154
    %p161 = scmp.eq.s32.totalorder %s34, 1
    %p162 = por %p160, %p161
    %p163 = scmp.ne.s32.totalorder %s154, %s155
    %p164 = scmp.eq.s32.totalorder %s34, 0
    %p165 = por %p163, %p164
    %p166 = scmp.ne.s32.totalorder %s154, %s155
    %p167 = scmp.eq.s32.totalorder %s35, 1
    %p168 = por %p166, %p167
    %p170 = scmp.ne.s32.totalorder %s155, %s169
    %p171 = scmp.eq.s32.totalorder %s35, 0
    %p172 = por %p170, %p171
    %s174 = sadd.s32 %s173, 1
    %p177 = scmp.eq.s32.totalorder %s29, 1
    %p178 = scmp.ne.s32.totalorder %s173, %s175
    %p179 = scmp.eq.s32.totalorder %s29, 0
    %p180 = por %p178, %p179
    %p181 = scmp.ne.s32.totalorder %s173, %s175
    %p182 = scmp.eq.s32.totalorder %s34, 1
    %p183 = por %p181, %p182
    %p184 = scmp.ne.s32.totalorder %s175, %s176
    %p185 = scmp.eq.s32.totalorder %s34, 0
    %p186 = por %p184, %p185
    %p187 = scmp.ne.s32.totalorder %s175, %s176
    %p188 = scmp.eq.s32.totalorder %s35, 1
    %p189 = por %p187, %p188
    %p191 = scmp.ne.s32.totalorder %s176, %s190
    %p192 = scmp.eq.s32.totalorder %s35, 0
    %p193 = por %p191, %p192
    %s195 = sadd.s32 %s194, 1
    %p198 = scmp.eq.s32.totalorder %s29, 1
    %p199 = scmp.ne.s32.totalorder %s194, %s196
    %p200 = scmp.eq.s32.totalorder %s29, 0
    %p201 = por %p199, %p200
    %p202 = scmp.ne.s32.totalorder %s194, %s196
    %p203 = scmp.eq.s32.totalorder %s34, 1
    %p204 = por %p202, %p203
    %p205 = scmp.ne.s32.totalorder %s196, %s197
    %p206 = scmp.eq.s32.totalorder %s34, 0
    %p207 = por %p205, %p206
    %p208 = scmp.ne.s32.totalorder %s196, %s197
    %p209 = scmp.eq.s32.totalorder %s35, 1
    %p210 = por %p208, %p209
    %p212 = scmp.ne.s32.totalorder %s197, %s211
    %p213 = scmp.eq.s32.totalorder %s35, 0
    %p214 = por %p212, %p213
    %s216 = sadd.s32 %s215, 1
    %p219 = scmp.eq.s32.totalorder %s29, 1
    %p220 = scmp.ne.s32.totalorder %s215, %s217
    %p221 = scmp.eq.s32.totalorder %s29, 0
    %p222 = por %p220, %p221
    %p223 = scmp.ne.s32.totalorder %s215, %s217
    %p224 = scmp.eq.s32.totalorder %s34, 1
    %p225 = por %p223, %p224
    %p226 = scmp.ne.s32.totalorder %s217, %s218
    %p227 = scmp.eq.s32.totalorder %s34, 0
    %p228 = por %p226, %p227
    %p229 = scmp.ne.s32.totalorder %s217, %s218
    %p230 = scmp.eq.s32.totalorder %s35, 1
    %p231 = por %p229, %p230
    %p233 = scmp.ne.s32.totalorder %s218, %s232
    %p234 = scmp.eq.s32.totalorder %s35, 0
    %p235 = por %p233, %p234
    %s237 = sadd.s32 %s236, 1
    %p240 = scmp.eq.s32.totalorder %s29, 1
    %p241 = scmp.ne.s32.totalorder %s236, %s238
    %p242 = scmp.eq.s32.totalorder %s29, 0
    %p243 = por %p241, %p242
    %p244 = scmp.ne.s32.totalorder %s236, %s238
    %p245 = scmp.eq.s32.totalorder %s34, 1
    %p246 = por %p244, %p245
    %p247 = scmp.ne.s32.totalorder %s238, %s239
    %p248 = scmp.eq.s32.totalorder %s34, 0
    %p249 = por %p247, %p248
    %p250 = scmp.ne.s32.totalorder %s238, %s239
    %p251 = scmp.eq.s32.totalorder %s35, 1
    %p252 = por %p250, %p251
    %p254 = scmp.ne.s32.totalorder %s239, %s253
    %p255 = scmp.eq.s32.totalorder %s35, 0
    %p256 = por %p254, %p255
    %s258 = sadd.s32 %s257, 1
    %p261 = scmp.eq.s32.totalorder %s29, 1
    %p262 = scmp.ne.s32.totalorder %s257, %s259
    %p263 = scmp.eq.s32.totalorder %s29, 0
    %p264 = por %p262, %p263
    %p265 = scmp.ne.s32.totalorder %s257, %s259
    %p266 = scmp.eq.s32.totalorder %s34, 1
    %p267 = por %p265, %p266
    %p268 = scmp.ne.s32.totalorder %s259, %s260
    %p269 = scmp.eq.s32.totalorder %s34, 0
    %p270 = por %p268, %p269
    %p271 = scmp.ne.s32.totalorder %s259, %s260
    %p272 = scmp.eq.s32.totalorder %s35, 1
    %p273 = por %p271, %p272
    %p275 = scmp.ne.s32.totalorder %s260, %s274
    %p276 = scmp.eq.s32.totalorder %s35, 0
    %p277 = por %p275, %p276
    %s279 = sadd.s32 %s278, 1
    %p282 = scmp.eq.s32.totalorder %s29, 1
    %p283 = scmp.ne.s32.totalorder %s278, %s280
    %p284 = scmp.eq.s32.totalorder %s29, 0
    %p285 = por %p283, %p284
    %p286 = scmp.ne.s32.totalorder %s278, %s280
    %p287 = scmp.eq.s32.totalorder %s34, 1
    %p288 = por %p286, %p287
    %p289 = scmp.ne.s32.totalorder %s280, %s281
    %p290 = scmp.eq.s32.totalorder %s34, 0
    %p291 = por %p289, %p290
    %p292 = scmp.ne.s32.totalorder %s280, %s281
    %p293 = scmp.eq.s32.totalorder %s35, 1
    %p294 = por %p292, %p293
    %p296 = scmp.ne.s32.totalorder %s281, %s295
    %p297 = scmp.eq.s32.totalorder %s35, 0
    %p298 = por %p296, %p297
    %s300 = sadd.s32 %s299, 1
    %p303 = scmp.eq.s32.totalorder %s29, 1
    %p304 = scmp.ne.s32.totalorder %s299, %s301
    %p305 = scmp.eq.s32.totalorder %s29, 0
    %p306 = por %p304, %p305
    %p307 = scmp.ne.s32.totalorder %s299, %s301
    %p308 = scmp.eq.s32.totalorder %s34, 1
    %p309 = por %p307, %p308
    %p310 = scmp.ne.s32.totalorder %s301, %s302
    %p311 = scmp.eq.s32.totalorder %s34, 0
    %p312 = por %p310, %p311
    %p313 = scmp.ne.s32.totalorder %s301, %s302
    %p314 = scmp.eq.s32.totalorder %s35, 1
    %p315 = por %p313, %p314
    %p317 = scmp.ne.s32.totalorder %s302, %s316
    %p318 = scmp.eq.s32.totalorder %s35, 0
    %p319 = por %p317, %p318
    %s321 = sadd.s32 %s320, 1
    %p324 = scmp.eq.s32.totalorder %s29, 1
    %p325 = scmp.ne.s32.totalorder %s320, %s322
    %p326 = scmp.eq.s32.totalorder %s29, 0
    %p327 = por %p325, %p326
    %p328 = scmp.ne.s32.totalorder %s320, %s322
    %p329 = scmp.eq.s32.totalorder %s34, 1
    %p330 = por %p328, %p329
    %p331 = scmp.ne.s32.totalorder %s322, %s323
    %p332 = scmp.eq.s32.totalorder %s34, 0
    %p333 = por %p331, %p332
    %p334 = scmp.ne.s32.totalorder %s322, %s323
    %p335 = scmp.eq.s32.totalorder %s35, 1
    %p336 = por %p334, %p335
    %p338 = scmp.ne.s32.totalorder %s323, %s337
    %p339 = scmp.eq.s32.totalorder %s35, 0
    %p340 = por %p338, %p339
    %s342 = sadd.s32 %s341, 1
    %p345 = scmp.eq.s32.totalorder %s29, 1
    %p346 = scmp.ne.s32.totalorder %s341, %s343
    %p347 = scmp.eq.s32.totalorder %s29, 0
    %p348 = por %p346, %p347
    %p349 = scmp.ne.s32.totalorder %s341, %s343
    %p350 = scmp.eq.s32.totalorder %s34, 1
    %p351 = por %p349, %p350
    %p352 = scmp.ne.s32.totalorder %s343, %s344
    %p353 = scmp.eq.s32.totalorder %s34, 0
    %p354 = por %p352, %p353
    %p355 = scmp.ne.s32.totalorder %s343, %s344
    %p356 = scmp.eq.s32.totalorder %s35, 1
    %p357 = por %p355, %p356
    %p359 = scmp.ne.s32.totalorder %s344, %s358
    %p360 = scmp.eq.s32.totalorder %s35, 0
    %p361 = por %p359, %p360
    %s363 = sadd.s32 %s362, 1
    %p366 = scmp.eq.s32.totalorder %s29, 1
    %p367 = scmp.ne.s32.totalorder %s362, %s364
    %p368 = scmp.eq.s32.totalorder %s29, 0
    %p369 = por %p367, %p368
    %p370 = scmp.ne.s32.totalorder %s362, %s364
    %p371 = scmp.eq.s32.totalorder %s34, 1
    %p372 = por %p370, %p371
    %p373 = scmp.ne.s32.totalorder %s364, %s365
    %p374 = scmp.eq.s32.totalorder %s34, 0
    %p375 = por %p373, %p374
    %p376 = scmp.ne.s32.totalorder %s364, %s365
    %p377 = scmp.eq.s32.totalorder %s35, 1
    %p378 = por %p376, %p377
    %p380 = scmp.ne.s32.totalorder %s365, %s379
    %p381 = scmp.eq.s32.totalorder %s35, 0
    %p382 = por %p380, %p381
    %s384 = sadd.s32 %s383, 1
    %p387 = scmp.eq.s32.totalorder %s29, 1
    %p388 = scmp.ne.s32.totalorder %s383, %s385
    %p389 = scmp.eq.s32.totalorder %s29, 0
    %p390 = por %p388, %p389
    %p391 = scmp.ne.s32.totalorder %s383, %s385
    %p392 = scmp.eq.s32.totalorder %s34, 1
    %p393 = por %p391, %p392
    %p394 = scmp.ne.s32.totalorder %s385, %s386
    %p395 = scmp.eq.s32.totalorder %s34, 0
    %p396 = por %p394, %p395
    %p397 = scmp.ne.s32.totalorder %s385, %s386
    %p398 = scmp.eq.s32.totalorder %s35, 1
    %p399 = por %p397, %p398
    %p401 = scmp.ne.s32.totalorder %s386, %s400
    %p402 = scmp.eq.s32.totalorder %s35, 0
    %p403 = por %p401, %p402
    %s405 = sadd.s32 %s404, 1
    %p408 = scmp.eq.s32.totalorder %s29, 1
    %p409 = scmp.ne.s32.totalorder %s404, %s406
    %p410 = scmp.eq.s32.totalorder %s29, 0
    %p411 = por %p409, %p410
    %p412 = scmp.ne.s32.totalorder %s404, %s406
    %p413 = scmp.eq.s32.totalorder %s34, 1
    %p414 = por %p412, %p413
    %p415 = scmp.ne.s32.totalorder %s406, %s407
    %p416 = scmp.eq.s32.totalorder %s34, 0
    %p417 = por %p415, %p416
    %p418 = scmp.ne.s32.totalorder %s406, %s407
    %p419 = scmp.eq.s32.totalorder %s35, 1
    %p420 = por %p418, %p419
    %p422 = scmp.ne.s32.totalorder %s407, %s421
    %p423 = scmp.eq.s32.totalorder %s35, 0
    %p424 = por %p422, %p423
    %s426 = sadd.s32 %s425, 1
    %p429 = scmp.eq.s32.totalorder %s29, 1
    %p430 = scmp.ne.s32.totalorder %s425, %s427
    %p431 = scmp.eq.s32.totalorder %s29, 0
    %p432 = por %p430, %p431
    %p433 = scmp.ne.s32.totalorder %s425, %s427
    %p434 = scmp.eq.s32.totalorder %s34, 1
    %p435 = por %p433, %p434
    %p436 = scmp.ne.s32.totalorder %s427, %s428
    %p437 = scmp.eq.s32.totalorder %s34, 0
    %p438 = por %p436, %p437
    %p439 = scmp.ne.s32.totalorder %s427, %s428
    %p440 = scmp.eq.s32.totalorder %s35, 1
    %p441 = por %p439, %p440
    %p443 = scmp.ne.s32.totalorder %s428, %s442
    %p444 = scmp.eq.s32.totalorder %s35, 0
    %p445 = por %p443, %p444
    %s447 = sadd.s32 %s446, 1
    %p450 = scmp.eq.s32.totalorder %s29, 1
    %p451 = scmp.ne.s32.totalorder %s446, %s448
    %p452 = scmp.eq.s32.totalorder %s29, 0
    %p453 = por %p451, %p452
    %p454 = scmp.ne.s32.totalorder %s446, %s448
    %p455 = scmp.eq.s32.totalorder %s34, 1
    %p456 = por %p454, %p455
    %p457 = scmp.ne.s32.totalorder %s448, %s449
    %p458 = scmp.eq.s32.totalorder %s34, 0
    %p459 = por %p457, %p458
    %p460 = scmp.ne.s32.totalorder %s448, %s449
    %p461 = scmp.eq.s32.totalorder %s35, 1
    %p462 = por %p460, %p461
    %p464 = scmp.ne.s32.totalorder %s449, %s463
    %p465 = scmp.eq.s32.totalorder %s35, 0
    %p466 = por %p464, %p465
    %s468 = sadd.s32 %s467, 1
    %p471 = scmp.eq.s32.totalorder %s29, 1
    %p472 = scmp.ne.s32.totalorder %s467, %s469
    %p473 = scmp.eq.s32.totalorder %s29, 0
    %p474 = por %p472, %p473
    %p475 = scmp.ne.s32.totalorder %s467, %s469
    %p476 = scmp.eq.s32.totalorder %s34, 1
    %p477 = por %p475, %p476
    %p478 = scmp.ne.s32.totalorder %s469, %s470
    %p479 = scmp.eq.s32.totalorder %s34, 0
    %p480 = por %p478, %p479
    %p481 = scmp.ne.s32.totalorder %s469, %s470
    %p482 = scmp.eq.s32.totalorder %s35, 1
    %p483 = por %p481, %p482
    %p485 = scmp.ne.s32.totalorder %s470, %s484
    %p486 = scmp.eq.s32.totalorder %s35, 0
    %p487 = por %p485, %p486
    %s489 = sadd.s32 %s488, 1
    %p492 = scmp.eq.s32.totalorder %s29, 1
    %p493 = scmp.ne.s32.totalorder %s488, %s490
    %p494 = scmp.eq.s32.totalorder %s29, 0
    %p495 = por %p493, %p494
    %p496 = scmp.ne.s32.totalorder %s488, %s490
    %p497 = scmp.eq.s32.totalorder %s34, 1
    %p498 = por %p496, %p497
    %p499 = scmp.ne.s32.totalorder %s490, %s491
    %p500 = scmp.eq.s32.totalorder %s34, 0
    %p501 = por %p499, %p500
    %p502 = scmp.ne.s32.totalorder %s490, %s491
    %p503 = scmp.eq.s32.totalorder %s35, 1
    %p504 = por %p502, %p503
    %p506 = scmp.ne.s32.totalorder %s491, %s505
    %p507 = scmp.eq.s32.totalorder %s35, 0
    %p508 = por %p506, %p507
    %s510 = sadd.s32 %s509, 1
    %p513 = scmp.eq.s32.totalorder %s29, 1
    %p514 = scmp.ne.s32.totalorder %s509, %s511
    %p515 = scmp.eq.s32.totalorder %s29, 0
    %p516 = por %p514, %p515
    %p517 = scmp.ne.s32.totalorder %s509, %s511
    %p518 = scmp.eq.s32.totalorder %s34, 1
    %p519 = por %p517, %p518
    %p520 = scmp.ne.s32.totalorder %s511, %s512
    %p521 = scmp.eq.s32.totalorder %s34, 0
    %p522 = por %p520, %p521
    %p523 = scmp.ne.s32.totalorder %s511, %s512
    %p524 = scmp.eq.s32.totalorder %s35, 1
    %p525 = por %p523, %p524
    %p527 = scmp.ne.s32.totalorder %s512, %s526
    %p528 = scmp.eq.s32.totalorder %s35, 0
    %p529 = por %p527, %p528
    %s530 = ssub.s32 %s29, %s36
    %p531 = scmp.eq.s32.totalorder %s530, 0
    %s533 = sadd.s32 %s532, 1
    %s534 = scalar_select %p531, %s532, %s533
    %p537 = pneg %p531
    %p538 = scmp.eq.s32.totalorder %s29, 1
    %p539 = por %p537, %p538
    %p540 = scmp.ne.s32.totalorder %s532, %s535
    %p541 = scmp.eq.s32.totalorder %s29, 0
    %p542 = por %p540, %p541
    %p543 = scmp.ne.s32.totalorder %s532, %s535
    %p544 = scmp.eq.s32.totalorder %s34, 1
    %p545 = por %p543, %p544
    %p546 = scmp.ne.s32.totalorder %s535, %s536
    %p547 = scmp.eq.s32.totalorder %s34, 0
    %p548 = por %p546, %p547
    %p549 = scmp.ne.s32.totalorder %s535, %s536
    %p550 = scmp.eq.s32.totalorder %s35, 1
    %p551 = por %p549, %p550
    %p553 = scmp.ne.s32.totalorder %s536, %s552
    %p554 = scmp.eq.s32.totalorder %s35, 0
    %p555 = por %p553, %p554
    %p556 = scmp.le.s32.totalorder 1, %s29
    %p557 = scmp.lt.s32.totalorder %s29, 3
    %p558 = pnand %p556, %p557
    %p559 = pneg %p558
    // Predicated region
    $region9: #{clip_caption_forward.1} parent=5 // pred_check
      _
    $region10: #{clip_caption_forward.1} parent=5 // pred_check_branch
      %561 = sbr.rel (%p558) target = $region12
    $region11: #{clip_caption_forward.1} parent=5 // pred_region
      %s562 = ssub.s32 %s29, 1
      // Predicated region
      $region13: #{clip_caption_forward.1} parent=11 // pred_check
        %p563 = pneg %p102
      $region14: #{clip_caption_forward.1} parent=11 // pred_check_branch
        %565 = sbr.rel (%p563) target = $region16
      $region15: #{clip_caption_forward.1} parent=11 // pred_region
        _
      $region16: #{clip_caption_forward.1} parent=11 // pred_fallthru
        _
      // Predicated region
      $region17: #{clip_caption_forward.1} parent=11 // pred_check
        %p566 = pneg %p123
      $region18: #{clip_caption_forward.1} parent=11 // pred_check_branch
        %568 = sbr.rel (%p566) target = $region20
      $region19: #{clip_caption_forward.1} parent=11 // pred_region
        _
      $region20: #{clip_caption_forward.1} parent=11 // pred_fallthru
        _
      // Predicated region
      $region21: #{clip_caption_forward.1} parent=11 // pred_check
        %p569 = pneg %p144
      $region22: #{clip_caption_forward.1} parent=11 // pred_check_branch
        %571 = sbr.rel (%p569) target = $region24
      $region23: #{clip_caption_forward.1} parent=11 // pred_region
        _
      $region24: #{clip_caption_forward.1} parent=11 // pred_fallthru
        _
      // Predicated region
      $region25: #{clip_caption_forward.1} parent=11 // pred_check
        %p572 = pneg %p165
      $region26: #{clip_caption_forward.1} parent=11 // pred_check_branch
        %574 = sbr.rel (%p572) target = $region28
      $region27: #{clip_caption_forward.1} parent=11 // pred_region
        _
      $region28: #{clip_caption_forward.1} parent=11 // pred_fallthru
        _
      // Predicated region
      $region29: #{clip_caption_forward.1} parent=11 // pred_check
        %p575 = pneg %p186
      $region30: #{clip_caption_forward.1} parent=11 // pred_check_branch
        %577 = sbr.rel (%p575) target = $region32
      $region31: #{clip_caption_forward.1} parent=11 // pred_region
        _
      $region32: #{clip_caption_forward.1} parent=11 // pred_fallthru
        _
      // Predicated region
      $region33: #{clip_caption_forward.1} parent=11 // pred_check
        %p578 = pneg %p207
      $region34: #{clip_caption_forward.1} parent=11 // pred_check_branch
        %580 = sbr.rel (%p578) target = $region36
      $region35: #{clip_caption_forward.1} parent=11 // pred_region
        _
      $region36: #{clip_caption_forward.1} parent=11 // pred_fallthru
        _
      // Predicated region
      $region37: #{clip_caption_forward.1} parent=11 // pred_check
        %p581 = pneg %p228
      $region38: #{clip_caption_forward.1} parent=11 // pred_check_branch
        %583 = sbr.rel (%p581) target = $region40
      $region39: #{clip_caption_forward.1} parent=11 // pred_region
        _
      $region40: #{clip_caption_forward.1} parent=11 // pred_fallthru
        _
      // Predicated region
      $region41: #{clip_caption_forward.1} parent=11 // pred_check
        %p584 = pneg %p249
      $region42: #{clip_caption_forward.1} parent=11 // pred_check_branch
        %586 = sbr.rel (%p584) target = $region44
      $region43: #{clip_caption_forward.1} parent=11 // pred_region
        _
      $region44: #{clip_caption_forward.1} parent=11 // pred_fallthru
        _
      // Predicated region
      $region45: #{clip_caption_forward.1} parent=11 // pred_check
        %p587 = pneg %p270
      $region46: #{clip_caption_forward.1} parent=11 // pred_check_branch
        %589 = sbr.rel (%p587) target = $region48
      $region47: #{clip_caption_forward.1} parent=11 // pred_region
        _
      $region48: #{clip_caption_forward.1} parent=11 // pred_fallthru
        _
      // Predicated region
      $region49: #{clip_caption_forward.1} parent=11 // pred_check
        %p590 = pneg %p291
      $region50: #{clip_caption_forward.1} parent=11 // pred_check_branch
        %592 = sbr.rel (%p590) target = $region52
      $region51: #{clip_caption_forward.1} parent=11 // pred_region
        _
      $region52: #{clip_caption_forward.1} parent=11 // pred_fallthru
        _
      // Predicated region
      $region53: #{clip_caption_forward.1} parent=11 // pred_check
        %p593 = pneg %p312
      $region54: #{clip_caption_forward.1} parent=11 // pred_check_branch
        %595 = sbr.rel (%p593) target = $region56
      $region55: #{clip_caption_forward.1} parent=11 // pred_region
        _
      $region56: #{clip_caption_forward.1} parent=11 // pred_fallthru
        _
      // Predicated region
      $region57: #{clip_caption_forward.1} parent=11 // pred_check
        %p596 = pneg %p333
      $region58: #{clip_caption_forward.1} parent=11 // pred_check_branch
        %598 = sbr.rel (%p596) target = $region60
      $region59: #{clip_caption_forward.1} parent=11 // pred_region
        _
      $region60: #{clip_caption_forward.1} parent=11 // pred_fallthru
        _
      // Predicated region
      $region61: #{clip_caption_forward.1} parent=11 // pred_check
        %p599 = pneg %p354
      $region62: #{clip_caption_forward.1} parent=11 // pred_check_branch
        %601 = sbr.rel (%p599) target = $region64
      $region63: #{clip_caption_forward.1} parent=11 // pred_region
        _
      $region64: #{clip_caption_forward.1} parent=11 // pred_fallthru
        _
      // Predicated region
      $region65: #{clip_caption_forward.1} parent=11 // pred_check
        %p602 = pneg %p375
      $region66: #{clip_caption_forward.1} parent=11 // pred_check_branch
        %604 = sbr.rel (%p602) target = $region68
      $region67: #{clip_caption_forward.1} parent=11 // pred_region
        _
      $region68: #{clip_caption_forward.1} parent=11 // pred_fallthru
        _
      // Predicated region
      $region69: #{clip_caption_forward.1} parent=11 // pred_check
        %p605 = pneg %p396
      $region70: #{clip_caption_forward.1} parent=11 // pred_check_branch
        %607 = sbr.rel (%p605) target = $region72
      $region71: #{clip_caption_forward.1} parent=11 // pred_region
        _
      $region72: #{clip_caption_forward.1} parent=11 // pred_fallthru
        _
      // Predicated region
      $region73: #{clip_caption_forward.1} parent=11 // pred_check
        %p608 = pneg %p417
      $region74: #{clip_caption_forward.1} parent=11 // pred_check_branch
        %610 = sbr.rel (%p608) target = $region76
      $region75: #{clip_caption_forward.1} parent=11 // pred_region
        _
      $region76: #{clip_caption_forward.1} parent=11 // pred_fallthru
        _
      // Predicated region
      $region77: #{clip_caption_forward.1} parent=11 // pred_check
        %p611 = pneg %p438
      $region78: #{clip_caption_forward.1} parent=11 // pred_check_branch
        %613 = sbr.rel (%p611) target = $region80
      $region79: #{clip_caption_forward.1} parent=11 // pred_region
        _
      $region80: #{clip_caption_forward.1} parent=11 // pred_fallthru
        _
      // Predicated region
      $region81: #{clip_caption_forward.1} parent=11 // pred_check
        %p614 = pneg %p459
      $region82: #{clip_caption_forward.1} parent=11 // pred_check_branch
        %616 = sbr.rel (%p614) target = $region84
      $region83: #{clip_caption_forward.1} parent=11 // pred_region
        _
      $region84: #{clip_caption_forward.1} parent=11 // pred_fallthru
        _
      // Predicated region
      $region85: #{clip_caption_forward.1} parent=11 // pred_check
        %p617 = pneg %p480
      $region86: #{clip_caption_forward.1} parent=11 // pred_check_branch
        %619 = sbr.rel (%p617) target = $region88
      $region87: #{clip_caption_forward.1} parent=11 // pred_region
        _
      $region88: #{clip_caption_forward.1} parent=11 // pred_fallthru
        _
      // Predicated region
      $region89: #{clip_caption_forward.1} parent=11 // pred_check
        %p620 = pneg %p501
      $region90: #{clip_caption_forward.1} parent=11 // pred_check_branch
        %622 = sbr.rel (%p620) target = $region92
      $region91: #{clip_caption_forward.1} parent=11 // pred_region
        _
      $region92: #{clip_caption_forward.1} parent=11 // pred_fallthru
        _
      // Predicated region
      $region93: #{clip_caption_forward.1} parent=11 // pred_check
        %p623 = pneg %p522
      $region94: #{clip_caption_forward.1} parent=11 // pred_check_branch
        %625 = sbr.rel (%p623) target = $region96
      $region95: #{clip_caption_forward.1} parent=11 // pred_region
        _
      $region96: #{clip_caption_forward.1} parent=11 // pred_fallthru
        _
    $region12: #{clip_caption_forward.1} parent=5 // pred_fallthru
      _
    %p626 = scmp.lt.s32.totalorder %s29, 2
    // Predicated region
    $region97: #{clip_caption_forward.1} parent=5 // pred_check
      %p627 = pneg %p626
    $region98: #{clip_caption_forward.1} parent=5 // pred_check_branch
      %629 = sbr.rel (%p627) target = $region100
    $region99: #{clip_caption_forward.1} parent=5 // pred_region
      // Predicated region
      $region101: #{clip_caption_forward.1} parent=99 // pred_check
        %p630 = pneg %p49
      $region102: #{clip_caption_forward.1} parent=99 // pred_check_branch
        %632 = sbr.rel (%p630) target = $region104
      $region103: #{clip_caption_forward.1} parent=99 // pred_region
        %s633 = smul.u32 2, %s29
        %p634 = scmp.lt.s32.totalorder %s633, 3
        %s635 = scalar_select %p634, %s633, 3
        %s636 = smul.addr %s635, 8
        %s637 = scalar_lea.vmem %s0, %s636
        %s638 = smul.u32 2, %s29
      $region104: #{clip_caption_forward.1} parent=99 // pred_fallthru
        _
      // Predicated region
      $region105: #{clip_caption_forward.1} parent=99 // pred_check
        %p639 = pneg %p75
      $region106: #{clip_caption_forward.1} parent=99 // pred_check_branch
        %641 = sbr.rel (%p639) target = $region108
      $region107: #{clip_caption_forward.1} parent=99 // pred_region
        %p642 = scmp.lt.s32.totalorder %s29, 1
        %s643 = scalar_select %p642, %s29, 1
        %s644 = scalar_lea.vmem %s1, %s643
      $region108: #{clip_caption_forward.1} parent=99 // pred_fallthru
        _
    $region100: #{clip_caption_forward.1} parent=5 // pred_fallthru
      _
    %p645 = scmp.le.s32.totalorder 1, %s29
    %p646 = scmp.lt.s32.totalorder %s29, 3
    %p647 = pnand %p645, %p646
    %p648 = pneg %p647
    // Predicated region
    $region109: #{clip_caption_forward.1} parent=5 // pred_check
      _
    $region110: #{clip_caption_forward.1} parent=5 // pred_check_branch
      %650 = sbr.rel (%p647) target = $region112
    $region111: #{clip_caption_forward.1} parent=5 // pred_region
      %s651 = ssub.s32 %s29, 1
      %s652 = smul.u32 2, %s34
      %p653 = scmp.lt.s32.totalorder %s652, 3
      %s654 = scalar_select %p653, %s652, 3
      %s655 = smul.addr %s654, 8
      %s656 = scalar_lea.vmem %s0, %s655
      %p657 = pneg %p55
      %p658 = pneg %p52
      %p659 = scmp.lt.s32.totalorder %s34, 1
      %s660 = scalar_select %p659, %s34, 1
      %s661 = scalar_lea.vmem %s1, %s660
      %p662 = pneg %p81
      %p663 = pneg %p78
      %p664 = pneg %p102
      %p665 = pneg %p99
      %p666 = pneg %p123
      %p667 = pneg %p120
      %p668 = pneg %p144
      %p669 = pneg %p141
      %p670 = pneg %p165
      %p671 = pneg %p162
      %p672 = pneg %p186
      %p673 = pneg %p183
      %p674 = pneg %p207
      %p675 = pneg %p204
      %p676 = pneg %p228
      %p677 = pneg %p225
      %p678 = pneg %p249
      %p679 = pneg %p246
      %p680 = pneg %p270
      %p681 = pneg %p267
      %p682 = pneg %p291
      %p683 = pneg %p288
      %p684 = pneg %p312
      %p685 = pneg %p309
      %p686 = pneg %p333
      %p687 = pneg %p330
      %p688 = pneg %p354
      %p689 = pneg %p351
      %p690 = pneg %p375
      %p691 = pneg %p372
      %p692 = pneg %p396
      %p693 = pneg %p393
      %p694 = pneg %p417
      %p695 = pneg %p414
      %p696 = pneg %p438
      %p697 = pneg %p435
      %p698 = pneg %p459
      %p699 = pneg %p456
      %p700 = pneg %p480
      %p701 = pneg %p477
      %p702 = pneg %p501
      %p703 = pneg %p498
      %p704 = pneg %p522
      %p705 = pneg %p519
      %p706 = pneg %p548
      %p707 = pneg %p545
      %s708 = smul.u32 2, %s34
      %p709 = scmp.lt.s32.totalorder %s708, 3
      %s710 = scalar_select %p709, %s708, 3
      %s711 = smul.addr %s710, 8
      %s712 = scalar_lea.vmem %s23, %s711
      %s713 = smul.u32 2, %s34
      %p714 = scmp.lt.s32.totalorder %s713, 3
      %s715 = scalar_select %p714, %s713, 3
      %s716 = smul.addr %s715, 8
      %s717 = scalar_lea.vmem %s0, %s716
      %s718 = smul.u32 2, %s34
      %p719 = scmp.lt.s32.totalorder %s34, 1
      %s720 = scalar_select %p719, %s34, 1
      %s721 = scalar_lea.vmem %s1, %s720
      %s722 = smul.u32 2, %s34
      %p723 = scmp.lt.s32.totalorder %s722, 3
      %s724 = scalar_select %p723, %s722, 3
      %s725 = smul.addr %s724, 8
      %s726 = scalar_lea.vmem %s23, %s725
      %s727 = smul.u32 2, %s34
      %v728 = vld [vmem:[%s721] sm:$0x1]
      %v729 = vld [vmem:[%s5] sm:$0xff]
      %v730 = vld [vmem:[%s5 + $0x8] sm:$0xff]
      %v731 = vld [vmem:[%s5 + $0x10] sm:$0xff]
      %v732 = vld [vmem:[%s5 + $0x18] sm:$0xff]
      %v733 = vld [vmem:[%s6] sm:$0x1]
      %vm734 = vcmask 261120
      %v736 = vsel %vm734, %v728, 0
      %738 = vmatprep.subr.mxu0 0.0
      %739 = vmatpush1.msra.mxu0 0.0
      %740 = vmatprep.subr.mxu0 0.0
      %741 = vmatpush1.msra.mxu0 0.0
      %742 = vmatprep.subr.mxu0 0.0
      %743 = vmatpush1.msra.mxu0 0.0
      %744 = vmatprep.subr.mxu0 0.0
      %745 = vmatpush1.msra.mxu0 0.0
      %746 = vmatprep.subr.mxu0 0.0
      %747 = vmatpush1.msra.mxu0 0.0
      %748 = vmatprep.subr.mxu0 0.0
      %749 = vmatpush1.msra.mxu0 0.0
      %750 = vmatprep.subr.mxu0 0.0
      %751 = vmatpush1.msra.mxu0 0.0
      %752 = vmatprep.subr.mxu0 0.0
      %753 = vmatpush1.msra.mxu0 0.0
      %754 = vmatprep.subr.mxu0 0.0
      %755 = vmatpush1.msra.mxu0 0.0
      %756 = vmatprep.subr.mxu0 0.0
      %757 = vmatpush1.msra.mxu0 0.0
      %758 = vmatprep.subr.mxu0 0.0
      %759 = vmatpush1.msra.mxu0 0.0
      %760 = vmatprep.subr.mxu0 0.0
      %761 = vmatpush1.msra.mxu0 0.0
      %762 = vmatprep.subr.mxu0 0.0
      %763 = vmatpush1.msra.mxu0 %v732
      %764 = vmatprep.subr.mxu0 0.0
      %765 = vmatpush1.msra.mxu0 %v731
      %766 = vmatprep.subr.mxu0 0.0
      %767 = vmatpush1.msra.mxu0 %v730
      %768 = vmatprep.subr.mxu0 0.0
      %769 = vmatpush1.msra.mxu0 %v729
      %770 = vmatprep.subr.mxu0 0.0
      %771 = vmatpush2.msra.mxu0 0.0
      %772 = vmatprep.subr.mxu0 0.0
      %773 = vmatpush2.msra.mxu0 0.0
      %774 = vmatprep.subr.mxu0 0.0
      %775 = vmatpush2.msra.mxu0 0.0
      %776 = vmatprep.subr.mxu0 0.0
      %777 = vmatpush2.msra.mxu0 0.0
      %778 = vmatprep.subr.mxu0 0.0
      %779 = vmatpush2.msra.mxu0 0.0
      %780 = vmatprep.subr.mxu0 0.0
      %781 = vmatpush2.msra.mxu0 0.0
      %782 = vmatprep.subr.mxu0 0.0
      %783 = vmatpush2.msra.mxu0 0.0
      %784 = vmatprep.subr.mxu0 0.0
      %785 = vmatpush2.msra.mxu0 0.0
      %786 = vmatprep.subr.mxu0 0.0
      %787 = vmatpush2.msra.mxu0 0.0
      %788 = vmatprep.subr.mxu0 0.0
      %789 = vmatpush2.msra.mxu0 0.0
      %790 = vmatprep.subr.mxu0 0.0
      %791 = vmatpush2.msra.mxu0 0.0
      %792 = vmatprep.subr.mxu0 0.0
      %793 = vmatpush2.msra.mxu0 0.0
      %794 = vmatprep.subr.mxu0 0.0
      %795 = vmatpush2.msra.mxu0 0.0
      %796 = vmatprep.subr.mxu0 0.0
      %797 = vmatpush2.msra.mxu0 0.0
      %798 = vmatprep.subr.mxu0 0.0
      %799 = vmatpush2.msra.mxu0 0.0
      %800 = vmatprep.subr.mxu0 0.0
      %801 = vmatpush2.msra.mxu0 0.0
      %802 = vmatprep.mubr.f32.mxu0 0.0
      %803 = vmatmul.mubr.f32.gmra.mxu0 %v736
      %v804 = vpop.f32.mrf.mxu0
      %v805 = vadd.f32 %v733, %v804
      %v806 = vpop.f32.mrf.mxu0
      %807 = vdwg.mxu0
      %v808 = vtanh.pop %v805
      %v809 = vld [vmem:[%s7] sm:$0xff]
      %v810 = vld [vmem:[%s7 + $0x8] sm:$0xff]
      %v811 = vld [vmem:[%s7 + $0x10] sm:$0xff]
      %v812 = vld [vmem:[%s7 + $0x18] sm:$0xff]
      %v813 = vld [vmem:[%s7 + $0x20] sm:$0xff]
      %v814 = vld [vmem:[%s7 + $0x28] sm:$0xff]
      %v815 = vld [vmem:[%s7 + $0x30] sm:$0xff]
      %v816 = vld [vmem:[%s7 + $0x38] sm:$0xff]
      %vm817 = vcmask 523264
      %v819 = vsel %vm817, %v808, 0
      %821 = vmatprep.subr.mxu0 0.0
      %822 = vmatpush1.msra.mxu0 0.0
      %823 = vmatprep.subr.mxu0 0.0
      %824 = vmatpush1.msra.mxu0 0.0
      %825 = vmatprep.subr.mxu0 0.0
      %826 = vmatpush1.msra.mxu0 0.0
      %827 = vmatprep.subr.mxu0 0.0
      %828 = vmatpush1.msra.mxu0 0.0
      %829 = vmatprep.subr.mxu0 0.0
      %830 = vmatpush1.msra.mxu0 0.0
      %831 = vmatprep.subr.mxu0 0.0
      %832 = vmatpush1.msra.mxu0 0.0
      %833 = vmatprep.subr.mxu0 0.0
      %834 = vmatpush1.msra.mxu0 0.0
      %835 = vmatprep.subr.mxu0 0.0
      %836 = vmatpush1.msra.mxu0 0.0
      %837 = vmatprep.subr.mxu0 0.0
      %838 = vmatpush1.msra.mxu0 %v816
      %839 = vmatprep.subr.mxu0 0.0
      %840 = vmatpush1.msra.mxu0 %v815
      %841 = vmatprep.subr.mxu0 0.0
      %842 = vmatpush1.msra.mxu0 %v814
      %843 = vmatprep.subr.mxu0 0.0
      %844 = vmatpush1.msra.mxu0 %v813
      %845 = vmatprep.subr.mxu0 0.0
      %846 = vmatpush1.msra.mxu0 %v812
      %847 = vmatprep.subr.mxu0 0.0
      %848 = vmatpush1.msra.mxu0 %v811
      %849 = vmatprep.subr.mxu0 0.0
      %850 = vmatpush1.msra.mxu0 %v810
      %851 = vmatprep.subr.mxu0 0.0
      %852 = vmatpush1.msra.mxu0 %v809
      %853 = vmatprep.subr.mxu0 0.0
      %854 = vmatpush2.msra.mxu0 0.0
      %855 = vmatprep.subr.mxu0 0.0
      %856 = vmatpush2.msra.mxu0 0.0
      %857 = vmatprep.subr.mxu0 0.0
      %858 = vmatpush2.msra.mxu0 0.0
      %859 = vmatprep.subr.mxu0 0.0
      %860 = vmatpush2.msra.mxu0 0.0
      %861 = vmatprep.subr.mxu0 0.0
      %862 = vmatpush2.msra.mxu0 0.0
      %863 = vmatprep.subr.mxu0 0.0
      %864 = vmatpush2.msra.mxu0 0.0
      %865 = vmatprep.subr.mxu0 0.0
      %866 = vmatpush2.msra.mxu0 0.0
      %867 = vmatprep.subr.mxu0 0.0
      %868 = vmatpush2.msra.mxu0 0.0
      %869 = vmatprep.subr.mxu0 0.0
      %870 = vmatpush2.msra.mxu0 0.0
      %871 = vmatprep.subr.mxu0 0.0
      %872 = vmatpush2.msra.mxu0 0.0
      %873 = vmatprep.subr.mxu0 0.0
      %874 = vmatpush2.msra.mxu0 0.0
      %875 = vmatprep.subr.mxu0 0.0
      %876 = vmatpush2.msra.mxu0 0.0
      %877 = vmatprep.subr.mxu0 0.0
      %878 = vmatpush2.msra.mxu0 0.0
      %879 = vmatprep.subr.mxu0 0.0
      %880 = vmatpush2.msra.mxu0 0.0
      %881 = vmatprep.subr.mxu0 0.0
      %882 = vmatpush2.msra.mxu0 0.0
      %883 = vmatprep.subr.mxu0 0.0
      %884 = vmatpush2.msra.mxu0 0.0
      %885 = vmatprep.mubr.f32.mxu0 0.0
      %886 = vmatmul.mubr.f32.gmra.mxu0 %v819
      %v887 = vpop.f32.mrf.mxu0
      %v888 = vadd.f32 0.0, %v887
      %v889 = vpop.f32.mrf.mxu0
      %890 = vdwg.mxu0
      %s891 = scalar_lea.vmem %s7, 64
      %v892 = vld [vmem:[%s891] sm:$0xff]
      %v893 = vld [vmem:[%s891 + $0x8] sm:$0xff]
      %v894 = vld [vmem:[%s891 + $0x10] sm:$0xff]
      %v895 = vld [vmem:[%s891 + $0x18] sm:$0xff]
      %v896 = vld [vmem:[%s891 + $0x20] sm:$0xff]
      %v897 = vld [vmem:[%s891 + $0x28] sm:$0xff]
      %v898 = vld [vmem:[%s891 + $0x30] sm:$0xff]
      %v899 = vld [vmem:[%s891 + $0x38] sm:$0xff]
      %900 = vmatprep.subr.mxu0 0.0
      %901 = vmatpush1.msra.mxu0 0.0
      %902 = vmatprep.subr.mxu0 0.0
      %903 = vmatpush1.msra.mxu0 0.0
      %904 = vmatprep.subr.mxu0 0.0
      %905 = vmatpush1.msra.mxu0 0.0
      %906 = vmatprep.subr.mxu0 0.0
      %907 = vmatpush1.msra.mxu0 0.0
      %908 = vmatprep.subr.mxu0 0.0
      %909 = vmatpush1.msra.mxu0 0.0
      %910 = vmatprep.subr.mxu0 0.0
      %911 = vmatpush1.msra.mxu0 0.0
      %912 = vmatprep.subr.mxu0 0.0
      %913 = vmatpush1.msra.mxu0 0.0
      %914 = vmatprep.subr.mxu0 0.0
      %915 = vmatpush1.msra.mxu0 0.0
      %916 = vmatprep.subr.mxu0 0.0
      %917 = vmatpush1.msra.mxu0 %v899
      %918 = vmatprep.subr.mxu0 0.0
      %919 = vmatpush1.msra.mxu0 %v898
      %920 = vmatprep.subr.mxu0 0.0
      %921 = vmatpush1.msra.mxu0 %v897
      %922 = vmatprep.subr.mxu0 0.0
      %923 = vmatpush1.msra.mxu0 %v896
      %924 = vmatprep.subr.mxu0 0.0
      %925 = vmatpush1.msra.mxu0 %v895
      %926 = vmatprep.subr.mxu0 0.0
      %927 = vmatpush1.msra.mxu0 %v894
      %928 = vmatprep.subr.mxu0 0.0
      %929 = vmatpush1.msra.mxu0 %v893
      %930 = vmatprep.subr.mxu0 0.0
      %931 = vmatpush1.msra.mxu0 %v892
      %932 = vmatprep.subr.mxu0 0.0
      %933 = vmatpush2.msra.mxu0 0.0
      %934 = vmatprep.subr.mxu0 0.0
      %935 = vmatpush2.msra.mxu0 0.0
      %936 = vmatprep.subr.mxu0 0.0
      %937 = vmatpush2.msra.mxu0 0.0
      %938 = vmatprep.subr.mxu0 0.0
      %939 = vmatpush2.msra.mxu0 0.0
      %940 = vmatprep.subr.mxu0 0.0
      %941 = vmatpush2.msra.mxu0 0.0
      %942 = vmatprep.subr.mxu0 0.0
      %943 = vmatpush2.msra.mxu0 0.0
      %944 = vmatprep.subr.mxu0 0.0
      %945 = vmatpush2.msra.mxu0 0.0
      %946 = vmatprep.subr.mxu0 0.0
      %947 = vmatpush2.msra.mxu0 0.0
      %948 = vmatprep.subr.mxu0 0.0
      %949 = vmatpush2.msra.mxu0 0.0
      %950 = vmatprep.subr.mxu0 0.0
      %951 = vmatpush2.msra.mxu0 0.0
      %952 = vmatprep.subr.mxu0 0.0
      %953 = vmatpush2.msra.mxu0 0.0
      %954 = vmatprep.subr.mxu0 0.0
      %955 = vmatpush2.msra.mxu0 0.0
      %956 = vmatprep.subr.mxu0 0.0
      %957 = vmatpush2.msra.mxu0 0.0
      %958 = vmatprep.subr.mxu0 0.0
      %959 = vmatpush2.msra.mxu0 0.0
      %960 = vmatprep.subr.mxu0 0.0
      %961 = vmatpush2.msra.mxu0 0.0
      %962 = vmatprep.subr.mxu0 0.0
      %963 = vmatpush2.msra.mxu0 0.0
      %964 = vmatprep.mubr.f32.mxu0 0.0
      %965 = vmatmul.mubr.f32.gmra.mxu0 %v819
      %v966 = vpop.f32.mrf.mxu0
      %v967 = vadd.f32 0.0, %v966
      %v968 = vpop.f32.mrf.mxu0
      %969 = vdwg.mxu0
      %s970 = scalar_lea.vmem %s7, 128
      %v971 = vld [vmem:[%s970] sm:$0xff]
      %v972 = vld [vmem:[%s970 + $0x8] sm:$0xff]
      %v973 = vld [vmem:[%s970 + $0x10] sm:$0xff]
      %v974 = vld [vmem:[%s970 + $0x18] sm:$0xff]
      %v975 = vld [vmem:[%s970 + $0x20] sm:$0xff]
      %v976 = vld [vmem:[%s970 + $0x28] sm:$0xff]
      %v977 = vld [vmem:[%s970 + $0x30] sm:$0xff]
      %v978 = vld [vmem:[%s970 + $0x38] sm:$0xff]
      %979 = vmatprep.subr.mxu0 0.0
      %980 = vmatpush1.msra.mxu0 0.0
      %981 = vmatprep.subr.mxu0 0.0
      %982 = vmatpush1.msra.mxu0 0.0
      %983 = vmatprep.subr.mxu0 0.0
      %984 = vmatpush1.msra.mxu0 0.0
      %985 = vmatprep.subr.mxu0 0.0
      %986 = vmatpush1.msra.mxu0 0.0
      %987 = vmatprep.subr.mxu0 0.0
      %988 = vmatpush1.msra.mxu0 0.0
      %989 = vmatprep.subr.mxu0 0.0
      %990 = vmatpush1.msra.mxu0 0.0
      %991 = vmatprep.subr.mxu0 0.0
      %992 = vmatpush1.msra.mxu0 0.0
      %993 = vmatprep.subr.mxu0 0.0
      %994 = vmatpush1.msra.mxu0 0.0
      %995 = vmatprep.subr.mxu0 0.0
      %996 = vmatpush1.msra.mxu0 %v978
      %997 = vmatprep.subr.mxu0 0.0
      %998 = vmatpush1.msra.mxu0 %v977
      %999 = vmatprep.subr.mxu0 0.0
      %1000 = vmatpush1.msra.mxu0 %v976
      %1001 = vmatprep.subr.mxu0 0.0
      %1002 = vmatpush1.msra.mxu0 %v975
      %1003 = vmatprep.subr.mxu0 0.0
      %1004 = vmatpush1.msra.mxu0 %v974
      %1005 = vmatprep.subr.mxu0 0.0
      %1006 = vmatpush1.msra.mxu0 %v973
      %1007 = vmatprep.subr.mxu0 0.0
      %1008 = vmatpush1.msra.mxu0 %v972
      %1009 = vmatprep.subr.mxu0 0.0
      %1010 = vmatpush1.msra.mxu0 %v971
      %1011 = vmatprep.subr.mxu0 0.0
      %1012 = vmatpush2.msra.mxu0 0.0
      %1013 = vmatprep.subr.mxu0 0.0
      %1014 = vmatpush2.msra.mxu0 0.0
      %1015 = vmatprep.subr.mxu0 0.0
      %1016 = vmatpush2.msra.mxu0 0.0
      %1017 = vmatprep.subr.mxu0 0.0
      %1018 = vmatpush2.msra.mxu0 0.0
      %1019 = vmatprep.subr.mxu0 0.0
      %1020 = vmatpush2.msra.mxu0 0.0
      %1021 = vmatprep.subr.mxu0 0.0
      %1022 = vmatpush2.msra.mxu0 0.0
      %1023 = vmatprep.subr.mxu0 0.0
      %1024 = vmatpush2.msra.mxu0 0.0
      %1025 = vmatprep.subr.mxu0 0.0
      %1026 = vmatpush2.msra.mxu0 0.0
      %1027 = vmatprep.subr.mxu0 0.0
      %1028 = vmatpush2.msra.mxu0 0.0
      %1029 = vmatprep.subr.mxu0 0.0
      %1030 = vmatpush2.msra.mxu0 0.0
      %1031 = vmatprep.subr.mxu0 0.0
      %1032 = vmatpush2.msra.mxu0 0.0
      %1033 = vmatprep.subr.mxu0 0.0
      %1034 = vmatpush2.msra.mxu0 0.0
      %1035 = vmatprep.subr.mxu0 0.0
      %1036 = vmatpush2.msra.mxu0 0.0
      %1037 = vmatprep.subr.mxu0 0.0
      %1038 = vmatpush2.msra.mxu0 0.0
      %1039 = vmatprep.subr.mxu0 0.0
      %1040 = vmatpush2.msra.mxu0 0.0
      %1041 = vmatprep.subr.mxu0 0.0
      %1042 = vmatpush2.msra.mxu0 0.0
      %1043 = vmatprep.mubr.f32.mxu0 0.0
      %1044 = vmatmul.mubr.f32.gmra.mxu0 %v819
      %v1045 = vpop.f32.mrf.mxu0
      %v1046 = vadd.f32 0.0, %v1045
      %v1047 = vpop.f32.mrf.mxu0
      %1048 = vdwg.mxu0
      %s1049 = scalar_lea.vmem %s7, 192
      %v1050 = vld [vmem:[%s1049] sm:$0xff]
      %v1051 = vld [vmem:[%s1049 + $0x8] sm:$0xff]
      %v1052 = vld [vmem:[%s1049 + $0x10] sm:$0xff]
      %v1053 = vld [vmem:[%s1049 + $0x18] sm:$0xff]
      %v1054 = vld [vmem:[%s1049 + $0x20] sm:$0xff]
      %v1055 = vld [vmem:[%s1049 + $0x28] sm:$0xff]
      %v1056 = vld [vmem:[%s1049 + $0x30] sm:$0xff]
      %v1057 = vld [vmem:[%s1049 + $0x38] sm:$0xff]
      %1058 = vmatprep.subr.mxu0 0.0
      %1059 = vmatpush1.msra.mxu0 0.0
      %1060 = vmatprep.subr.mxu0 0.0
      %1061 = vmatpush1.msra.mxu0 0.0
      %1062 = vmatprep.subr.mxu0 0.0
      %1063 = vmatpush1.msra.mxu0 0.0
      %1064 = vmatprep.subr.mxu0 0.0
      %1065 = vmatpush1.msra.mxu0 0.0
      %1066 = vmatprep.subr.mxu0 0.0
      %1067 = vmatpush1.msra.mxu0 0.0
      %1068 = vmatprep.subr.mxu0 0.0
      %1069 = vmatpush1.msra.mxu0 0.0
      %1070 = vmatprep.subr.mxu0 0.0
      %1071 = vmatpush1.msra.mxu0 0.0
      %1072 = vmatprep.subr.mxu0 0.0
      %1073 = vmatpush1.msra.mxu0 0.0
      %1074 = vmatprep.subr.mxu0 0.0
      %1075 = vmatpush1.msra.mxu0 %v1057
      %1076 = vmatprep.subr.mxu0 0.0
      %1077 = vmatpush1.msra.mxu0 %v1056
      %1078 = vmatprep.subr.mxu0 0.0
      %1079 = vmatpush1.msra.mxu0 %v1055
      %1080 = vmatprep.subr.mxu0 0.0
      %1081 = vmatpush1.msra.mxu0 %v1054
      %1082 = vmatprep.subr.mxu0 0.0
      %1083 = vmatpush1.msra.mxu0 %v1053
      %1084 = vmatprep.subr.mxu0 0.0
      %1085 = vmatpush1.msra.mxu0 %v1052
      %1086 = vmatprep.subr.mxu0 0.0
      %1087 = vmatpush1.msra.mxu0 %v1051
      %1088 = vmatprep.subr.mxu0 0.0
      %1089 = vmatpush1.msra.mxu0 %v1050
      %1090 = vmatprep.subr.mxu0 0.0
      %1091 = vmatpush2.msra.mxu0 0.0
      %1092 = vmatprep.subr.mxu0 0.0
      %1093 = vmatpush2.msra.mxu0 0.0
      %1094 = vmatprep.subr.mxu0 0.0
      %1095 = vmatpush2.msra.mxu0 0.0
      %1096 = vmatprep.subr.mxu0 0.0
      %1097 = vmatpush2.msra.mxu0 0.0
      %1098 = vmatprep.subr.mxu0 0.0
      %1099 = vmatpush2.msra.mxu0 0.0
      %1100 = vmatprep.subr.mxu0 0.0
      %1101 = vmatpush2.msra.mxu0 0.0
      %1102 = vmatprep.subr.mxu0 0.0
      %1103 = vmatpush2.msra.mxu0 0.0
      %1104 = vmatprep.subr.mxu0 0.0
      %1105 = vmatpush2.msra.mxu0 0.0
      %1106 = vmatprep.subr.mxu0 0.0
      %1107 = vmatpush2.msra.mxu0 0.0
      %1108 = vmatprep.subr.mxu0 0.0
      %1109 = vmatpush2.msra.mxu0 0.0
      %1110 = vmatprep.subr.mxu0 0.0
      %1111 = vmatpush2.msra.mxu0 0.0
      %1112 = vmatprep.subr.mxu0 0.0
      %1113 = vmatpush2.msra.mxu0 0.0
      %1114 = vmatprep.subr.mxu0 0.0
      %1115 = vmatpush2.msra.mxu0 0.0
      %1116 = vmatprep.subr.mxu0 0.0
      %1117 = vmatpush2.msra.mxu0 0.0
      %1118 = vmatprep.subr.mxu0 0.0
      %1119 = vmatpush2.msra.mxu0 0.0
      %1120 = vmatprep.subr.mxu0 0.0
      %1121 = vmatpush2.msra.mxu0 0.0
      %1122 = vmatprep.mubr.f32.mxu0 0.0
      %1123 = vmatmul.mubr.f32.gmra.mxu0 %v819
      %v1124 = vpop.f32.mrf.mxu0
      %v1125 = vadd.f32 0.0, %v1124
      %v1126 = vpop.f32.mrf.mxu0
      %1127 = vdwg.mxu0
      %v1129 = vrot.slane %v967, 7
      %v1132 = vrot.slane %v1046, 6
      %v1135 = vrot.slane %v1125, 5
      %vm1137 = vcmask 1040384
      %v1138 = vsel %vm1137, %v888, %v1129
      %vm1139 = vcmask 1041408
      %v1140 = vsel %vm1139, %v1138, %v1132
      %vm1141 = vcmask 1042432
      %v1142 = vsel %vm1141, %v1140, %v1135
      %v1143 = vld [vmem:[%s8] sm:$0xf]
      %v1144 = vadd.f32 %v1142, %v1143
      %vm1145 = vcmask 1043456
      %v1146 = vsel %vm1145, %v1144, 0.0
      %v1147 = vlaneseq
      %v1148 = vand.u32 %v1147, 127
      %v1149 = vld [vmem:[%s717] sm:$0xff]
      %v1150 = vld [vmem:[%s717 + $0x8] sm:$0xff]
      %1151 = vset.pattern.permute.xlu0 0
      %1152 = vperm.xlu0 %1151, %v1149
      %v1153 = vpop.permute.xlu0 %1152
      %1154 = vset.pattern.permute.xlu0 0
      %1155 = vperm.xlu0 %1154, %v1150
      %v1156 = vpop.permute.xlu0 %1155
      %vm1157 = vcmp.eq.s32.totalorder %v1148, %v1153
      %vm1158 = vcmp.eq.s32.totalorder %v1148, %v1156
      %v1159 = vsel %vm1157, 1, 0
      %v1160 = vsel %vm1158, 1, 0
      %v1161 = vcvt.s32.f32 %v1159
      %v1162 = vcvt.s32.f32 %v1160
      %v1163 = vld [vmem:[%s2] sm:$0xff]
      %v1164 = vld [vmem:[%s2 + $0x8] sm:$0xff]
      %v1165 = vld [vmem:[%s2 + $0x10] sm:$0xff]
      %v1166 = vld [vmem:[%s2 + $0x18] sm:$0xff]
      %v1167 = vld [vmem:[%s2 + $0x20] sm:$0xff]
      %v1168 = vld [vmem:[%s2 + $0x28] sm:$0xff]
      %v1169 = vld [vmem:[%s2 + $0x30] sm:$0xff]
      %v1170 = vld [vmem:[%s2 + $0x38] sm:$0xff]
      %v1171 = vld [vmem:[%s2 + $0x40] sm:$0xff]
      %v1172 = vld [vmem:[%s2 + $0x48] sm:$0xff]
      %v1173 = vld [vmem:[%s2 + $0x50] sm:$0xff]
      %v1174 = vld [vmem:[%s2 + $0x58] sm:$0xff]
      %v1175 = vld [vmem:[%s2 + $0x60] sm:$0xff]
      %v1176 = vld [vmem:[%s2 + $0x68] sm:$0xff]
      %v1177 = vld [vmem:[%s2 + $0x70] sm:$0xff]
      %v1178 = vld [vmem:[%s2 + $0x78] sm:$0xff]
      %1179 = vmatprep.subr.mxu0 0.0
      %1180 = vmatpush1.msra.mxu0 %v1178
      %1181 = vmatprep.subr.mxu0 0.0
      %1182 = vmatpush1.msra.mxu0 %v1177
      %1183 = vmatprep.subr.mxu0 0.0
      %1184 = vmatpush1.msra.mxu0 %v1176
      %1185 = vmatprep.subr.mxu0 0.0
      %1186 = vmatpush1.msra.mxu0 %v1175
      %1187 = vmatprep.subr.mxu0 0.0
      %1188 = vmatpush1.msra.mxu0 %v1174
      %1189 = vmatprep.subr.mxu0 0.0
      %1190 = vmatpush1.msra.mxu0 %v1173
      %1191 = vmatprep.subr.mxu0 0.0
      %1192 = vmatpush1.msra.mxu0 %v1172
      %1193 = vmatprep.subr.mxu0 0.0
      %1194 = vmatpush1.msra.mxu0 %v1171
      %1195 = vmatprep.subr.mxu0 0.0
      %1196 = vmatpush1.msra.mxu0 %v1170
      %1197 = vmatprep.subr.mxu0 0.0
      %1198 = vmatpush1.msra.mxu0 %v1169
      %1199 = vmatprep.subr.mxu0 0.0
      %1200 = vmatpush1.msra.mxu0 %v1168
      %1201 = vmatprep.subr.mxu0 0.0
      %1202 = vmatpush1.msra.mxu0 %v1167
      %1203 = vmatprep.subr.mxu0 0.0
      %1204 = vmatpush1.msra.mxu0 %v1166
      %1205 = vmatprep.subr.mxu0 0.0
      %1206 = vmatpush1.msra.mxu0 %v1165
      %1207 = vmatprep.subr.mxu0 0.0
      %1208 = vmatpush1.msra.mxu0 %v1164
      %1209 = vmatprep.subr.mxu0 0.0
      %1210 = vmatpush1.msra.mxu0 %v1163
      %1211 = vmatprep.subr.mxu0 0.0
      %1212 = vmatpush2.msra.mxu0 0.0
      %1213 = vmatprep.subr.mxu0 0.0
      %1214 = vmatpush2.msra.mxu0 0.0
      %1215 = vmatprep.subr.mxu0 0.0
      %1216 = vmatpush2.msra.mxu0 0.0
      %1217 = vmatprep.subr.mxu0 0.0
      %1218 = vmatpush2.msra.mxu0 0.0
      %1219 = vmatprep.subr.mxu0 0.0
      %1220 = vmatpush2.msra.mxu0 0.0
      %1221 = vmatprep.subr.mxu0 0.0
      %1222 = vmatpush2.msra.mxu0 0.0
      %1223 = vmatprep.subr.mxu0 0.0
      %1224 = vmatpush2.msra.mxu0 0.0
      %1225 = vmatprep.subr.mxu0 0.0
      %1226 = vmatpush2.msra.mxu0 0.0
      %1227 = vmatprep.subr.mxu0 0.0
      %1228 = vmatpush2.msra.mxu0 0.0
      %1229 = vmatprep.subr.mxu0 0.0
      %1230 = vmatpush2.msra.mxu0 0.0
      %1231 = vmatprep.subr.mxu0 0.0
      %1232 = vmatpush2.msra.mxu0 0.0
      %1233 = vmatprep.subr.mxu0 0.0
      %1234 = vmatpush2.msra.mxu0 0.0
      %1235 = vmatprep.subr.mxu0 0.0
      %1236 = vmatpush2.msra.mxu0 0.0
      %1237 = vmatprep.subr.mxu0 0.0
      %1238 = vmatpush2.msra.mxu0 0.0
      %1239 = vmatprep.subr.mxu0 0.0
      %1240 = vmatpush2.msra.mxu0 0.0
      %1241 = vmatprep.subr.mxu0 0.0
      %1242 = vmatpush2.msra.mxu0 0.0
      %1243 = vmatprep.mubr.f32.mxu0 0.0
      %1244 = vmatmul.mubr.f32.gmra.mxu0 %v1161
      %v1245 = vpop.f32.mrf.mxu0
      %v1246 = vadd.f32 0.0, %v1245
      %v1247 = vpop.f32.mrf.mxu0
      %1248 = vmatprep.mubr.f32.mxu0 0.0
      %1249 = vmatmul.mubr.f32.gmra.mxu0 %v1162
      %v1250 = vpop.f32.mrf.mxu0
      %v1251 = vadd.f32 0.0, %v1250
      %v1252 = vpop.f32.mrf.mxu0
      %1253 = vdwg.mxu0
      %v1254 = vadd.f32 %v1146, %v1246
      %v1255 = vadd.f32 %v1251, 0.0
      %v1256 = vld [vmem:[%s4] sm:$0xff]
      %v1257 = vld [vmem:[%s4 + $0x8] sm:$0xff]
      %v1258 = vadd.f32 %v1254, %v1256
      %v1259 = vadd.f32 %v1255, %v1257
      %v1260 = vlaneseq
      %v1261 = vshrl.u32 %v1260, 7
      %v1262 = vadd.s32 %v1261, 8
      %vm1263 = vcmp.le.s32.totalorder %v1148, %v1261
      %vm1264 = vcmp.le.s32.totalorder %v1148, %v1262
      %v1265 = vld [vmem:[%s9] sm:$0x1]
      %v1266 = vld [vmem:[%s10] sm:$0x1]
      %v1267 = vsel %vm734, %v1258, 0.0
      %1268 = vadd.xlane.f32.xlu0 %v1267
      %v1269 = vpop.xlane.xlu0 %1268
      %v1270 = vsel %vm734, %v1259, 0.0
      %1271 = vadd.xlane.f32.xlu0 %v1270
      %v1272 = vpop.xlane.xlu0 %1271
      %v1273 = vrcp.pop 32.0
      %v1274 = vmul.f32 %v1269, %v1273
      %v1275 = vmul.f32 %v1272, %v1273
      %v1276 = vsub.f32 %v1258, %v1274
      %v1277 = vsub.f32 %v1259, %v1275
      %v1278 = vmul.f32 %v1276, %v1276
      %v1279 = vmul.f32 %v1277, %v1277
      %v1280 = vsel %vm734, %v1278, 0.0
      %1281 = vadd.xlane.f32.xlu0 %v1280
      %v1282 = vpop.xlane.xlu0 %1281
      %v1283 = vsel %vm734, %v1279, 0.0
      %1284 = vadd.xlane.f32.xlu0 %v1283
      %v1285 = vpop.xlane.xlu0 %1284
      %v1286 = vmul.f32 %v1282, %v1273
      %v1287 = vmul.f32 %v1285, %v1273
      %v1288 = vadd.f32 %v1286, 1e-05
      %v1289 = vadd.f32 %v1287, 1e-05
      %v1290 = vrsqrt.pop %v1288
      %v1291 = vrsqrt.pop %v1289
      %v1292 = vmul.f32 %v1276, %v1290
      %v1293 = vmul.f32 %v1277, %v1291
      %v1295 = vlaneseq
      %v1296 = vshrl.u32 %v1295, 7
      %v1297 = vsub.s32 0, %v1296
      %v1298 = vrot.slane %v1265, %v1297
      %v1300 = vmul.f32 %v1292, %v1298
      %v1301 = vmul.f32 %v1293, %v1298
      %v1303 = vlaneseq
      %v1304 = vshrl.u32 %v1303, 7
      %v1305 = vsub.s32 0, %v1304
      %v1306 = vrot.slane %v1266, %v1305
      %v1308 = vadd.f32 %v1300, %v1306
      %v1309 = vadd.f32 %v1301, %v1306
      %v1310 = vld [vmem:[%s11] sm:$0xff]
      %v1311 = vld [vmem:[%s11 + $0x8] sm:$0xff]
      %v1312 = vld [vmem:[%s11 + $0x10] sm:$0xff]
      %v1313 = vld [vmem:[%s11 + $0x18] sm:$0xff]
      %v1314 = vld [vmem:[%s12] sm:$0x1]
      %v1316 = vlaneseq
      %v1317 = vshrl.u32 %v1316, 7
      %v1318 = vsub.s32 0, %v1317
      %v1319 = vrot.slane %v1314, %v1318
      %v1322 = vsel %vm734, %v1308, 0
      %v1325 = vsel %vm734, %v1309, 0
      %1327 = vmatprep.subr.mxu0 0.0
      %1328 = vmatpush1.msra.mxu0 0.0
      %1329 = vmatprep.subr.mxu0 0.0
      %1330 = vmatpush1.msra.mxu0 0.0
      %1331 = vmatprep.subr.mxu0 0.0
      %1332 = vmatpush1.msra.mxu0 0.0
      %1333 = vmatprep.subr.mxu0 0.0
      %1334 = vmatpush1.msra.mxu0 0.0
      %1335 = vmatprep.subr.mxu0 0.0
      %1336 = vmatpush1.msra.mxu0 0.0
      %1337 = vmatprep.subr.mxu0 0.0
      %1338 = vmatpush1.msra.mxu0 0.0
      %1339 = vmatprep.subr.mxu0 0.0
      %1340 = vmatpush1.msra.mxu0 0.0
      %1341 = vmatprep.subr.mxu0 0.0
      %1342 = vmatpush1.msra.mxu0 0.0
      %1343 = vmatprep.subr.mxu0 0.0
      %1344 = vmatpush1.msra.mxu0 0.0
      %1345 = vmatprep.subr.mxu0 0.0
      %1346 = vmatpush1.msra.mxu0 0.0
      %1347 = vmatprep.subr.mxu0 0.0
      %1348 = vmatpush1.msra.mxu0 0.0
      %1349 = vmatprep.subr.mxu0 0.0
      %1350 = vmatpush1.msra.mxu0 0.0
      %1351 = vmatprep.subr.mxu0 0.0
      %1352 = vmatpush1.msra.mxu0 %v1313
      %1353 = vmatprep.subr.mxu0 0.0
      %1354 = vmatpush1.msra.mxu0 %v1312
      %1355 = vmatprep.subr.mxu0 0.0
      %1356 = vmatpush1.msra.mxu0 %v1311
      %1357 = vmatprep.subr.mxu0 0.0
      %1358 = vmatpush1.msra.mxu0 %v1310
      %1359 = vmatprep.subr.mxu0 0.0
      %1360 = vmatpush2.msra.mxu0 0.0
      %1361 = vmatprep.subr.mxu0 0.0
      %1362 = vmatpush2.msra.mxu0 0.0
      %1363 = vmatprep.subr.mxu0 0.0
      %1364 = vmatpush2.msra.mxu0 0.0
      %1365 = vmatprep.subr.mxu0 0.0
      %1366 = vmatpush2.msra.mxu0 0.0
      %1367 = vmatprep.subr.mxu0 0.0
      %1368 = vmatpush2.msra.mxu0 0.0
      %1369 = vmatprep.subr.mxu0 0.0
      %1370 = vmatpush2.msra.mxu0 0.0
      %1371 = vmatprep.subr.mxu0 0.0
      %1372 = vmatpush2.msra.mxu0 0.0
      %1373 = vmatprep.subr.mxu0 0.0
      %1374 = vmatpush2.msra.mxu0 0.0
      %1375 = vmatprep.subr.mxu0 0.0
      %1376 = vmatpush2.msra.mxu0 0.0
      %1377 = vmatprep.subr.mxu0 0.0
      %1378 = vmatpush2.msra.mxu0 0.0
      %1379 = vmatprep.subr.mxu0 0.0
      %1380 = vmatpush2.msra.mxu0 0.0
      %1381 = vmatprep.subr.mxu0 0.0
      %1382 = vmatpush2.msra.mxu0 0.0
      %1383 = vmatprep.subr.mxu0 0.0
      %1384 = vmatpush2.msra.mxu0 0.0
      %1385 = vmatprep.subr.mxu0 0.0
      %1386 = vmatpush2.msra.mxu0 0.0
      %1387 = vmatprep.subr.mxu0 0.0
      %1388 = vmatpush2.msra.mxu0 0.0
      %1389 = vmatprep.subr.mxu0 0.0
      %1390 = vmatpush2.msra.mxu0 0.0
      %1391 = vmatprep.mubr.f32.mxu0 0.0
      %1392 = vmatmul.mubr.f32.gmra.mxu0 %v1322
      %v1393 = vpop.f32.mrf.mxu0
      %v1394 = vadd.f32 %v1319, %v1393
      %v1395 = vpop.f32.mrf.mxu0
      %1396 = vmatprep.mubr.f32.mxu0 0.0
      %1397 = vmatmul.mubr.f32.gmra.mxu0 %v1325
      %v1398 = vpop.f32.mrf.mxu0
      %v1399 = vadd.f32 %v1319, %v1398
      %v1400 = vpop.f32.mrf.mxu0
      %1401 = vdwg.mxu0
      %v1402 = vld [vmem:[%s13] sm:$0xff]
      %v1403 = vld [vmem:[%s13 + $0x8] sm:$0xff]
      %v1404 = vld [vmem:[%s13 + $0x10] sm:$0xff]
      %v1405 = vld [vmem:[%s13 + $0x18] sm:$0xff]
      %1408 = vrot.lane.b32.xlu0 %v1394, 96
      %v1409 = vpop.permute.xlu0 %1408
      %1410 = vrot.lane.b32.xlu0 %v1399, 96
      %v1411 = vpop.permute.xlu0 %1410
      %vm1412 = vcmask 130048
      %v1413 = vsel %vm1412, %v1394, 0
      %v1415 = vsel %vm1412, %v1399, 0
      %v1417 = vsel %vm1412, %v1409, 0
      %v1419 = vsel %vm1412, %v1411, 0
      %1421 = vmatprep.subr.mxu0 0.0
      %1422 = vmatpush1.xpose.msra.mxu0 0.0
      %1423 = vmatprep.subr.mxu0 0.0
      %1424 = vmatpush1.xpose.msra.mxu0 0.0
      %1425 = vmatprep.subr.mxu0 0.0
      %1426 = vmatpush1.xpose.msra.mxu0 0.0
      %1427 = vmatprep.subr.mxu0 0.0
      %1428 = vmatpush1.xpose.msra.mxu0 0.0
      %1429 = vmatprep.subr.mxu0 0.0
      %1430 = vmatpush1.xpose.msra.mxu0 0.0
      %1431 = vmatprep.subr.mxu0 0.0
      %1432 = vmatpush1.xpose.msra.mxu0 0.0
      %1433 = vmatprep.subr.mxu0 0.0
      %1434 = vmatpush1.xpose.msra.mxu0 0.0
      %1435 = vmatprep.subr.mxu0 0.0
      %1436 = vmatpush1.xpose.msra.mxu0 0.0
      %1437 = vmatprep.subr.mxu0 0.0
      %1438 = vmatpush1.xpose.msra.mxu0 0.0
      %1439 = vmatprep.subr.mxu0 0.0
      %1440 = vmatpush1.xpose.msra.mxu0 0.0
      %1441 = vmatprep.subr.mxu0 0.0
      %1442 = vmatpush1.xpose.msra.mxu0 0.0
      %1443 = vmatprep.subr.mxu0 0.0
      %1444 = vmatpush1.xpose.msra.mxu0 0.0
      %1445 = vmatprep.subr.mxu0 0.0
      %1446 = vmatpush1.xpose.msra.mxu0 0.0
      %1447 = vmatprep.subr.mxu0 0.0
      %1448 = vmatpush1.xpose.msra.mxu0 0.0
      %1449 = vmatprep.subr.mxu0 0.0
      %1450 = vmatpush1.xpose.msra.mxu0 %v1419
      %1451 = vmatprep.subr.mxu0 0.0
      %1452 = vmatpush1.xpose.msra.mxu0 %v1417
      %1453 = vmatprep.subr.mxu0 0.0
      %1454 = vmatpush2.xpose.msra.mxu0 0.0
      %1455 = vmatprep.subr.mxu0 0.0
      %1456 = vmatpush2.xpose.msra.mxu0 0.0
      %1457 = vmatprep.subr.mxu0 0.0
      %1458 = vmatpush2.xpose.msra.mxu0 0.0
      %1459 = vmatprep.subr.mxu0 0.0
      %1460 = vmatpush2.xpose.msra.mxu0 0.0
      %1461 = vmatprep.subr.mxu0 0.0
      %1462 = vmatpush2.xpose.msra.mxu0 0.0
      %1463 = vmatprep.subr.mxu0 0.0
      %1464 = vmatpush2.xpose.msra.mxu0 0.0
      %1465 = vmatprep.subr.mxu0 0.0
      %1466 = vmatpush2.xpose.msra.mxu0 0.0
      %1467 = vmatprep.subr.mxu0 0.0
      %1468 = vmatpush2.xpose.msra.mxu0 0.0
      %1469 = vmatprep.subr.mxu0 0.0
      %1470 = vmatpush2.xpose.msra.mxu0 0.0
      %1471 = vmatprep.subr.mxu0 0.0
      %1472 = vmatpush2.xpose.msra.mxu0 0.0
      %1473 = vmatprep.subr.mxu0 0.0
      %1474 = vmatpush2.xpose.msra.mxu0 0.0
      %1475 = vmatprep.subr.mxu0 0.0
      %1476 = vmatpush2.xpose.msra.mxu0 0.0
      %1477 = vmatprep.subr.mxu0 0.0
      %1478 = vmatpush2.xpose.msra.mxu0 0.0
      %1479 = vmatprep.subr.mxu0 0.0
      %1480 = vmatpush2.xpose.msra.mxu0 0.0
      %1481 = vmatprep.subr.mxu0 0.0
      %1482 = vmatpush2.xpose.msra.mxu0 0.0
      %1483 = vmatprep.subr.mxu0 0.0
      %1484 = vmatpush2.xpose.msra.mxu0 0.0
      %1485 = vmatprep.mubr.f32.mxu0 0.0
      %1486 = vmatmul.mubr.f32.gmra.mxu0 %v1413
      %v1487 = vpop.f32.mrf.mxu0
      %v1488 = vadd.f32 0.0, %v1487
      %v1489 = vpop.f32.mrf.mxu0
      %1490 = vmatprep.mubr.f32.mxu0 0.0
      %1491 = vmatmul.mubr.f32.gmra.mxu0 %v1415
      %v1492 = vpop.f32.mrf.mxu0
      %v1493 = vadd.f32 0.0, %v1492
      %v1494 = vpop.f32.mrf.mxu0
      %1495 = vdwg.mxu0
      %v1496 = vmul.f32 %v1488, 0.25
      %v1497 = vmul.f32 %v1493, 0.25
      %v1498 = vsel %vm1263, %v1496, -1e+09
      %v1499 = vsel %vm1264, %v1497, -1e+09
      %v1500 = vsel %vm1412, %v1498, -inf
      %1501 = vmax.xlane.f32.xlu0 %v1500
      %v1502 = vpop.xlane.xlu0 %1501
      %v1503 = vsel %vm1412, %v1499, -inf
      %1504 = vmax.xlane.f32.xlu0 %v1503
      %v1505 = vpop.xlane.xlu0 %1504
      %v1506 = vsub.f32 %v1498, %v1502
      %v1507 = vsub.f32 %v1499, %v1505
      %v1508 = vmul.f32 %v1506, 1.442695
      %v1509 = vpow.pop %v1508
      %v1510 = vmul.f32 %v1507, 1.442695
      %v1511 = vpow.pop %v1510
      %v1512 = vsel %vm1412, %v1509, 0.0
      %1513 = vadd.xlane.f32.xlu0 %v1512
      %v1514 = vpop.xlane.xlu0 %1513
      %v1515 = vsel %vm1412, %v1511, 0.0
      %1516 = vadd.xlane.f32.xlu0 %v1515
      %v1517 = vpop.xlane.xlu0 %1516
      %v1518 = vrcp.pop %v1514
      %v1519 = vrcp.pop %v1517
      %v1520 = vmul.f32 %v1509, %v1518
      %v1521 = vmul.f32 %v1511, %v1519
      %1522 = vrot.lane.b32.xlu0 %v1394, 64
      %v1523 = vpop.permute.xlu0 %1522
      %1524 = vrot.lane.b32.xlu0 %v1399, 64
      %v1525 = vpop.permute.xlu0 %1524
      %v1529 = vsel %vm1412, %v1520, 0
      %v1532 = vsel %vm1412, %v1521, 0
      %1534 = vmatprep.subr.mxu0 0.0
      %1535 = vmatpush1.msra.mxu0 0.0
      %1536 = vmatprep.subr.mxu0 0.0
      %1537 = vmatpush1.msra.mxu0 0.0
      %1538 = vmatprep.subr.mxu0 0.0
      %1539 = vmatpush1.msra.mxu0 0.0
      %1540 = vmatprep.subr.mxu0 0.0
      %1541 = vmatpush1.msra.mxu0 0.0
      %1542 = vmatprep.subr.mxu0 0.0
      %1543 = vmatpush1.msra.mxu0 0.0
      %1544 = vmatprep.subr.mxu0 0.0
      %1545 = vmatpush1.msra.mxu0 0.0
      %1546 = vmatprep.subr.mxu0 0.0
      %1547 = vmatpush1.msra.mxu0 0.0
      %1548 = vmatprep.subr.mxu0 0.0
      %1549 = vmatpush1.msra.mxu0 0.0
      %1550 = vmatprep.subr.mxu0 0.0
      %1551 = vmatpush1.msra.mxu0 0.0
      %1552 = vmatprep.subr.mxu0 0.0
      %1553 = vmatpush1.msra.mxu0 0.0
      %1554 = vmatprep.subr.mxu0 0.0
      %1555 = vmatpush1.msra.mxu0 0.0
      %1556 = vmatprep.subr.mxu0 0.0
      %1557 = vmatpush1.msra.mxu0 0.0
      %1558 = vmatprep.subr.mxu0 0.0
      %1559 = vmatpush1.msra.mxu0 0.0
      %1560 = vmatprep.subr.mxu0 0.0
      %1561 = vmatpush1.msra.mxu0 0.0
      %1562 = vmatprep.subr.mxu0 0.0
      %1563 = vmatpush1.msra.mxu0 %v1525
      %1564 = vmatprep.subr.mxu0 0.0
      %1565 = vmatpush1.msra.mxu0 %v1523
      %1566 = vmatprep.subr.mxu0 0.0
      %1567 = vmatpush2.msra.mxu0 0.0
      %1568 = vmatprep.subr.mxu0 0.0
      %1569 = vmatpush2.msra.mxu0 0.0
      %1570 = vmatprep.subr.mxu0 0.0
      %1571 = vmatpush2.msra.mxu0 0.0
      %1572 = vmatprep.subr.mxu0 0.0
      %1573 = vmatpush2.msra.mxu0 0.0
      %1574 = vmatprep.subr.mxu0 0.0
      %1575 = vmatpush2.msra.mxu0 0.0
      %1576 = vmatprep.subr.mxu0 0.0
      %1577 = vmatpush2.msra.mxu0 0.0
      %1578 = vmatprep.subr.mxu0 0.0
      %1579 = vmatpush2.msra.mxu0 0.0
      %1580 = vmatprep.subr.mxu0 0.0
      %1581 = vmatpush2.msra.mxu0 0.0
      %1582 = vmatprep.subr.mxu0 0.0
      %1583 = vmatpush2.msra.mxu0 0.0
      %1584 = vmatprep.subr.mxu0 0.0
      %1585 = vmatpush2.msra.mxu0 0.0
      %1586 = vmatprep.subr.mxu0 0.0
      %1587 = vmatpush2.msra.mxu0 0.0
      %1588 = vmatprep.subr.mxu0 0.0
      %1589 = vmatpush2.msra.mxu0 0.0
      %1590 = vmatprep.subr.mxu0 0.0
      %1591 = vmatpush2.msra.mxu0 0.0
      %1592 = vmatprep.subr.mxu0 0.0
      %1593 = vmatpush2.msra.mxu0 0.0
      %1594 = vmatprep.subr.mxu0 0.0
      %1595 = vmatpush2.msra.mxu0 0.0
      %1596 = vmatprep.subr.mxu0 0.0
      %1597 = vmatpush2.msra.mxu0 0.0
      %1598 = vmatprep.mubr.f32.mxu0 0.0
      %1599 = vmatmul.mubr.f32.gmra.mxu0 %v1529
      %v1600 = vpop.f32.mrf.mxu0
      %v1601 = vadd.f32 0.0, %v1600
      %v1602 = vpop.f32.mrf.mxu0
      %1603 = vmatprep.mubr.f32.mxu0 0.0
      %1604 = vmatmul.mubr.f32.gmra.mxu0 %v1532
      %v1605 = vpop.f32.mrf.mxu0
      %v1606 = vadd.f32 0.0, %v1605
      %v1607 = vpop.f32.mrf.mxu0
      %1608 = vdwg.mxu0
      %1609 = vrot.lane.b32.xlu0 %v1394, 112
      %v1610 = vpop.permute.xlu0 %1609
      %1611 = vrot.lane.b32.xlu0 %v1399, 112
      %v1612 = vpop.permute.xlu0 %1611
      %1613 = vrot.lane.b32.xlu0 %v1394, 80
      %v1614 = vpop.permute.xlu0 %1613
      %1615 = vrot.lane.b32.xlu0 %v1399, 80
      %v1616 = vpop.permute.xlu0 %1615
      %v1617 = vsel %vm1412, %v1610, 0
      %v1619 = vsel %vm1412, %v1612, 0
      %v1621 = vsel %vm1412, %v1614, 0
      %v1623 = vsel %vm1412, %v1616, 0
      %1625 = vmatprep.subr.mxu0 0.0
      %1626 = vmatpush1.xpose.msra.mxu0 0.0
      %1627 = vmatprep.subr.mxu0 0.0
      %1628 = vmatpush1.xpose.msra.mxu0 0.0
      %1629 = vmatprep.subr.mxu0 0.0
      %1630 = vmatpush1.xpose.msra.mxu0 0.0
      %1631 = vmatprep.subr.mxu0 0.0
      %1632 = vmatpush1.xpose.msra.mxu0 0.0
      %1633 = vmatprep.subr.mxu0 0.0
      %1634 = vmatpush1.xpose.msra.mxu0 0.0
      %1635 = vmatprep.subr.mxu0 0.0
      %1636 = vmatpush1.xpose.msra.mxu0 0.0
      %1637 = vmatprep.subr.mxu0 0.0
      %1638 = vmatpush1.xpose.msra.mxu0 0.0
      %1639 = vmatprep.subr.mxu0 0.0
      %1640 = vmatpush1.xpose.msra.mxu0 0.0
      %1641 = vmatprep.subr.mxu0 0.0
      %1642 = vmatpush1.xpose.msra.mxu0 0.0
      %1643 = vmatprep.subr.mxu0 0.0
      %1644 = vmatpush1.xpose.msra.mxu0 0.0
      %1645 = vmatprep.subr.mxu0 0.0
      %1646 = vmatpush1.xpose.msra.mxu0 0.0
      %1647 = vmatprep.subr.mxu0 0.0
      %1648 = vmatpush1.xpose.msra.mxu0 0.0
      %1649 = vmatprep.subr.mxu0 0.0
      %1650 = vmatpush1.xpose.msra.mxu0 0.0
      %1651 = vmatprep.subr.mxu0 0.0
      %1652 = vmatpush1.xpose.msra.mxu0 0.0
      %1653 = vmatprep.subr.mxu0 0.0
      %1654 = vmatpush1.xpose.msra.mxu0 %v1623
      %1655 = vmatprep.subr.mxu0 0.0
      %1656 = vmatpush1.xpose.msra.mxu0 %v1621
      %1657 = vmatprep.subr.mxu0 0.0
      %1658 = vmatpush2.xpose.msra.mxu0 0.0
      %1659 = vmatprep.subr.mxu0 0.0
      %1660 = vmatpush2.xpose.msra.mxu0 0.0
      %1661 = vmatprep.subr.mxu0 0.0
      %1662 = vmatpush2.xpose.msra.mxu0 0.0
      %1663 = vmatprep.subr.mxu0 0.0
      %1664 = vmatpush2.xpose.msra.mxu0 0.0
      %1665 = vmatprep.subr.mxu0 0.0
      %1666 = vmatpush2.xpose.msra.mxu0 0.0
      %1667 = vmatprep.subr.mxu0 0.0
      %1668 = vmatpush2.xpose.msra.mxu0 0.0
      %1669 = vmatprep.subr.mxu0 0.0
      %1670 = vmatpush2.xpose.msra.mxu0 0.0
      %1671 = vmatprep.subr.mxu0 0.0
      %1672 = vmatpush2.xpose.msra.mxu0 0.0
      %1673 = vmatprep.subr.mxu0 0.0
      %1674 = vmatpush2.xpose.msra.mxu0 0.0
      %1675 = vmatprep.subr.mxu0 0.0
      %1676 = vmatpush2.xpose.msra.mxu0 0.0
      %1677 = vmatprep.subr.mxu0 0.0
      %1678 = vmatpush2.xpose.msra.mxu0 0.0
      %1679 = vmatprep.subr.mxu0 0.0
      %1680 = vmatpush2.xpose.msra.mxu0 0.0
      %1681 = vmatprep.subr.mxu0 0.0
      %1682 = vmatpush2.xpose.msra.mxu0 0.0
      %1683 = vmatprep.subr.mxu0 0.0
      %1684 = vmatpush2.xpose.msra.mxu0 0.0
      %1685 = vmatprep.subr.mxu0 0.0
      %1686 = vmatpush2.xpose.msra.mxu0 0.0
      %1687 = vmatprep.subr.mxu0 0.0
      %1688 = vmatpush2.xpose.msra.mxu0 0.0
      %1689 = vmatprep.mubr.f32.mxu0 0.0
      %1690 = vmatmul.mubr.f32.gmra.mxu0 %v1617
      %v1691 = vpop.f32.mrf.mxu0
      %v1692 = vadd.f32 0.0, %v1691
      %v1693 = vpop.f32.mrf.mxu0
      %1694 = vmatprep.mubr.f32.mxu0 0.0
      %1695 = vmatmul.mubr.f32.gmra.mxu0 %v1619
      %v1696 = vpop.f32.mrf.mxu0
      %v1697 = vadd.f32 0.0, %v1696
      %v1698 = vpop.f32.mrf.mxu0
      %1699 = vdwg.mxu0
      %v1700 = vmul.f32 %v1692, 0.25
      %v1701 = vmul.f32 %v1697, 0.25
      %v1702 = vsel %vm1263, %v1700, -1e+09
      %v1703 = vsel %vm1264, %v1701, -1e+09
      %v1704 = vsel %vm1412, %v1702, -inf
      %1705 = vmax.xlane.f32.xlu0 %v1704
      %v1706 = vpop.xlane.xlu0 %1705
      %v1707 = vsel %vm1412, %v1703, -inf
      %1708 = vmax.xlane.f32.xlu0 %v1707
      %v1709 = vpop.xlane.xlu0 %1708
      %v1710 = vsub.f32 %v1702, %v1706
      %v1711 = vsub.f32 %v1703, %v1709
      %v1712 = vmul.f32 %v1710, 1.442695
      %v1713 = vpow.pop %v1712
      %v1714 = vmul.f32 %v1711, 1.442695
      %v1715 = vpow.pop %v1714
      %v1716 = vsel %vm1412, %v1713, 0.0
      %1717 = vadd.xlane.f32.xlu0 %v1716
      %v1718 = vpop.xlane.xlu0 %1717
      %v1719 = vsel %vm1412, %v1715, 0.0
      %1720 = vadd.xlane.f32.xlu0 %v1719
      %v1721 = vpop.xlane.xlu0 %1720
      %v1722 = vrcp.pop %v1718
      %v1723 = vrcp.pop %v1721
      %v1724 = vmul.f32 %v1713, %v1722
      %v1725 = vmul.f32 %v1715, %v1723
      %1726 = vrot.lane.b32.xlu0 %v1394, 48
      %v1727 = vpop.permute.xlu0 %1726
      %1728 = vrot.lane.b32.xlu0 %v1399, 48
      %v1729 = vpop.permute.xlu0 %1728
      %v1733 = vsel %vm1412, %v1724, 0
      %v1736 = vsel %vm1412, %v1725, 0
      %1738 = vmatprep.subr.mxu0 0.0
      %1739 = vmatpush1.msra.mxu0 0.0
      %1740 = vmatprep.subr.mxu0 0.0
      %1741 = vmatpush1.msra.mxu0 0.0
      %1742 = vmatprep.subr.mxu0 0.0
      %1743 = vmatpush1.msra.mxu0 0.0
      %1744 = vmatprep.subr.mxu0 0.0
      %1745 = vmatpush1.msra.mxu0 0.0
      %1746 = vmatprep.subr.mxu0 0.0
      %1747 = vmatpush1.msra.mxu0 0.0
      %1748 = vmatprep.subr.mxu0 0.0
      %1749 = vmatpush1.msra.mxu0 0.0
      %1750 = vmatprep.subr.mxu0 0.0
      %1751 = vmatpush1.msra.mxu0 0.0
      %1752 = vmatprep.subr.mxu0 0.0
      %1753 = vmatpush1.msra.mxu0 0.0
      %1754 = vmatprep.subr.mxu0 0.0
      %1755 = vmatpush1.msra.mxu0 0.0
      %1756 = vmatprep.subr.mxu0 0.0
      %1757 = vmatpush1.msra.mxu0 0.0
      %1758 = vmatprep.subr.mxu0 0.0
      %1759 = vmatpush1.msra.mxu0 0.0
      %1760 = vmatprep.subr.mxu0 0.0
      %1761 = vmatpush1.msra.mxu0 0.0
      %1762 = vmatprep.subr.mxu0 0.0
      %1763 = vmatpush1.msra.mxu0 0.0
      %1764 = vmatprep.subr.mxu0 0.0
      %1765 = vmatpush1.msra.mxu0 0.0
      %1766 = vmatprep.subr.mxu0 0.0
      %1767 = vmatpush1.msra.mxu0 %v1729
      %1768 = vmatprep.subr.mxu0 0.0
      %1769 = vmatpush1.msra.mxu0 %v1727
      %1770 = vmatprep.subr.mxu0 0.0
      %1771 = vmatpush2.msra.mxu0 0.0
      %1772 = vmatprep.subr.mxu0 0.0
      %1773 = vmatpush2.msra.mxu0 0.0
      %1774 = vmatprep.subr.mxu0 0.0
      %1775 = vmatpush2.msra.mxu0 0.0
      %1776 = vmatprep.subr.mxu0 0.0
      %1777 = vmatpush2.msra.mxu0 0.0
      %1778 = vmatprep.subr.mxu0 0.0
      %1779 = vmatpush2.msra.mxu0 0.0
      %1780 = vmatprep.subr.mxu0 0.0
      %1781 = vmatpush2.msra.mxu0 0.0
      %1782 = vmatprep.subr.mxu0 0.0
      %1783 = vmatpush2.msra.mxu0 0.0
      %1784 = vmatprep.subr.mxu0 0.0
      %1785 = vmatpush2.msra.mxu0 0.0
      %1786 = vmatprep.subr.mxu0 0.0
      %1787 = vmatpush2.msra.mxu0 0.0
      %1788 = vmatprep.subr.mxu0 0.0
      %1789 = vmatpush2.msra.mxu0 0.0
      %1790 = vmatprep.subr.mxu0 0.0
      %1791 = vmatpush2.msra.mxu0 0.0
      %1792 = vmatprep.subr.mxu0 0.0
      %1793 = vmatpush2.msra.mxu0 0.0
      %1794 = vmatprep.subr.mxu0 0.0
      %1795 = vmatpush2.msra.mxu0 0.0
      %1796 = vmatprep.subr.mxu0 0.0
      %1797 = vmatpush2.msra.mxu0 0.0
      %1798 = vmatprep.subr.mxu0 0.0
      %1799 = vmatpush2.msra.mxu0 0.0
      %1800 = vmatprep.subr.mxu0 0.0
      %1801 = vmatpush2.msra.mxu0 0.0
      %1802 = vmatprep.mubr.f32.mxu0 0.0
      %1803 = vmatmul.mubr.f32.gmra.mxu0 %v1733
      %v1804 = vpop.f32.mrf.mxu0
      %v1805 = vadd.f32 0.0, %v1804
      %v1806 = vpop.f32.mrf.mxu0
      %1807 = vmatprep.mubr.f32.mxu0 0.0
      %1808 = vmatmul.mubr.f32.gmra.mxu0 %v1736
      %v1809 = vpop.f32.mrf.mxu0
      %v1810 = vadd.f32 0.0, %v1809
      %v1811 = vpop.f32.mrf.mxu0
      %1812 = vdwg.mxu0
      %v1814 = vsel %vm1412, %v1805, 0
      %v1817 = vsel %vm1412, %v1810, 0
      %1819 = vmatprep.subr.mxu0 0.0
      %1820 = vmatpush1.msra.mxu0 0.0
      %1821 = vmatprep.subr.mxu0 0.0
      %1822 = vmatpush1.msra.mxu0 0.0
      %1823 = vmatprep.subr.mxu0 0.0
      %1824 = vmatpush1.msra.mxu0 0.0
      %1825 = vmatprep.subr.mxu0 0.0
      %1826 = vmatpush1.msra.mxu0 0.0
      %1827 = vmatprep.subr.mxu0 0.0
      %1828 = vmatpush1.msra.mxu0 0.0
      %1829 = vmatprep.subr.mxu0 0.0
      %1830 = vmatpush1.msra.mxu0 0.0
      %1831 = vmatprep.subr.mxu0 0.0
      %1832 = vmatpush1.msra.mxu0 0.0
      %1833 = vmatprep.subr.mxu0 0.0
      %1834 = vmatpush1.msra.mxu0 0.0
      %1835 = vmatprep.subr.mxu0 0.0
      %1836 = vmatpush1.msra.mxu0 0.0
      %1837 = vmatprep.subr.mxu0 0.0
      %1838 = vmatpush1.msra.mxu0 0.0
      %1839 = vmatprep.subr.mxu0 0.0
      %1840 = vmatpush1.msra.mxu0 0.0
      %1841 = vmatprep.subr.mxu0 0.0
      %1842 = vmatpush1.msra.mxu0 0.0
      %1843 = vmatprep.subr.mxu0 0.0
      %1844 = vmatpush1.msra.mxu0 0.0
      %1845 = vmatprep.subr.mxu0 0.0
      %1846 = vmatpush1.msra.mxu0 0.0
      %1847 = vmatprep.subr.mxu0 0.0
      %1848 = vmatpush1.msra.mxu0 %v1405
      %1849 = vmatprep.subr.mxu0 0.0
      %1850 = vmatpush1.msra.mxu0 %v1404
      %1851 = vmatprep.subr.mxu0 0.0
      %1852 = vmatpush2.msra.mxu0 0.0
      %1853 = vmatprep.subr.mxu0 0.0
      %1854 = vmatpush2.msra.mxu0 0.0
      %1855 = vmatprep.subr.mxu0 0.0
      %1856 = vmatpush2.msra.mxu0 0.0
      %1857 = vmatprep.subr.mxu0 0.0
      %1858 = vmatpush2.msra.mxu0 0.0
      %1859 = vmatprep.subr.mxu0 0.0
      %1860 = vmatpush2.msra.mxu0 0.0
      %1861 = vmatprep.subr.mxu0 0.0
      %1862 = vmatpush2.msra.mxu0 0.0
      %1863 = vmatprep.subr.mxu0 0.0
      %1864 = vmatpush2.msra.mxu0 0.0
      %1865 = vmatprep.subr.mxu0 0.0
      %1866 = vmatpush2.msra.mxu0 0.0
      %1867 = vmatprep.subr.mxu0 0.0
      %1868 = vmatpush2.msra.mxu0 0.0
      %1869 = vmatprep.subr.mxu0 0.0
      %1870 = vmatpush2.msra.mxu0 0.0
      %1871 = vmatprep.subr.mxu0 0.0
      %1872 = vmatpush2.msra.mxu0 0.0
      %1873 = vmatprep.subr.mxu0 0.0
      %1874 = vmatpush2.msra.mxu0 0.0
      %1875 = vmatprep.subr.mxu0 0.0
      %1876 = vmatpush2.msra.mxu0 0.0
      %1877 = vmatprep.subr.mxu0 0.0
      %1878 = vmatpush2.msra.mxu0 0.0
      %1879 = vmatprep.subr.mxu0 0.0
      %1880 = vmatpush2.msra.mxu0 0.0
      %1881 = vmatprep.subr.mxu0 0.0
      %1882 = vmatpush2.msra.mxu0 0.0
      %1883 = vmatprep.mubr.f32.mxu0 0.0
      %1884 = vmatmul.mubr.f32.gmra.mxu0 %v1814
      %v1885 = vpop.f32.mrf.mxu0
      %v1886 = vadd.f32 0.0, %v1885
      %v1887 = vpop.f32.mrf.mxu0
      %1888 = vmatprep.mubr.f32.mxu0 0.0
      %1889 = vmatmul.mubr.f32.gmra.mxu0 %v1817
      %v1890 = vpop.f32.mrf.mxu0
      %v1891 = vadd.f32 0.0, %v1890
      %v1892 = vpop.f32.mrf.mxu0
      %1893 = vdwg.mxu0
      %v1895 = vsel %vm1412, %v1601, 0
      %v1898 = vsel %vm1412, %v1606, 0
      %1900 = vmatprep.subr.mxu0 0.0
      %1901 = vmatpush1.msra.mxu0 0.0
      %1902 = vmatprep.subr.mxu0 0.0
      %1903 = vmatpush1.msra.mxu0 0.0
      %1904 = vmatprep.subr.mxu0 0.0
      %1905 = vmatpush1.msra.mxu0 0.0
      %1906 = vmatprep.subr.mxu0 0.0
      %1907 = vmatpush1.msra.mxu0 0.0
      %1908 = vmatprep.subr.mxu0 0.0
      %1909 = vmatpush1.msra.mxu0 0.0
      %1910 = vmatprep.subr.mxu0 0.0
      %1911 = vmatpush1.msra.mxu0 0.0
      %1912 = vmatprep.subr.mxu0 0.0
      %1913 = vmatpush1.msra.mxu0 0.0
      %1914 = vmatprep.subr.mxu0 0.0
      %1915 = vmatpush1.msra.mxu0 0.0
      %1916 = vmatprep.subr.mxu0 0.0
      %1917 = vmatpush1.msra.mxu0 0.0
      %1918 = vmatprep.subr.mxu0 0.0
      %1919 = vmatpush1.msra.mxu0 0.0
      %1920 = vmatprep.subr.mxu0 0.0
      %1921 = vmatpush1.msra.mxu0 0.0
      %1922 = vmatprep.subr.mxu0 0.0
      %1923 = vmatpush1.msra.mxu0 0.0
      %1924 = vmatprep.subr.mxu0 0.0
      %1925 = vmatpush1.msra.mxu0 0.0
      %1926 = vmatprep.subr.mxu0 0.0
      %1927 = vmatpush1.msra.mxu0 0.0
      %1928 = vmatprep.subr.mxu0 0.0
      %1929 = vmatpush1.msra.mxu0 %v1403
      %1930 = vmatprep.subr.mxu0 0.0
      %1931 = vmatpush1.msra.mxu0 %v1402
      %1932 = vmatprep.subr.mxu0 0.0
      %1933 = vmatpush2.msra.mxu0 0.0
      %1934 = vmatprep.subr.mxu0 0.0
      %1935 = vmatpush2.msra.mxu0 0.0
      %1936 = vmatprep.subr.mxu0 0.0
      %1937 = vmatpush2.msra.mxu0 0.0
      %1938 = vmatprep.subr.mxu0 0.0
      %1939 = vmatpush2.msra.mxu0 0.0
      %1940 = vmatprep.subr.mxu0 0.0
      %1941 = vmatpush2.msra.mxu0 0.0
      %1942 = vmatprep.subr.mxu0 0.0
      %1943 = vmatpush2.msra.mxu0 0.0
      %1944 = vmatprep.subr.mxu0 0.0
      %1945 = vmatpush2.msra.mxu0 0.0
      %1946 = vmatprep.subr.mxu0 0.0
      %1947 = vmatpush2.msra.mxu0 0.0
      %1948 = vmatprep.subr.mxu0 0.0
      %1949 = vmatpush2.msra.mxu0 0.0
      %1950 = vmatprep.subr.mxu0 0.0
      %1951 = vmatpush2.msra.mxu0 0.0
      %1952 = vmatprep.subr.mxu0 0.0
      %1953 = vmatpush2.msra.mxu0 0.0
      %1954 = vmatprep.subr.mxu0 0.0
      %1955 = vmatpush2.msra.mxu0 0.0
      %1956 = vmatprep.subr.mxu0 0.0
      %1957 = vmatpush2.msra.mxu0 0.0
      %1958 = vmatprep.subr.mxu0 0.0
      %1959 = vmatpush2.msra.mxu0 0.0
      %1960 = vmatprep.subr.mxu0 0.0
      %1961 = vmatpush2.msra.mxu0 0.0
      %1962 = vmatprep.subr.mxu0 0.0
      %1963 = vmatpush2.msra.mxu0 0.0
      %1964 = vmatprep.mubr.f32.mxu0 0.0
      %1965 = vmatmul.mubr.f32.gmra.mxu0 %v1895
      %v1966 = vpop.f32.mrf.mxu0
      %v1967 = vadd.f32 %v1886, %v1966
      %v1968 = vpop.f32.mrf.mxu0
      %1969 = vmatprep.mubr.f32.mxu0 0.0
      %1970 = vmatmul.mubr.f32.gmra.mxu0 %v1898
      %v1971 = vpop.f32.mrf.mxu0
      %v1972 = vadd.f32 %v1891, %v1971
      %v1973 = vpop.f32.mrf.mxu0
      %1974 = vdwg.mxu0
      %v1975 = vld [vmem:[%s14] sm:$0x1]
      %v1977 = vlaneseq
      %v1978 = vshrl.u32 %v1977, 7
      %v1979 = vsub.s32 0, %v1978
      %v1980 = vrot.slane %v1975, %v1979
      %v1982 = vadd.f32 %v1967, %v1980
      %v1983 = vadd.f32 %v1972, %v1980
      %v1984 = vadd.f32 %v1982, %v1258
      %v1985 = vadd.f32 %v1983, %v1259
      %v1986 = vld [vmem:[%s15] sm:$0x1]
      %v1987 = vld [vmem:[%s16] sm:$0x1]
      %v1988 = vsel %vm734, %v1984, 0.0
      %1989 = vadd.xlane.f32.xlu0 %v1988
      %v1990 = vpop.xlane.xlu0 %1989
      %v1991 = vsel %vm734, %v1985, 0.0
      %1992 = vadd.xlane.f32.xlu0 %v1991
      %v1993 = vpop.xlane.xlu0 %1992
      %v1994 = vmul.f32 %v1990, %v1273
      %v1995 = vmul.f32 %v1993, %v1273
      %v1996 = vsub.f32 %v1984, %v1994
      %v1997 = vsub.f32 %v1985, %v1995
      %v1998 = vmul.f32 %v1996, %v1996
      %v1999 = vmul.f32 %v1997, %v1997
      %v2000 = vsel %vm734, %v1998, 0.0
      %2001 = vadd.xlane.f32.xlu0 %v2000
      %v2002 = vpop.xlane.xlu0 %2001
      %v2003 = vsel %vm734, %v1999, 0.0
      %2004 = vadd.xlane.f32.xlu0 %v2003
      %v2005 = vpop.xlane.xlu0 %2004
      %v2006 = vmul.f32 %v2002, %v1273
      %v2007 = vmul.f32 %v2005, %v1273
      %v2008 = vadd.f32 %v2006, 1e-05
      %v2009 = vadd.f32 %v2007, 1e-05
      %v2010 = vrsqrt.pop %v2008
      %v2011 = vrsqrt.pop %v2009
      %v2012 = vmul.f32 %v1996, %v2010
      %v2013 = vmul.f32 %v1997, %v2011
      %v2015 = vlaneseq
      %v2016 = vshrl.u32 %v2015, 7
      %v2017 = vsub.s32 0, %v2016
      %v2018 = vrot.slane %v1986, %v2017
      %v2020 = vmul.f32 %v2012, %v2018
      %v2021 = vmul.f32 %v2013, %v2018
      %v2023 = vlaneseq
      %v2024 = vshrl.u32 %v2023, 7
      %v2025 = vsub.s32 0, %v2024
      %v2026 = vrot.slane %v1987, %v2025
      %v2028 = vadd.f32 %v2020, %v2026
      %v2029 = vadd.f32 %v2021, %v2026
      %v2030 = vld [vmem:[%s17] sm:$0xff]
      %v2031 = vld [vmem:[%s17 + $0x8] sm:$0xff]
      %v2032 = vld [vmem:[%s17 + $0x10] sm:$0xff]
      %v2033 = vld [vmem:[%s17 + $0x18] sm:$0xff]
      %v2034 = vld [vmem:[%s18] sm:$0x1]
      %v2036 = vlaneseq
      %v2037 = vshrl.u32 %v2036, 7
      %v2038 = vsub.s32 0, %v2037
      %v2039 = vrot.slane %v2034, %v2038
      %v2042 = vsel %vm734, %v2028, 0
      %v2045 = vsel %vm734, %v2029, 0
      %2047 = vmatprep.subr.mxu0 0.0
      %2048 = vmatpush1.msra.mxu0 0.0
      %2049 = vmatprep.subr.mxu0 0.0
      %2050 = vmatpush1.msra.mxu0 0.0
      %2051 = vmatprep.subr.mxu0 0.0
      %2052 = vmatpush1.msra.mxu0 0.0
      %2053 = vmatprep.subr.mxu0 0.0
      %2054 = vmatpush1.msra.mxu0 0.0
      %2055 = vmatprep.subr.mxu0 0.0
      %2056 = vmatpush1.msra.mxu0 0.0
      %2057 = vmatprep.subr.mxu0 0.0
      %2058 = vmatpush1.msra.mxu0 0.0
      %2059 = vmatprep.subr.mxu0 0.0
      %2060 = vmatpush1.msra.mxu0 0.0
      %2061 = vmatprep.subr.mxu0 0.0
      %2062 = vmatpush1.msra.mxu0 0.0
      %2063 = vmatprep.subr.mxu0 0.0
      %2064 = vmatpush1.msra.mxu0 0.0
      %2065 = vmatprep.subr.mxu0 0.0
      %2066 = vmatpush1.msra.mxu0 0.0
      %2067 = vmatprep.subr.mxu0 0.0
      %2068 = vmatpush1.msra.mxu0 0.0
      %2069 = vmatprep.subr.mxu0 0.0
      %2070 = vmatpush1.msra.mxu0 0.0
      %2071 = vmatprep.subr.mxu0 0.0
      %2072 = vmatpush1.msra.mxu0 %v2033
      %2073 = vmatprep.subr.mxu0 0.0
      %2074 = vmatpush1.msra.mxu0 %v2032
      %2075 = vmatprep.subr.mxu0 0.0
      %2076 = vmatpush1.msra.mxu0 %v2031
      %2077 = vmatprep.subr.mxu0 0.0
      %2078 = vmatpush1.msra.mxu0 %v2030
      %2079 = vmatprep.subr.mxu0 0.0
      %2080 = vmatpush2.msra.mxu0 0.0
      %2081 = vmatprep.subr.mxu0 0.0
      %2082 = vmatpush2.msra.mxu0 0.0
      %2083 = vmatprep.subr.mxu0 0.0
      %2084 = vmatpush2.msra.mxu0 0.0
      %2085 = vmatprep.subr.mxu0 0.0
      %2086 = vmatpush2.msra.mxu0 0.0
      %2087 = vmatprep.subr.mxu0 0.0
      %2088 = vmatpush2.msra.mxu0 0.0
      %2089 = vmatprep.subr.mxu0 0.0
      %2090 = vmatpush2.msra.mxu0 0.0
      %2091 = vmatprep.subr.mxu0 0.0
      %2092 = vmatpush2.msra.mxu0 0.0
      %2093 = vmatprep.subr.mxu0 0.0
      %2094 = vmatpush2.msra.mxu0 0.0
      %2095 = vmatprep.subr.mxu0 0.0
      %2096 = vmatpush2.msra.mxu0 0.0
      %2097 = vmatprep.subr.mxu0 0.0
      %2098 = vmatpush2.msra.mxu0 0.0
      %2099 = vmatprep.subr.mxu0 0.0
      %2100 = vmatpush2.msra.mxu0 0.0
      %2101 = vmatprep.subr.mxu0 0.0
      %2102 = vmatpush2.msra.mxu0 0.0
      %2103 = vmatprep.subr.mxu0 0.0
      %2104 = vmatpush2.msra.mxu0 0.0
      %2105 = vmatprep.subr.mxu0 0.0
      %2106 = vmatpush2.msra.mxu0 0.0
      %2107 = vmatprep.subr.mxu0 0.0
      %2108 = vmatpush2.msra.mxu0 0.0
      %2109 = vmatprep.subr.mxu0 0.0
      %2110 = vmatpush2.msra.mxu0 0.0
      %2111 = vmatprep.mubr.f32.mxu0 0.0
      %2112 = vmatmul.mubr.f32.gmra.mxu0 %v2042
      %v2113 = vpop.f32.mrf.mxu0
      %v2114 = vadd.f32 %v2039, %v2113
      %v2115 = vpop.f32.mrf.mxu0
      %2116 = vmatprep.mubr.f32.mxu0 0.0
      %2117 = vmatmul.mubr.f32.gmra.mxu0 %v2045
      %v2118 = vpop.f32.mrf.mxu0
      %v2119 = vadd.f32 %v2039, %v2118
      %v2120 = vpop.f32.mrf.mxu0
      %2121 = vdwg.mxu0
      %v2122 = vmul.f32 %v2114, 0.5
      %v2123 = vmul.f32 %v2119, 0.5
      %v2124 = vmul.f32 %v2114, 0.044715
      %v2125 = vmul.f32 %v2119, 0.044715
      %v2126 = vmul.f32 %v2124, %v2114
      %v2127 = vmul.f32 %v2125, %v2119
      %v2128 = vmul.f32 %v2126, %v2114
      %v2129 = vmul.f32 %v2127, %v2119
      %v2130 = vadd.f32 %v2114, %v2128
      %v2131 = vadd.f32 %v2119, %v2129
      %v2132 = vmul.f32 %v2130, 0.7978846
      %v2133 = vmul.f32 %v2131, 0.7978846
      %v2134 = vtanh.pop %v2132
      %v2135 = vtanh.pop %v2133
      %v2136 = vadd.f32 %v2134, 1.0
      %v2137 = vadd.f32 %v2135, 1.0
      %v2138 = vmul.f32 %v2122, %v2136
      %v2139 = vmul.f32 %v2123, %v2137
      %v2140 = vld [vmem:[%s19] sm:$0xff]
      %v2141 = vld [vmem:[%s19 + $0x8] sm:$0xff]
      %v2142 = vld [vmem:[%s19 + $0x10] sm:$0xff]
      %v2143 = vld [vmem:[%s19 + $0x18] sm:$0xff]
      %v2144 = vld [vmem:[%s19 + $0x20] sm:$0xff]
      %v2145 = vld [vmem:[%s19 + $0x28] sm:$0xff]
      %v2146 = vld [vmem:[%s19 + $0x30] sm:$0xff]
      %v2147 = vld [vmem:[%s19 + $0x38] sm:$0xff]
      %v2148 = vld [vmem:[%s19 + $0x40] sm:$0xff]
      %v2149 = vld [vmem:[%s19 + $0x48] sm:$0xff]
      %v2150 = vld [vmem:[%s19 + $0x50] sm:$0xff]
      %v2151 = vld [vmem:[%s19 + $0x58] sm:$0xff]
      %v2152 = vld [vmem:[%s19 + $0x60] sm:$0xff]
      %v2153 = vld [vmem:[%s19 + $0x68] sm:$0xff]
      %v2154 = vld [vmem:[%s19 + $0x70] sm:$0xff]
      %v2155 = vld [vmem:[%s19 + $0x78] sm:$0xff]
      %v2156 = vld [vmem:[%s20] sm:$0x1]
      %v2158 = vlaneseq
      %v2159 = vshrl.u32 %v2158, 7
      %v2160 = vsub.s32 0, %v2159
      %v2161 = vrot.slane %v2156, %v2160
      %2163 = vmatprep.subr.mxu0 0.0
      %2164 = vmatpush1.msra.mxu0 %v2155
      %2165 = vmatprep.subr.mxu0 0.0
      %2166 = vmatpush1.msra.mxu0 %v2154
      %2167 = vmatprep.subr.mxu0 0.0
      %2168 = vmatpush1.msra.mxu0 %v2153
      %2169 = vmatprep.subr.mxu0 0.0
      %2170 = vmatpush1.msra.mxu0 %v2152
      %2171 = vmatprep.subr.mxu0 0.0
      %2172 = vmatpush1.msra.mxu0 %v2151
      %2173 = vmatprep.subr.mxu0 0.0
      %2174 = vmatpush1.msra.mxu0 %v2150
      %2175 = vmatprep.subr.mxu0 0.0
      %2176 = vmatpush1.msra.mxu0 %v2149
      %2177 = vmatprep.subr.mxu0 0.0
      %2178 = vmatpush1.msra.mxu0 %v2148
      %2179 = vmatprep.subr.mxu0 0.0
      %2180 = vmatpush1.msra.mxu0 %v2147
      %2181 = vmatprep.subr.mxu0 0.0
      %2182 = vmatpush1.msra.mxu0 %v2146
      %2183 = vmatprep.subr.mxu0 0.0
      %2184 = vmatpush1.msra.mxu0 %v2145
      %2185 = vmatprep.subr.mxu0 0.0
      %2186 = vmatpush1.msra.mxu0 %v2144
      %2187 = vmatprep.subr.mxu0 0.0
      %2188 = vmatpush1.msra.mxu0 %v2143
      %2189 = vmatprep.subr.mxu0 0.0
      %2190 = vmatpush1.msra.mxu0 %v2142
      %2191 = vmatprep.subr.mxu0 0.0
      %2192 = vmatpush1.msra.mxu0 %v2141
      %2193 = vmatprep.subr.mxu0 0.0
      %2194 = vmatpush1.msra.mxu0 %v2140
      %2195 = vmatprep.subr.mxu0 0.0
      %2196 = vmatpush2.msra.mxu0 0.0
      %2197 = vmatprep.subr.mxu0 0.0
      %2198 = vmatpush2.msra.mxu0 0.0
      %2199 = vmatprep.subr.mxu0 0.0
      %2200 = vmatpush2.msra.mxu0 0.0
      %2201 = vmatprep.subr.mxu0 0.0
      %2202 = vmatpush2.msra.mxu0 0.0
      %2203 = vmatprep.subr.mxu0 0.0
      %2204 = vmatpush2.msra.mxu0 0.0
      %2205 = vmatprep.subr.mxu0 0.0
      %2206 = vmatpush2.msra.mxu0 0.0
      %2207 = vmatprep.subr.mxu0 0.0
      %2208 = vmatpush2.msra.mxu0 0.0
      %2209 = vmatprep.subr.mxu0 0.0
      %2210 = vmatpush2.msra.mxu0 0.0
      %2211 = vmatprep.subr.mxu0 0.0
      %2212 = vmatpush2.msra.mxu0 0.0
      %2213 = vmatprep.subr.mxu0 0.0
      %2214 = vmatpush2.msra.mxu0 0.0
      %2215 = vmatprep.subr.mxu0 0.0
      %2216 = vmatpush2.msra.mxu0 0.0
      %2217 = vmatprep.subr.mxu0 0.0
      %2218 = vmatpush2.msra.mxu0 0.0
      %2219 = vmatprep.subr.mxu0 0.0
      %2220 = vmatpush2.msra.mxu0 0.0
      %2221 = vmatprep.subr.mxu0 0.0
      %2222 = vmatpush2.msra.mxu0 0.0
      %2223 = vmatprep.subr.mxu0 0.0
      %2224 = vmatpush2.msra.mxu0 0.0
      %2225 = vmatprep.subr.mxu0 0.0
      %2226 = vmatpush2.msra.mxu0 0.0
      %2227 = vmatprep.mubr.f32.mxu0 0.0
      %2228 = vmatmul.mubr.f32.gmra.mxu0 %v2138
      %v2229 = vpop.f32.mrf.mxu0
      %v2230 = vadd.f32 %v2161, %v2229
      %v2231 = vpop.f32.mrf.mxu0
      %2232 = vmatprep.mubr.f32.mxu0 0.0
      %2233 = vmatmul.mubr.f32.gmra.mxu0 %v2139
      %v2234 = vpop.f32.mrf.mxu0
      %v2235 = vadd.f32 %v2161, %v2234
      %v2236 = vpop.f32.mrf.mxu0
      %2237 = vdwg.mxu0
      %v2238 = vadd.f32 %v2230, %v1984
      %v2239 = vadd.f32 %v2235, %v1985
      %s2240 = scalar_lea.vmem %s9, 1
      %v2241 = vld [vmem:[%s2240] sm:$0x1]
      %s2242 = scalar_lea.vmem %s10, 1
      %v2243 = vld [vmem:[%s2242] sm:$0x1]
      %v2244 = vsel %vm734, %v2238, 0.0
      %2245 = vadd.xlane.f32.xlu0 %v2244
      %v2246 = vpop.xlane.xlu0 %2245
      %v2247 = vsel %vm734, %v2239, 0.0
      %2248 = vadd.xlane.f32.xlu0 %v2247
      %v2249 = vpop.xlane.xlu0 %2248
      %v2250 = vmul.f32 %v2246, %v1273
      %v2251 = vmul.f32 %v2249, %v1273
      %v2252 = vsub.f32 %v2238, %v2250
      %v2253 = vsub.f32 %v2239, %v2251
      %v2254 = vmul.f32 %v2252, %v2252
      %v2255 = vmul.f32 %v2253, %v2253
      %v2256 = vsel %vm734, %v2254, 0.0
      %2257 = vadd.xlane.f32.xlu0 %v2256
      %v2258 = vpop.xlane.xlu0 %2257
      %v2259 = vsel %vm734, %v2255, 0.0
      %2260 = vadd.xlane.f32.xlu0 %v2259
      %v2261 = vpop.xlane.xlu0 %2260
      %v2262 = vmul.f32 %v2258, %v1273
      %v2263 = vmul.f32 %v2261, %v1273
      %v2264 = vadd.f32 %v2262, 1e-05
      %v2265 = vadd.f32 %v2263, 1e-05
      %v2266 = vrsqrt.pop %v2264
      %v2267 = vrsqrt.pop %v2265
      %v2268 = vmul.f32 %v2252, %v2266
      %v2269 = vmul.f32 %v2253, %v2267
      %v2271 = vlaneseq
      %v2272 = vshrl.u32 %v2271, 7
      %v2273 = vsub.s32 0, %v2272
      %v2274 = vrot.slane %v2241, %v2273
      %v2276 = vmul.f32 %v2268, %v2274
      %v2277 = vmul.f32 %v2269, %v2274
      %v2279 = vlaneseq
      %v2280 = vshrl.u32 %v2279, 7
      %v2281 = vsub.s32 0, %v2280
      %v2282 = vrot.slane %v2243, %v2281
      %v2284 = vadd.f32 %v2276, %v2282
      %v2285 = vadd.f32 %v2277, %v2282
      %s2286 = scalar_lea.vmem %s11, 32
      %v2287 = vld [vmem:[%s2286] sm:$0xff]
      %v2288 = vld [vmem:[%s2286 + $0x8] sm:$0xff]
      %v2289 = vld [vmem:[%s2286 + $0x10] sm:$0xff]
      %v2290 = vld [vmem:[%s2286 + $0x18] sm:$0xff]
      %s2291 = scalar_lea.vmem %s12, 1
      %v2292 = vld [vmem:[%s2291] sm:$0x1]
      %v2294 = vlaneseq
      %v2295 = vshrl.u32 %v2294, 7
      %v2296 = vsub.s32 0, %v2295
      %v2297 = vrot.slane %v2292, %v2296
      %v2300 = vsel %vm734, %v2284, 0
      %v2303 = vsel %vm734, %v2285, 0
      %2305 = vmatprep.subr.mxu0 0.0
      %2306 = vmatpush1.msra.mxu0 0.0
      %2307 = vmatprep.subr.mxu0 0.0
      %2308 = vmatpush1.msra.mxu0 0.0
      %2309 = vmatprep.subr.mxu0 0.0
      %2310 = vmatpush1.msra.mxu0 0.0
      %2311 = vmatprep.subr.mxu0 0.0
      %2312 = vmatpush1.msra.mxu0 0.0
      %2313 = vmatprep.subr.mxu0 0.0
      %2314 = vmatpush1.msra.mxu0 0.0
      %2315 = vmatprep.subr.mxu0 0.0
      %2316 = vmatpush1.msra.mxu0 0.0
      %2317 = vmatprep.subr.mxu0 0.0
      %2318 = vmatpush1.msra.mxu0 0.0
      %2319 = vmatprep.subr.mxu0 0.0
      %2320 = vmatpush1.msra.mxu0 0.0
      %2321 = vmatprep.subr.mxu0 0.0
      %2322 = vmatpush1.msra.mxu0 0.0
      %2323 = vmatprep.subr.mxu0 0.0
      %2324 = vmatpush1.msra.mxu0 0.0
      %2325 = vmatprep.subr.mxu0 0.0
      %2326 = vmatpush1.msra.mxu0 0.0
      %2327 = vmatprep.subr.mxu0 0.0
      %2328 = vmatpush1.msra.mxu0 0.0
      %2329 = vmatprep.subr.mxu0 0.0
      %2330 = vmatpush1.msra.mxu0 %v2290
      %2331 = vmatprep.subr.mxu0 0.0
      %2332 = vmatpush1.msra.mxu0 %v2289
      %2333 = vmatprep.subr.mxu0 0.0
      %2334 = vmatpush1.msra.mxu0 %v2288
      %2335 = vmatprep.subr.mxu0 0.0
      %2336 = vmatpush1.msra.mxu0 %v2287
      %2337 = vmatprep.subr.mxu0 0.0
      %2338 = vmatpush2.msra.mxu0 0.0
      %2339 = vmatprep.subr.mxu0 0.0
      %2340 = vmatpush2.msra.mxu0 0.0
      %2341 = vmatprep.subr.mxu0 0.0
      %2342 = vmatpush2.msra.mxu0 0.0
      %2343 = vmatprep.subr.mxu0 0.0
      %2344 = vmatpush2.msra.mxu0 0.0
      %2345 = vmatprep.subr.mxu0 0.0
      %2346 = vmatpush2.msra.mxu0 0.0
      %2347 = vmatprep.subr.mxu0 0.0
      %2348 = vmatpush2.msra.mxu0 0.0
      %2349 = vmatprep.subr.mxu0 0.0
      %2350 = vmatpush2.msra.mxu0 0.0
      %2351 = vmatprep.subr.mxu0 0.0
      %2352 = vmatpush2.msra.mxu0 0.0
      %2353 = vmatprep.subr.mxu0 0.0
      %2354 = vmatpush2.msra.mxu0 0.0
      %2355 = vmatprep.subr.mxu0 0.0
      %2356 = vmatpush2.msra.mxu0 0.0
      %2357 = vmatprep.subr.mxu0 0.0
      %2358 = vmatpush2.msra.mxu0 0.0
      %2359 = vmatprep.subr.mxu0 0.0
      %2360 = vmatpush2.msra.mxu0 0.0
      %2361 = vmatprep.subr.mxu0 0.0
      %2362 = vmatpush2.msra.mxu0 0.0
      %2363 = vmatprep.subr.mxu0 0.0
      %2364 = vmatpush2.msra.mxu0 0.0
      %2365 = vmatprep.subr.mxu0 0.0
      %2366 = vmatpush2.msra.mxu0 0.0
      %2367 = vmatprep.subr.mxu0 0.0
      %2368 = vmatpush2.msra.mxu0 0.0
      %2369 = vmatprep.mubr.f32.mxu0 0.0
      %2370 = vmatmul.mubr.f32.gmra.mxu0 %v2300
      %v2371 = vpop.f32.mrf.mxu0
      %v2372 = vadd.f32 %v2297, %v2371
      %v2373 = vpop.f32.mrf.mxu0
      %2374 = vmatprep.mubr.f32.mxu0 0.0
      %2375 = vmatmul.mubr.f32.gmra.mxu0 %v2303
      %v2376 = vpop.f32.mrf.mxu0
      %v2377 = vadd.f32 %v2297, %v2376
      %v2378 = vpop.f32.mrf.mxu0
      %2379 = vdwg.mxu0
      %s2380 = scalar_lea.vmem %s13, 32
      %v2381 = vld [vmem:[%s2380] sm:$0xff]
      %v2382 = vld [vmem:[%s2380 + $0x8] sm:$0xff]
      %v2383 = vld [vmem:[%s2380 + $0x10] sm:$0xff]
      %v2384 = vld [vmem:[%s2380 + $0x18] sm:$0xff]
      %2387 = vrot.lane.b32.xlu0 %v2372, 96
      %v2388 = vpop.permute.xlu0 %2387
      %2389 = vrot.lane.b32.xlu0 %v2377, 96
      %v2390 = vpop.permute.xlu0 %2389
      %v2391 = vsel %vm1412, %v2372, 0
      %v2393 = vsel %vm1412, %v2377, 0
      %v2395 = vsel %vm1412, %v2388, 0
      %v2397 = vsel %vm1412, %v2390, 0
      %2399 = vmatprep.subr.mxu0 0.0
      %2400 = vmatpush1.xpose.msra.mxu0 0.0
      %2401 = vmatprep.subr.mxu0 0.0
      %2402 = vmatpush1.xpose.msra.mxu0 0.0
      %2403 = vmatprep.subr.mxu0 0.0
      %2404 = vmatpush1.xpose.msra.mxu0 0.0
      %2405 = vmatprep.subr.mxu0 0.0
      %2406 = vmatpush1.xpose.msra.mxu0 0.0
      %2407 = vmatprep.subr.mxu0 0.0
      %2408 = vmatpush1.xpose.msra.mxu0 0.0
      %2409 = vmatprep.subr.mxu0 0.0
      %2410 = vmatpush1.xpose.msra.mxu0 0.0
      %2411 = vmatprep.subr.mxu0 0.0
      %2412 = vmatpush1.xpose.msra.mxu0 0.0
      %2413 = vmatprep.subr.mxu0 0.0
      %2414 = vmatpush1.xpose.msra.mxu0 0.0
      %2415 = vmatprep.subr.mxu0 0.0
      %2416 = vmatpush1.xpose.msra.mxu0 0.0
      %2417 = vmatprep.subr.mxu0 0.0
      %2418 = vmatpush1.xpose.msra.mxu0 0.0
      %2419 = vmatprep.subr.mxu0 0.0
      %2420 = vmatpush1.xpose.msra.mxu0 0.0
      %2421 = vmatprep.subr.mxu0 0.0
      %2422 = vmatpush1.xpose.msra.mxu0 0.0
      %2423 = vmatprep.subr.mxu0 0.0
      %2424 = vmatpush1.xpose.msra.mxu0 0.0
      %2425 = vmatprep.subr.mxu0 0.0
      %2426 = vmatpush1.xpose.msra.mxu0 0.0
      %2427 = vmatprep.subr.mxu0 0.0
      %2428 = vmatpush1.xpose.msra.mxu0 %v2397
      %2429 = vmatprep.subr.mxu0 0.0
      %2430 = vmatpush1.xpose.msra.mxu0 %v2395
      %2431 = vmatprep.subr.mxu0 0.0
      %2432 = vmatpush2.xpose.msra.mxu0 0.0
      %2433 = vmatprep.subr.mxu0 0.0
      %2434 = vmatpush2.xpose.msra.mxu0 0.0
      %2435 = vmatprep.subr.mxu0 0.0
      %2436 = vmatpush2.xpose.msra.mxu0 0.0
      %2437 = vmatprep.subr.mxu0 0.0
      %2438 = vmatpush2.xpose.msra.mxu0 0.0
      %2439 = vmatprep.subr.mxu0 0.0
      %2440 = vmatpush2.xpose.msra.mxu0 0.0
      %2441 = vmatprep.subr.mxu0 0.0
      %2442 = vmatpush2.xpose.msra.mxu0 0.0
      %2443 = vmatprep.subr.mxu0 0.0
      %2444 = vmatpush2.xpose.msra.mxu0 0.0
      %2445 = vmatprep.subr.mxu0 0.0
      %2446 = vmatpush2.xpose.msra.mxu0 0.0
      %2447 = vmatprep.subr.mxu0 0.0
      %2448 = vmatpush2.xpose.msra.mxu0 0.0
      %2449 = vmatprep.subr.mxu0 0.0
      %2450 = vmatpush2.xpose.msra.mxu0 0.0
      %2451 = vmatprep.subr.mxu0 0.0
      %2452 = vmatpush2.xpose.msra.mxu0 0.0
      %2453 = vmatprep.subr.mxu0 0.0
      %2454 = vmatpush2.xpose.msra.mxu0 0.0
      %2455 = vmatprep.subr.mxu0 0.0
      %2456 = vmatpush2.xpose.msra.mxu0 0.0
      %2457 = vmatprep.subr.mxu0 0.0
      %2458 = vmatpush2.xpose.msra.mxu0 0.0
      %2459 = vmatprep.subr.mxu0 0.0
      %2460 = vmatpush2.xpose.msra.mxu0 0.0
      %2461 = vmatprep.subr.mxu0 0.0
      %2462 = vmatpush2.xpose.msra.mxu0 0.0
      %2463 = vmatprep.mubr.f32.mxu0 0.0
      %2464 = vmatmul.mubr.f32.gmra.mxu0 %v2391
      %v2465 = vpop.f32.mrf.mxu0
      %v2466 = vadd.f32 0.0, %v2465
      %v2467 = vpop.f32.mrf.mxu0
      %2468 = vmatprep.mubr.f32.mxu0 0.0
      %2469 = vmatmul.mubr.f32.gmra.mxu0 %v2393
      %v2470 = vpop.f32.mrf.mxu0
      %v2471 = vadd.f32 0.0, %v2470
      %v2472 = vpop.f32.mrf.mxu0
      %2473 = vdwg.mxu0
      %v2474 = vmul.f32 %v2466, 0.25
      %v2475 = vmul.f32 %v2471, 0.25
      %v2476 = vsel %vm1263, %v2474, -1e+09
      %v2477 = vsel %vm1264, %v2475, -1e+09
      %v2478 = vsel %vm1412, %v2476, -inf
      %2479 = vmax.xlane.f32.xlu0 %v2478
      %v2480 = vpop.xlane.xlu0 %2479
      %v2481 = vsel %vm1412, %v2477, -inf
      %2482 = vmax.xlane.f32.xlu0 %v2481
      %v2483 = vpop.xlane.xlu0 %2482
      %v2484 = vsub.f32 %v2476, %v2480
      %v2485 = vsub.f32 %v2477, %v2483
      %v2486 = vmul.f32 %v2484, 1.442695
      %v2487 = vpow.pop %v2486
      %v2488 = vmul.f32 %v2485, 1.442695
      %v2489 = vpow.pop %v2488
      %v2490 = vsel %vm1412, %v2487, 0.0
      %2491 = vadd.xlane.f32.xlu0 %v2490
      %v2492 = vpop.xlane.xlu0 %2491
      %v2493 = vsel %vm1412, %v2489, 0.0
      %2494 = vadd.xlane.f32.xlu0 %v2493
      %v2495 = vpop.xlane.xlu0 %2494
      %v2496 = vrcp.pop %v2492
      %v2497 = vrcp.pop %v2495
      %v2498 = vmul.f32 %v2487, %v2496
      %v2499 = vmul.f32 %v2489, %v2497
      %2500 = vrot.lane.b32.xlu0 %v2372, 64
      %v2501 = vpop.permute.xlu0 %2500
      %2502 = vrot.lane.b32.xlu0 %v2377, 64
      %v2503 = vpop.permute.xlu0 %2502
      %v2507 = vsel %vm1412, %v2498, 0
      %v2510 = vsel %vm1412, %v2499, 0
      %2512 = vmatprep.subr.mxu0 0.0
      %2513 = vmatpush1.msra.mxu0 0.0
      %2514 = vmatprep.subr.mxu0 0.0
      %2515 = vmatpush1.msra.mxu0 0.0
      %2516 = vmatprep.subr.mxu0 0.0
      %2517 = vmatpush1.msra.mxu0 0.0
      %2518 = vmatprep.subr.mxu0 0.0
      %2519 = vmatpush1.msra.mxu0 0.0
      %2520 = vmatprep.subr.mxu0 0.0
      %2521 = vmatpush1.msra.mxu0 0.0
      %2522 = vmatprep.subr.mxu0 0.0
      %2523 = vmatpush1.msra.mxu0 0.0
      %2524 = vmatprep.subr.mxu0 0.0
      %2525 = vmatpush1.msra.mxu0 0.0
      %2526 = vmatprep.subr.mxu0 0.0
      %2527 = vmatpush1.msra.mxu0 0.0
      %2528 = vmatprep.subr.mxu0 0.0
      %2529 = vmatpush1.msra.mxu0 0.0
      %2530 = vmatprep.subr.mxu0 0.0
      %2531 = vmatpush1.msra.mxu0 0.0
      %2532 = vmatprep.subr.mxu0 0.0
      %2533 = vmatpush1.msra.mxu0 0.0
      %2534 = vmatprep.subr.mxu0 0.0
      %2535 = vmatpush1.msra.mxu0 0.0
      %2536 = vmatprep.subr.mxu0 0.0
      %2537 = vmatpush1.msra.mxu0 0.0
      %2538 = vmatprep.subr.mxu0 0.0
      %2539 = vmatpush1.msra.mxu0 0.0
      %2540 = vmatprep.subr.mxu0 0.0
      %2541 = vmatpush1.msra.mxu0 %v2503
      %2542 = vmatprep.subr.mxu0 0.0
      %2543 = vmatpush1.msra.mxu0 %v2501
      %2544 = vmatprep.subr.mxu0 0.0
      %2545 = vmatpush2.msra.mxu0 0.0
      %2546 = vmatprep.subr.mxu0 0.0
      %2547 = vmatpush2.msra.mxu0 0.0
      %2548 = vmatprep.subr.mxu0 0.0
      %2549 = vmatpush2.msra.mxu0 0.0
      %2550 = vmatprep.subr.mxu0 0.0
      %2551 = vmatpush2.msra.mxu0 0.0
      %2552 = vmatprep.subr.mxu0 0.0
      %2553 = vmatpush2.msra.mxu0 0.0
      %2554 = vmatprep.subr.mxu0 0.0
      %2555 = vmatpush2.msra.mxu0 0.0
      %2556 = vmatprep.subr.mxu0 0.0
      %2557 = vmatpush2.msra.mxu0 0.0
      %2558 = vmatprep.subr.mxu0 0.0
      %2559 = vmatpush2.msra.mxu0 0.0
      %2560 = vmatprep.subr.mxu0 0.0
      %2561 = vmatpush2.msra.mxu0 0.0
      %2562 = vmatprep.subr.mxu0 0.0
      %2563 = vmatpush2.msra.mxu0 0.0
      %2564 = vmatprep.subr.mxu0 0.0
      %2565 = vmatpush2.msra.mxu0 0.0
      %2566 = vmatprep.subr.mxu0 0.0
      %2567 = vmatpush2.msra.mxu0 0.0
      %2568 = vmatprep.subr.mxu0 0.0
      %2569 = vmatpush2.msra.mxu0 0.0
      %2570 = vmatprep.subr.mxu0 0.0
      %2571 = vmatpush2.msra.mxu0 0.0
      %2572 = vmatprep.subr.mxu0 0.0
      %2573 = vmatpush2.msra.mxu0 0.0
      %2574 = vmatprep.subr.mxu0 0.0
      %2575 = vmatpush2.msra.mxu0 0.0
      %2576 = vmatprep.mubr.f32.mxu0 0.0
      %2577 = vmatmul.mubr.f32.gmra.mxu0 %v2507
      %v2578 = vpop.f32.mrf.mxu0
      %v2579 = vadd.f32 0.0, %v2578
      %v2580 = vpop.f32.mrf.mxu0
      %2581 = vmatprep.mubr.f32.mxu0 0.0
      %2582 = vmatmul.mubr.f32.gmra.mxu0 %v2510
      %v2583 = vpop.f32.mrf.mxu0
      %v2584 = vadd.f32 0.0, %v2583
      %v2585 = vpop.f32.mrf.mxu0
      %2586 = vdwg.mxu0
      %2587 = vrot.lane.b32.xlu0 %v2372, 112
      %v2588 = vpop.permute.xlu0 %2587
      %2589 = vrot.lane.b32.xlu0 %v2377, 112
      %v2590 = vpop.permute.xlu0 %2589
      %2591 = vrot.lane.b32.xlu0 %v2372, 80
      %v2592 = vpop.permute.xlu0 %2591
      %2593 = vrot.lane.b32.xlu0 %v2377, 80
      %v2594 = vpop.permute.xlu0 %2593
      %v2595 = vsel %vm1412, %v2588, 0
      %v2597 = vsel %vm1412, %v2590, 0
      %v2599 = vsel %vm1412, %v2592, 0
      %v2601 = vsel %vm1412, %v2594, 0
      %2603 = vmatprep.subr.mxu0 0.0
      %2604 = vmatpush1.xpose.msra.mxu0 0.0
      %2605 = vmatprep.subr.mxu0 0.0
      %2606 = vmatpush1.xpose.msra.mxu0 0.0
      %2607 = vmatprep.subr.mxu0 0.0
      %2608 = vmatpush1.xpose.msra.mxu0 0.0
      %2609 = vmatprep.subr.mxu0 0.0
      %2610 = vmatpush1.xpose.msra.mxu0 0.0
      %2611 = vmatprep.subr.mxu0 0.0
      %2612 = vmatpush1.xpose.msra.mxu0 0.0
      %2613 = vmatprep.subr.mxu0 0.0
      %2614 = vmatpush1.xpose.msra.mxu0 0.0
      %2615 = vmatprep.subr.mxu0 0.0
      %2616 = vmatpush1.xpose.msra.mxu0 0.0
      %2617 = vmatprep.subr.mxu0 0.0
      %2618 = vmatpush1.xpose.msra.mxu0 0.0
      %2619 = vmatprep.subr.mxu0 0.0
      %2620 = vmatpush1.xpose.msra.mxu0 0.0
      %2621 = vmatprep.subr.mxu0 0.0
      %2622 = vmatpush1.xpose.msra.mxu0 0.0
      %2623 = vmatprep.subr.mxu0 0.0
      %2624 = vmatpush1.xpose.msra.mxu0 0.0
      %2625 = vmatprep.subr.mxu0 0.0
      %2626 = vmatpush1.xpose.msra.mxu0 0.0
      %2627 = vmatprep.subr.mxu0 0.0
      %2628 = vmatpush1.xpose.msra.mxu0 0.0
      %2629 = vmatprep.subr.mxu0 0.0
      %2630 = vmatpush1.xpose.msra.mxu0 0.0
      %2631 = vmatprep.subr.mxu0 0.0
      %2632 = vmatpush1.xpose.msra.mxu0 %v2601
      %2633 = vmatprep.subr.mxu0 0.0
      %2634 = vmatpush1.xpose.msra.mxu0 %v2599
      %2635 = vmatprep.subr.mxu0 0.0
      %2636 = vmatpush2.xpose.msra.mxu0 0.0
      %2637 = vmatprep.subr.mxu0 0.0
      %2638 = vmatpush2.xpose.msra.mxu0 0.0
      %2639 = vmatprep.subr.mxu0 0.0
      %2640 = vmatpush2.xpose.msra.mxu0 0.0
      %2641 = vmatprep.subr.mxu0 0.0
      %2642 = vmatpush2.xpose.msra.mxu0 0.0
      %2643 = vmatprep.subr.mxu0 0.0
      %2644 = vmatpush2.xpose.msra.mxu0 0.0
      %2645 = vmatprep.subr.mxu0 0.0
      %2646 = vmatpush2.xpose.msra.mxu0 0.0
      %2647 = vmatprep.subr.mxu0 0.0
      %2648 = vmatpush2.xpose.msra.mxu0 0.0
      %2649 = vmatprep.subr.mxu0 0.0
      %2650 = vmatpush2.xpose.msra.mxu0 0.0
      %2651 = vmatprep.subr.mxu0 0.0
      %2652 = vmatpush2.xpose.msra.mxu0 0.0
      %2653 = vmatprep.subr.mxu0 0.0
      %2654 = vmatpush2.xpose.msra.mxu0 0.0
      %2655 = vmatprep.subr.mxu0 0.0
      %2656 = vmatpush2.xpose.msra.mxu0 0.0
      %2657 = vmatprep.subr.mxu0 0.0
      %2658 = vmatpush2.xpose.msra.mxu0 0.0
      %2659 = vmatprep.subr.mxu0 0.0
      %2660 = vmatpush2.xpose.msra.mxu0 0.0
      %2661 = vmatprep.subr.mxu0 0.0
      %2662 = vmatpush2.xpose.msra.mxu0 0.0
      %2663 = vmatprep.subr.mxu0 0.0
      %2664 = vmatpush2.xpose.msra.mxu0 0.0
      %2665 = vmatprep.subr.mxu0 0.0
      %2666 = vmatpush2.xpose.msra.mxu0 0.0
      %2667 = vmatprep.mubr.f32.mxu0 0.0
      %2668 = vmatmul.mubr.f32.gmra.mxu0 %v2595
      %v2669 = vpop.f32.mrf.mxu0
      %v2670 = vadd.f32 0.0, %v2669
      %v2671 = vpop.f32.mrf.mxu0
      %2672 = vmatprep.mubr.f32.mxu0 0.0
      %2673 = vmatmul.mubr.f32.gmra.mxu0 %v2597
      %v2674 = vpop.f32.mrf.mxu0
      %v2675 = vadd.f32 0.0, %v2674
      %v2676 = vpop.f32.mrf.mxu0
      %2677 = vdwg.mxu0
      %v2678 = vmul.f32 %v2670, 0.25
      %v2679 = vmul.f32 %v2675, 0.25
      %v2680 = vsel %vm1263, %v2678, -1e+09
      %v2681 = vsel %vm1264, %v2679, -1e+09
      %v2682 = vsel %vm1412, %v2680, -inf
      %2683 = vmax.xlane.f32.xlu0 %v2682
      %v2684 = vpop.xlane.xlu0 %2683
      %v2685 = vsel %vm1412, %v2681, -inf
      %2686 = vmax.xlane.f32.xlu0 %v2685
      %v2687 = vpop.xlane.xlu0 %2686
      %v2688 = vsub.f32 %v2680, %v2684
      %v2689 = vsub.f32 %v2681, %v2687
      %v2690 = vmul.f32 %v2688, 1.442695
      %v2691 = vpow.pop %v2690
      %v2692 = vmul.f32 %v2689, 1.442695
      %v2693 = vpow.pop %v2692
      %v2694 = vsel %vm1412, %v2691, 0.0
      %2695 = vadd.xlane.f32.xlu0 %v2694
      %v2696 = vpop.xlane.xlu0 %2695
      %v2697 = vsel %vm1412, %v2693, 0.0
      %2698 = vadd.xlane.f32.xlu0 %v2697
      %v2699 = vpop.xlane.xlu0 %2698
      %v2700 = vrcp.pop %v2696
      %v2701 = vrcp.pop %v2699
      %v2702 = vmul.f32 %v2691, %v2700
      %v2703 = vmul.f32 %v2693, %v2701
      %2704 = vrot.lane.b32.xlu0 %v2372, 48
      %v2705 = vpop.permute.xlu0 %2704
      %2706 = vrot.lane.b32.xlu0 %v2377, 48
      %v2707 = vpop.permute.xlu0 %2706
      %v2711 = vsel %vm1412, %v2702, 0
      %v2714 = vsel %vm1412, %v2703, 0
      %2716 = vmatprep.subr.mxu0 0.0
      %2717 = vmatpush1.msra.mxu0 0.0
      %2718 = vmatprep.subr.mxu0 0.0
      %2719 = vmatpush1.msra.mxu0 0.0
      %2720 = vmatprep.subr.mxu0 0.0
      %2721 = vmatpush1.msra.mxu0 0.0
      %2722 = vmatprep.subr.mxu0 0.0
      %2723 = vmatpush1.msra.mxu0 0.0
      %2724 = vmatprep.subr.mxu0 0.0
      %2725 = vmatpush1.msra.mxu0 0.0
      %2726 = vmatprep.subr.mxu0 0.0
      %2727 = vmatpush1.msra.mxu0 0.0
      %2728 = vmatprep.subr.mxu0 0.0
      %2729 = vmatpush1.msra.mxu0 0.0
      %2730 = vmatprep.subr.mxu0 0.0
      %2731 = vmatpush1.msra.mxu0 0.0
      %2732 = vmatprep.subr.mxu0 0.0
      %2733 = vmatpush1.msra.mxu0 0.0
      %2734 = vmatprep.subr.mxu0 0.0
      %2735 = vmatpush1.msra.mxu0 0.0
      %2736 = vmatprep.subr.mxu0 0.0
      %2737 = vmatpush1.msra.mxu0 0.0
      %2738 = vmatprep.subr.mxu0 0.0
      %2739 = vmatpush1.msra.mxu0 0.0
      %2740 = vmatprep.subr.mxu0 0.0
      %2741 = vmatpush1.msra.mxu0 0.0
      %2742 = vmatprep.subr.mxu0 0.0
      %2743 = vmatpush1.msra.mxu0 0.0
      %2744 = vmatprep.subr.mxu0 0.0
      %2745 = vmatpush1.msra.mxu0 %v2707
      %2746 = vmatprep.subr.mxu0 0.0
      %2747 = vmatpush1.msra.mxu0 %v2705
      %2748 = vmatprep.subr.mxu0 0.0
      %2749 = vmatpush2.msra.mxu0 0.0
      %2750 = vmatprep.subr.mxu0 0.0
      %2751 = vmatpush2.msra.mxu0 0.0
      %2752 = vmatprep.subr.mxu0 0.0
      %2753 = vmatpush2.msra.mxu0 0.0
      %2754 = vmatprep.subr.mxu0 0.0
      %2755 = vmatpush2.msra.mxu0 0.0
      %2756 = vmatprep.subr.mxu0 0.0
      %2757 = vmatpush2.msra.mxu0 0.0
      %2758 = vmatprep.subr.mxu0 0.0
      %2759 = vmatpush2.msra.mxu0 0.0
      %2760 = vmatprep.subr.mxu0 0.0
      %2761 = vmatpush2.msra.mxu0 0.0
      %2762 = vmatprep.subr.mxu0 0.0
      %2763 = vmatpush2.msra.mxu0 0.0
      %2764 = vmatprep.subr.mxu0 0.0
      %2765 = vmatpush2.msra.mxu0 0.0
      %2766 = vmatprep.subr.mxu0 0.0
      %2767 = vmatpush2.msra.mxu0 0.0
      %2768 = vmatprep.subr.mxu0 0.0
      %2769 = vmatpush2.msra.mxu0 0.0
      %2770 = vmatprep.subr.mxu0 0.0
      %2771 = vmatpush2.msra.mxu0 0.0
      %2772 = vmatprep.subr.mxu0 0.0
      %2773 = vmatpush2.msra.mxu0 0.0
      %2774 = vmatprep.subr.mxu0 0.0
      %2775 = vmatpush2.msra.mxu0 0.0
      %2776 = vmatprep.subr.mxu0 0.0
      %2777 = vmatpush2.msra.mxu0 0.0
      %2778 = vmatprep.subr.mxu0 0.0
      %2779 = vmatpush2.msra.mxu0 0.0
      %2780 = vmatprep.mubr.f32.mxu0 0.0
      %2781 = vmatmul.mubr.f32.gmra.mxu0 %v2711
      %v2782 = vpop.f32.mrf.mxu0
      %v2783 = vadd.f32 0.0, %v2782
      %v2784 = vpop.f32.mrf.mxu0
      %2785 = vmatprep.mubr.f32.mxu0 0.0
      %2786 = vmatmul.mubr.f32.gmra.mxu0 %v2714
      %v2787 = vpop.f32.mrf.mxu0
      %v2788 = vadd.f32 0.0, %v2787
      %v2789 = vpop.f32.mrf.mxu0
      %2790 = vdwg.mxu0
      %v2792 = vsel %vm1412, %v2783, 0
      %v2795 = vsel %vm1412, %v2788, 0
      %2797 = vmatprep.subr.mxu0 0.0
      %2798 = vmatpush1.msra.mxu0 0.0
      %2799 = vmatprep.subr.mxu0 0.0
      %2800 = vmatpush1.msra.mxu0 0.0
      %2801 = vmatprep.subr.mxu0 0.0
      %2802 = vmatpush1.msra.mxu0 0.0
      %2803 = vmatprep.subr.mxu0 0.0
      %2804 = vmatpush1.msra.mxu0 0.0
      %2805 = vmatprep.subr.mxu0 0.0
      %2806 = vmatpush1.msra.mxu0 0.0
      %2807 = vmatprep.subr.mxu0 0.0
      %2808 = vmatpush1.msra.mxu0 0.0
      %2809 = vmatprep.subr.mxu0 0.0
      %2810 = vmatpush1.msra.mxu0 0.0
      %2811 = vmatprep.subr.mxu0 0.0
      %2812 = vmatpush1.msra.mxu0 0.0
      %2813 = vmatprep.subr.mxu0 0.0
      %2814 = vmatpush1.msra.mxu0 0.0
      %2815 = vmatprep.subr.mxu0 0.0
      %2816 = vmatpush1.msra.mxu0 0.0
      %2817 = vmatprep.subr.mxu0 0.0
      %2818 = vmatpush1.msra.mxu0 0.0
      %2819 = vmatprep.subr.mxu0 0.0
      %2820 = vmatpush1.msra.mxu0 0.0
      %2821 = vmatprep.subr.mxu0 0.0
      %2822 = vmatpush1.msra.mxu0 0.0
      %2823 = vmatprep.subr.mxu0 0.0
      %2824 = vmatpush1.msra.mxu0 0.0
      %2825 = vmatprep.subr.mxu0 0.0
      %2826 = vmatpush1.msra.mxu0 %v2384
      %2827 = vmatprep.subr.mxu0 0.0
      %2828 = vmatpush1.msra.mxu0 %v2383
      %2829 = vmatprep.subr.mxu0 0.0
      %2830 = vmatpush2.msra.mxu0 0.0
      %2831 = vmatprep.subr.mxu0 0.0
      %2832 = vmatpush2.msra.mxu0 0.0
      %2833 = vmatprep.subr.mxu0 0.0
      %2834 = vmatpush2.msra.mxu0 0.0
      %2835 = vmatprep.subr.mxu0 0.0
      %2836 = vmatpush2.msra.mxu0 0.0
      %2837 = vmatprep.subr.mxu0 0.0
      %2838 = vmatpush2.msra.mxu0 0.0
      %2839 = vmatprep.subr.mxu0 0.0
      %2840 = vmatpush2.msra.mxu0 0.0
      %2841 = vmatprep.subr.mxu0 0.0
      %2842 = vmatpush2.msra.mxu0 0.0
      %2843 = vmatprep.subr.mxu0 0.0
      %2844 = vmatpush2.msra.mxu0 0.0
      %2845 = vmatprep.subr.mxu0 0.0
      %2846 = vmatpush2.msra.mxu0 0.0
      %2847 = vmatprep.subr.mxu0 0.0
      %2848 = vmatpush2.msra.mxu0 0.0
      %2849 = vmatprep.subr.mxu0 0.0
      %2850 = vmatpush2.msra.mxu0 0.0
      %2851 = vmatprep.subr.mxu0 0.0
      %2852 = vmatpush2.msra.mxu0 0.0
      %2853 = vmatprep.subr.mxu0 0.0
      %2854 = vmatpush2.msra.mxu0 0.0
      %2855 = vmatprep.subr.mxu0 0.0
      %2856 = vmatpush2.msra.mxu0 0.0
      %2857 = vmatprep.subr.mxu0 0.0
      %2858 = vmatpush2.msra.mxu0 0.0
      %2859 = vmatprep.subr.mxu0 0.0
      %2860 = vmatpush2.msra.mxu0 0.0
      %2861 = vmatprep.mubr.f32.mxu0 0.0
      %2862 = vmatmul.mubr.f32.gmra.mxu0 %v2792
      %v2863 = vpop.f32.mrf.mxu0
      %v2864 = vadd.f32 0.0, %v2863
      %v2865 = vpop.f32.mrf.mxu0
      %2866 = vmatprep.mubr.f32.mxu0 0.0
      %2867 = vmatmul.mubr.f32.gmra.mxu0 %v2795
      %v2868 = vpop.f32.mrf.mxu0
      %v2869 = vadd.f32 0.0, %v2868
      %v2870 = vpop.f32.mrf.mxu0
      %2871 = vdwg.mxu0
      %v2873 = vsel %vm1412, %v2579, 0
      %v2876 = vsel %vm1412, %v2584, 0
      %2878 = vmatprep.subr.mxu0 0.0
      %2879 = vmatpush1.msra.mxu0 0.0
      %2880 = vmatprep.subr.mxu0 0.0
      %2881 = vmatpush1.msra.mxu0 0.0
      %2882 = vmatprep.subr.mxu0 0.0
      %2883 = vmatpush1.msra.mxu0 0.0
      %2884 = vmatprep.subr.mxu0 0.0
      %2885 = vmatpush1.msra.mxu0 0.0
      %2886 = vmatprep.subr.mxu0 0.0
      %2887 = vmatpush1.msra.mxu0 0.0
      %2888 = vmatprep.subr.mxu0 0.0
      %2889 = vmatpush1.msra.mxu0 0.0
      %2890 = vmatprep.subr.mxu0 0.0
      %2891 = vmatpush1.msra.mxu0 0.0
      %2892 = vmatprep.subr.mxu0 0.0
      %2893 = vmatpush1.msra.mxu0 0.0
      %2894 = vmatprep.subr.mxu0 0.0
      %2895 = vmatpush1.msra.mxu0 0.0
      %2896 = vmatprep.subr.mxu0 0.0
      %2897 = vmatpush1.msra.mxu0 0.0
      %2898 = vmatprep.subr.mxu0 0.0
      %2899 = vmatpush1.msra.mxu0 0.0
      %2900 = vmatprep.subr.mxu0 0.0
      %2901 = vmatpush1.msra.mxu0 0.0
      %2902 = vmatprep.subr.mxu0 0.0
      %2903 = vmatpush1.msra.mxu0 0.0
      %2904 = vmatprep.subr.mxu0 0.0
      %2905 = vmatpush1.msra.mxu0 0.0
      %2906 = vmatprep.subr.mxu0 0.0
      %2907 = vmatpush1.msra.mxu0 %v2382
      %2908 = vmatprep.subr.mxu0 0.0
      %2909 = vmatpush1.msra.mxu0 %v2381
      %2910 = vmatprep.subr.mxu0 0.0
      %2911 = vmatpush2.msra.mxu0 0.0
      %2912 = vmatprep.subr.mxu0 0.0
      %2913 = vmatpush2.msra.mxu0 0.0
      %2914 = vmatprep.subr.mxu0 0.0
      %2915 = vmatpush2.msra.mxu0 0.0
      %2916 = vmatprep.subr.mxu0 0.0
      %2917 = vmatpush2.msra.mxu0 0.0
      %2918 = vmatprep.subr.mxu0 0.0
      %2919 = vmatpush2.msra.mxu0 0.0
      %2920 = vmatprep.subr.mxu0 0.0
      %2921 = vmatpush2.msra.mxu0 0.0
      %2922 = vmatprep.subr.mxu0 0.0
      %2923 = vmatpush2.msra.mxu0 0.0
      %2924 = vmatprep.subr.mxu0 0.0
      %2925 = vmatpush2.msra.mxu0 0.0
      %2926 = vmatprep.subr.mxu0 0.0
      %2927 = vmatpush2.msra.mxu0 0.0
      %2928 = vmatprep.subr.mxu0 0.0
      %2929 = vmatpush2.msra.mxu0 0.0
      %2930 = vmatprep.subr.mxu0 0.0
      %2931 = vmatpush2.msra.mxu0 0.0
      %2932 = vmatprep.subr.mxu0 0.0
      %2933 = vmatpush2.msra.mxu0 0.0
      %2934 = vmatprep.subr.mxu0 0.0
      %2935 = vmatpush2.msra.mxu0 0.0
      %2936 = vmatprep.subr.mxu0 0.0
      %2937 = vmatpush2.msra.mxu0 0.0
      %2938 = vmatprep.subr.mxu0 0.0
      %2939 = vmatpush2.msra.mxu0 0.0
      %2940 = vmatprep.subr.mxu0 0.0
      %2941 = vmatpush2.msra.mxu0 0.0
      %2942 = vmatprep.mubr.f32.mxu0 0.0
      %2943 = vmatmul.mubr.f32.gmra.mxu0 %v2873
      %v2944 = vpop.f32.mrf.mxu0
      %v2945 = vadd.f32 %v2864, %v2944
      %v2946 = vpop.f32.mrf.mxu0
      %2947 = vmatprep.mubr.f32.mxu0 0.0
      %2948 = vmatmul.mubr.f32.gmra.mxu0 %v2876
      %v2949 = vpop.f32.mrf.mxu0
      %v2950 = vadd.f32 %v2869, %v2949
      %v2951 = vpop.f32.mrf.mxu0
      %2952 = vdwg.mxu0
      %s2953 = scalar_lea.vmem %s14, 1
      %v2954 = vld [vmem:[%s2953] sm:$0x1]
      %v2956 = vlaneseq
      %v2957 = vshrl.u32 %v2956, 7
      %v2958 = vsub.s32 0, %v2957
      %v2959 = vrot.slane %v2954, %v2958
      %v2961 = vadd.f32 %v2945, %v2959
      %v2962 = vadd.f32 %v2950, %v2959
      %v2963 = vadd.f32 %v2961, %v2238
      %v2964 = vadd.f32 %v2962, %v2239
      %s2965 = scalar_lea.vmem %s15, 1
      %v2966 = vld [vmem:[%s2965] sm:$0x1]
      %s2967 = scalar_lea.vmem %s16, 1
      %v2968 = vld [vmem:[%s2967] sm:$0x1]
      %v2969 = vsel %vm734, %v2963, 0.0
      %2970 = vadd.xlane.f32.xlu0 %v2969
      %v2971 = vpop.xlane.xlu0 %2970
      %v2972 = vsel %vm734, %v2964, 0.0
      %2973 = vadd.xlane.f32.xlu0 %v2972
      %v2974 = vpop.xlane.xlu0 %2973
      %v2975 = vmul.f32 %v2971, %v1273
      %v2976 = vmul.f32 %v2974, %v1273
      %v2977 = vsub.f32 %v2963, %v2975
      %v2978 = vsub.f32 %v2964, %v2976
      %v2979 = vmul.f32 %v2977, %v2977
      %v2980 = vmul.f32 %v2978, %v2978
      %v2981 = vsel %vm734, %v2979, 0.0
      %2982 = vadd.xlane.f32.xlu0 %v2981
      %v2983 = vpop.xlane.xlu0 %2982
      %v2984 = vsel %vm734, %v2980, 0.0
      %2985 = vadd.xlane.f32.xlu0 %v2984
      %v2986 = vpop.xlane.xlu0 %2985
      %v2987 = vmul.f32 %v2983, %v1273
      %v2988 = vmul.f32 %v2986, %v1273
      %v2989 = vadd.f32 %v2987, 1e-05
      %v2990 = vadd.f32 %v2988, 1e-05
      %v2991 = vrsqrt.pop %v2989
      %v2992 = vrsqrt.pop %v2990
      %v2993 = vmul.f32 %v2977, %v2991
      %v2994 = vmul.f32 %v2978, %v2992
      %v2996 = vlaneseq
      %v2997 = vshrl.u32 %v2996, 7
      %v2998 = vsub.s32 0, %v2997
      %v2999 = vrot.slane %v2966, %v2998
      %v3001 = vmul.f32 %v2993, %v2999
      %v3002 = vmul.f32 %v2994, %v2999
      %v3004 = vlaneseq
      %v3005 = vshrl.u32 %v3004, 7
      %v3006 = vsub.s32 0, %v3005
      %v3007 = vrot.slane %v2968, %v3006
      %v3009 = vadd.f32 %v3001, %v3007
      %v3010 = vadd.f32 %v3002, %v3007
      %s3011 = scalar_lea.vmem %s17, 32
      %v3012 = vld [vmem:[%s3011] sm:$0xff]
      %v3013 = vld [vmem:[%s3011 + $0x8] sm:$0xff]
      %v3014 = vld [vmem:[%s3011 + $0x10] sm:$0xff]
      %v3015 = vld [vmem:[%s3011 + $0x18] sm:$0xff]
      %s3016 = scalar_lea.vmem %s18, 1
      %v3017 = vld [vmem:[%s3016] sm:$0x1]
      %v3019 = vlaneseq
      %v3020 = vshrl.u32 %v3019, 7
      %v3021 = vsub.s32 0, %v3020
      %v3022 = vrot.slane %v3017, %v3021
      %v3025 = vsel %vm734, %v3009, 0
      %v3028 = vsel %vm734, %v3010, 0
      %3030 = vmatprep.subr.mxu0 0.0
      %3031 = vmatpush1.msra.mxu0 0.0
      %3032 = vmatprep.subr.mxu0 0.0
      %3033 = vmatpush1.msra.mxu0 0.0
      %3034 = vmatprep.subr.mxu0 0.0
      %3035 = vmatpush1.msra.mxu0 0.0
      %3036 = vmatprep.subr.mxu0 0.0
      %3037 = vmatpush1.msra.mxu0 0.0
      %3038 = vmatprep.subr.mxu0 0.0
      %3039 = vmatpush1.msra.mxu0 0.0
      %3040 = vmatprep.subr.mxu0 0.0
      %3041 = vmatpush1.msra.mxu0 0.0
      %3042 = vmatprep.subr.mxu0 0.0
      %3043 = vmatpush1.msra.mxu0 0.0
      %3044 = vmatprep.subr.mxu0 0.0
      %3045 = vmatpush1.msra.mxu0 0.0
      %3046 = vmatprep.subr.mxu0 0.0
      %3047 = vmatpush1.msra.mxu0 0.0
      %3048 = vmatprep.subr.mxu0 0.0
      %3049 = vmatpush1.msra.mxu0 0.0
      %3050 = vmatprep.subr.mxu0 0.0
      %3051 = vmatpush1.msra.mxu0 0.0
      %3052 = vmatprep.subr.mxu0 0.0
      %3053 = vmatpush1.msra.mxu0 0.0
      %3054 = vmatprep.subr.mxu0 0.0
      %3055 = vmatpush1.msra.mxu0 %v3015
      %3056 = vmatprep.subr.mxu0 0.0
      %3057 = vmatpush1.msra.mxu0 %v3014
      %3058 = vmatprep.subr.mxu0 0.0
      %3059 = vmatpush1.msra.mxu0 %v3013
      %3060 = vmatprep.subr.mxu0 0.0
      %3061 = vmatpush1.msra.mxu0 %v3012
      %3062 = vmatprep.subr.mxu0 0.0
      %3063 = vmatpush2.msra.mxu0 0.0
      %3064 = vmatprep.subr.mxu0 0.0
      %3065 = vmatpush2.msra.mxu0 0.0
      %3066 = vmatprep.subr.mxu0 0.0
      %3067 = vmatpush2.msra.mxu0 0.0
      %3068 = vmatprep.subr.mxu0 0.0
      %3069 = vmatpush2.msra.mxu0 0.0
      %3070 = vmatprep.subr.mxu0 0.0
      %3071 = vmatpush2.msra.mxu0 0.0
      %3072 = vmatprep.subr.mxu0 0.0
      %3073 = vmatpush2.msra.mxu0 0.0
      %3074 = vmatprep.subr.mxu0 0.0
      %3075 = vmatpush2.msra.mxu0 0.0
      %3076 = vmatprep.subr.mxu0 0.0
      %3077 = vmatpush2.msra.mxu0 0.0
      %3078 = vmatprep.subr.mxu0 0.0
      %3079 = vmatpush2.msra.mxu0 0.0
      %3080 = vmatprep.subr.mxu0 0.0
      %3081 = vmatpush2.msra.mxu0 0.0
      %3082 = vmatprep.subr.mxu0 0.0
      %3083 = vmatpush2.msra.mxu0 0.0
      %3084 = vmatprep.subr.mxu0 0.0
      %3085 = vmatpush2.msra.mxu0 0.0
      %3086 = vmatprep.subr.mxu0 0.0
      %3087 = vmatpush2.msra.mxu0 0.0
      %3088 = vmatprep.subr.mxu0 0.0
      %3089 = vmatpush2.msra.mxu0 0.0
      %3090 = vmatprep.subr.mxu0 0.0
      %3091 = vmatpush2.msra.mxu0 0.0
      %3092 = vmatprep.subr.mxu0 0.0
      %3093 = vmatpush2.msra.mxu0 0.0
      %3094 = vmatprep.mubr.f32.mxu0 0.0
      %3095 = vmatmul.mubr.f32.gmra.mxu0 %v3025
      %v3096 = vpop.f32.mrf.mxu0
      %v3097 = vadd.f32 %v3022, %v3096
      %v3098 = vpop.f32.mrf.mxu0
      %3099 = vmatprep.mubr.f32.mxu0 0.0
      %3100 = vmatmul.mubr.f32.gmra.mxu0 %v3028
      %v3101 = vpop.f32.mrf.mxu0
      %v3102 = vadd.f32 %v3022, %v3101
      %v3103 = vpop.f32.mrf.mxu0
      %3104 = vdwg.mxu0
      %v3105 = vmul.f32 %v3097, 0.5
      %v3106 = vmul.f32 %v3102, 0.5
      %v3107 = vmul.f32 %v3097, 0.044715
      %v3108 = vmul.f32 %v3102, 0.044715
      %v3109 = vmul.f32 %v3107, %v3097
      %v3110 = vmul.f32 %v3108, %v3102
      %v3111 = vmul.f32 %v3109, %v3097
      %v3112 = vmul.f32 %v3110, %v3102
      %v3113 = vadd.f32 %v3097, %v3111
      %v3114 = vadd.f32 %v3102, %v3112
      %v3115 = vmul.f32 %v3113, 0.7978846
      %v3116 = vmul.f32 %v3114, 0.7978846
      %v3117 = vtanh.pop %v3115
      %v3118 = vtanh.pop %v3116
      %v3119 = vadd.f32 %v3117, 1.0
      %v3120 = vadd.f32 %v3118, 1.0
      %v3121 = vmul.f32 %v3105, %v3119
      %v3122 = vmul.f32 %v3106, %v3120
      %s3123 = scalar_lea.vmem %s19, 128
      %v3124 = vld [vmem:[%s3123] sm:$0xff]
      %v3125 = vld [vmem:[%s3123 + $0x8] sm:$0xff]
      %v3126 = vld [vmem:[%s3123 + $0x10] sm:$0xff]
      %v3127 = vld [vmem:[%s3123 + $0x18] sm:$0xff]
      %v3128 = vld [vmem:[%s3123 + $0x20] sm:$0xff]
      %v3129 = vld [vmem:[%s3123 + $0x28] sm:$0xff]
      %v3130 = vld [vmem:[%s3123 + $0x30] sm:$0xff]
      %v3131 = vld [vmem:[%s3123 + $0x38] sm:$0xff]
      %v3132 = vld [vmem:[%s3123 + $0x40] sm:$0xff]
      %v3133 = vld [vmem:[%s3123 + $0x48] sm:$0xff]
      %v3134 = vld [vmem:[%s3123 + $0x50] sm:$0xff]
      %v3135 = vld [vmem:[%s3123 + $0x58] sm:$0xff]
      %v3136 = vld [vmem:[%s3123 + $0x60] sm:$0xff]
      %v3137 = vld [vmem:[%s3123 + $0x68] sm:$0xff]
      %v3138 = vld [vmem:[%s3123 + $0x70] sm:$0xff]
      %v3139 = vld [vmem:[%s3123 + $0x78] sm:$0xff]
      %s3140 = scalar_lea.vmem %s20, 1
      %v3141 = vld [vmem:[%s3140] sm:$0x1]
      %v3143 = vlaneseq
      %v3144 = vshrl.u32 %v3143, 7
      %v3145 = vsub.s32 0, %v3144
      %v3146 = vrot.slane %v3141, %v3145
      %3148 = vmatprep.subr.mxu0 0.0
      %3149 = vmatpush1.msra.mxu0 %v3139
      %3150 = vmatprep.subr.mxu0 0.0
      %3151 = vmatpush1.msra.mxu0 %v3138
      %3152 = vmatprep.subr.mxu0 0.0
      %3153 = vmatpush1.msra.mxu0 %v3137
      %3154 = vmatprep.subr.mxu0 0.0
      %3155 = vmatpush1.msra.mxu0 %v3136
      %3156 = vmatprep.subr.mxu0 0.0
      %3157 = vmatpush1.msra.mxu0 %v3135
      %3158 = vmatprep.subr.mxu0 0.0
      %3159 = vmatpush1.msra.mxu0 %v3134
      %3160 = vmatprep.subr.mxu0 0.0
      %3161 = vmatpush1.msra.mxu0 %v3133
      %3162 = vmatprep.subr.mxu0 0.0
      %3163 = vmatpush1.msra.mxu0 %v3132
      %3164 = vmatprep.subr.mxu0 0.0
      %3165 = vmatpush1.msra.mxu0 %v3131
      %3166 = vmatprep.subr.mxu0 0.0
      %3167 = vmatpush1.msra.mxu0 %v3130
      %3168 = vmatprep.subr.mxu0 0.0
      %3169 = vmatpush1.msra.mxu0 %v3129
      %3170 = vmatprep.subr.mxu0 0.0
      %3171 = vmatpush1.msra.mxu0 %v3128
      %3172 = vmatprep.subr.mxu0 0.0
      %3173 = vmatpush1.msra.mxu0 %v3127
      %3174 = vmatprep.subr.mxu0 0.0
      %3175 = vmatpush1.msra.mxu0 %v3126
      %3176 = vmatprep.subr.mxu0 0.0
      %3177 = vmatpush1.msra.mxu0 %v3125
      %3178 = vmatprep.subr.mxu0 0.0
      %3179 = vmatpush1.msra.mxu0 %v3124
      %3180 = vmatprep.subr.mxu0 0.0
      %3181 = vmatpush2.msra.mxu0 0.0
      %3182 = vmatprep.subr.mxu0 0.0
      %3183 = vmatpush2.msra.mxu0 0.0
      %3184 = vmatprep.subr.mxu0 0.0
      %3185 = vmatpush2.msra.mxu0 0.0
      %3186 = vmatprep.subr.mxu0 0.0
      %3187 = vmatpush2.msra.mxu0 0.0
      %3188 = vmatprep.subr.mxu0 0.0
      %3189 = vmatpush2.msra.mxu0 0.0
      %3190 = vmatprep.subr.mxu0 0.0
      %3191 = vmatpush2.msra.mxu0 0.0
      %3192 = vmatprep.subr.mxu0 0.0
      %3193 = vmatpush2.msra.mxu0 0.0
      %3194 = vmatprep.subr.mxu0 0.0
      %3195 = vmatpush2.msra.mxu0 0.0
      %3196 = vmatprep.subr.mxu0 0.0
      %3197 = vmatpush2.msra.mxu0 0.0
      %3198 = vmatprep.subr.mxu0 0.0
      %3199 = vmatpush2.msra.mxu0 0.0
      %3200 = vmatprep.subr.mxu0 0.0
      %3201 = vmatpush2.msra.mxu0 0.0
      %3202 = vmatprep.subr.mxu0 0.0
      %3203 = vmatpush2.msra.mxu0 0.0
      %3204 = vmatprep.subr.mxu0 0.0
      %3205 = vmatpush2.msra.mxu0 0.0
      %3206 = vmatprep.subr.mxu0 0.0
      %3207 = vmatpush2.msra.mxu0 0.0
      %3208 = vmatprep.subr.mxu0 0.0
      %3209 = vmatpush2.msra.mxu0 0.0
      %3210 = vmatprep.subr.mxu0 0.0
      %3211 = vmatpush2.msra.mxu0 0.0
      %3212 = vmatprep.mubr.f32.mxu0 0.0
      %3213 = vmatmul.mubr.f32.gmra.mxu0 %v3121
      %v3214 = vpop.f32.mrf.mxu0
      %v3215 = vadd.f32 %v3146, %v3214
      %v3216 = vpop.f32.mrf.mxu0
      %3217 = vmatprep.mubr.f32.mxu0 0.0
      %3218 = vmatmul.mubr.f32.gmra.mxu0 %v3122
      %v3219 = vpop.f32.mrf.mxu0
      %v3220 = vadd.f32 %v3146, %v3219
      %v3221 = vpop.f32.mrf.mxu0
      %3222 = vdwg.mxu0
      %v3223 = vadd.f32 %v3215, %v2963
      %v3224 = vadd.f32 %v3220, %v2964
      %v3225 = vld [vmem:[%s21] sm:$0x1]
      %v3226 = vld [vmem:[%s22] sm:$0x1]
      %v3227 = vsel %vm734, %v3223, 0.0
      %3228 = vadd.xlane.f32.xlu0 %v3227
      %v3229 = vpop.xlane.xlu0 %3228
      %v3230 = vsel %vm734, %v3224, 0.0
      %3231 = vadd.xlane.f32.xlu0 %v3230
      %v3232 = vpop.xlane.xlu0 %3231
      %v3233 = vmul.f32 %v3229, %v1273
      %v3234 = vmul.f32 %v3232, %v1273
      %v3235 = vsub.f32 %v3223, %v3233
      %v3236 = vsub.f32 %v3224, %v3234
      %v3237 = vmul.f32 %v3235, %v3235
      %v3238 = vmul.f32 %v3236, %v3236
      %v3239 = vsel %vm734, %v3237, 0.0
      %3240 = vadd.xlane.f32.xlu0 %v3239
      %v3241 = vpop.xlane.xlu0 %3240
      %v3242 = vsel %vm734, %v3238, 0.0
      %3243 = vadd.xlane.f32.xlu0 %v3242
      %v3244 = vpop.xlane.xlu0 %3243
      %v3245 = vmul.f32 %v3241, %v1273
      %v3246 = vmul.f32 %v3244, %v1273
      %v3247 = vadd.f32 %v3245, 1e-05
      %v3248 = vadd.f32 %v3246, 1e-05
      %v3249 = vrsqrt.pop %v3247
      %v3250 = vrsqrt.pop %v3248
      %v3251 = vmul.f32 %v3235, %v3249
      %v3252 = vmul.f32 %v3236, %v3250
      %v3254 = vlaneseq
      %v3255 = vshrl.u32 %v3254, 7
      %v3256 = vsub.s32 0, %v3255
      %v3257 = vrot.slane %v3225, %v3256
      %v3259 = vmul.f32 %v3251, %v3257
      %v3260 = vmul.f32 %v3252, %v3257
      %v3262 = vlaneseq
      %v3263 = vshrl.u32 %v3262, 7
      %v3264 = vsub.s32 0, %v3263
      %v3265 = vrot.slane %v3226, %v3264
      %v3267 = vadd.f32 %v3259, %v3265
      %v3268 = vadd.f32 %v3260, %v3265
      %v3269 = vld [vmem:[%s3] sm:$0xff]
      %v3270 = vld [vmem:[%s3 + $0x8] sm:$0xff]
      %v3271 = vld [vmem:[%s3 + $0x10] sm:$0xff]
      %v3272 = vld [vmem:[%s3 + $0x18] sm:$0xff]
      %v3274 = vsel %vm734, %v3267, 0
      %v3277 = vsel %vm734, %v3268, 0
      %3279 = vmatprep.subr.mxu0 0.0
      %3280 = vmatpush1.msra.mxu0 0.0
      %3281 = vmatprep.subr.mxu0 0.0
      %3282 = vmatpush1.msra.mxu0 0.0
      %3283 = vmatprep.subr.mxu0 0.0
      %3284 = vmatpush1.msra.mxu0 0.0
      %3285 = vmatprep.subr.mxu0 0.0
      %3286 = vmatpush1.msra.mxu0 0.0
      %3287 = vmatprep.subr.mxu0 0.0
      %3288 = vmatpush1.msra.mxu0 0.0
      %3289 = vmatprep.subr.mxu0 0.0
      %3290 = vmatpush1.msra.mxu0 0.0
      %3291 = vmatprep.subr.mxu0 0.0
      %3292 = vmatpush1.msra.mxu0 0.0
      %3293 = vmatprep.subr.mxu0 0.0
      %3294 = vmatpush1.msra.mxu0 0.0
      %3295 = vmatprep.subr.mxu0 0.0
      %3296 = vmatpush1.msra.mxu0 0.0
      %3297 = vmatprep.subr.mxu0 0.0
      %3298 = vmatpush1.msra.mxu0 0.0
      %3299 = vmatprep.subr.mxu0 0.0
      %3300 = vmatpush1.msra.mxu0 0.0
      %3301 = vmatprep.subr.mxu0 0.0
      %3302 = vmatpush1.msra.mxu0 0.0
      %3303 = vmatprep.subr.mxu0 0.0
      %3304 = vmatpush1.msra.mxu0 %v3272
      %3305 = vmatprep.subr.mxu0 0.0
      %3306 = vmatpush1.msra.mxu0 %v3271
      %3307 = vmatprep.subr.mxu0 0.0
      %3308 = vmatpush1.msra.mxu0 %v3270
      %3309 = vmatprep.subr.mxu0 0.0
      %3310 = vmatpush1.msra.mxu0 %v3269
      %3311 = vmatprep.subr.mxu0 0.0
      %3312 = vmatpush2.msra.mxu0 0.0
      %3313 = vmatprep.subr.mxu0 0.0
      %3314 = vmatpush2.msra.mxu0 0.0
      %3315 = vmatprep.subr.mxu0 0.0
      %3316 = vmatpush2.msra.mxu0 0.0
      %3317 = vmatprep.subr.mxu0 0.0
      %3318 = vmatpush2.msra.mxu0 0.0
      %3319 = vmatprep.subr.mxu0 0.0
      %3320 = vmatpush2.msra.mxu0 0.0
      %3321 = vmatprep.subr.mxu0 0.0
      %3322 = vmatpush2.msra.mxu0 0.0
      %3323 = vmatprep.subr.mxu0 0.0
      %3324 = vmatpush2.msra.mxu0 0.0
      %3325 = vmatprep.subr.mxu0 0.0
      %3326 = vmatpush2.msra.mxu0 0.0
      %3327 = vmatprep.subr.mxu0 0.0
      %3328 = vmatpush2.msra.mxu0 0.0
      %3329 = vmatprep.subr.mxu0 0.0
      %3330 = vmatpush2.msra.mxu0 0.0
      %3331 = vmatprep.subr.mxu0 0.0
      %3332 = vmatpush2.msra.mxu0 0.0
      %3333 = vmatprep.subr.mxu0 0.0
      %3334 = vmatpush2.msra.mxu0 0.0
      %3335 = vmatprep.subr.mxu0 0.0
      %3336 = vmatpush2.msra.mxu0 0.0
      %3337 = vmatprep.subr.mxu0 0.0
      %3338 = vmatpush2.msra.mxu0 0.0
      %3339 = vmatprep.subr.mxu0 0.0
      %3340 = vmatpush2.msra.mxu0 0.0
      %3341 = vmatprep.subr.mxu0 0.0
      %3342 = vmatpush2.msra.mxu0 0.0
      %3343 = vmatprep.mubr.f32.mxu0 0.0
      %3344 = vmatmul.mubr.f32.gmra.mxu0 %v3274
      %v3345 = vpop.f32.mrf.mxu0
      %v3346 = vadd.f32 0.0, %v3345
      %v3347 = vpop.f32.mrf.mxu0
      %3348 = vmatprep.mubr.f32.mxu0 0.0
      %3349 = vmatmul.mubr.f32.gmra.mxu0 %v3277
      %v3350 = vpop.f32.mrf.mxu0
      %v3351 = vadd.f32 0.0, %v3350
      %v3352 = vpop.f32.mrf.mxu0
      %3353 = vdwg.mxu0
      %3354 = vst [vmem:[%s726] sm:$0xff] %v3346
      %3355 = vst [vmem:[%s726 + $0x8] sm:$0xff] %v3351
      %s3356 = smul.u32 2, %s34
      %p3357 = scmp.lt.s32.totalorder %s3356, 3
      %s3358 = scalar_select %p3357, %s3356, 3
      %s3359 = smul.addr %s3358, 8
      %s3360 = scalar_lea.vmem %s23, %s3359
      // Predicated region
      $region113: #{clip_caption_forward.1} parent=111 // pred_check
        %p3361 = pneg %p545
      $region114: #{clip_caption_forward.1} parent=111 // pred_check_branch
        %3363 = sbr.rel (%p3361) target = $region116
      $region115: #{clip_caption_forward.1} parent=111 // pred_region
        %s3364 = smul.u32 2, %s34
      $region116: #{clip_caption_forward.1} parent=111 // pred_fallthru
        _
    $region112: #{clip_caption_forward.1} parent=5 // pred_fallthru
      _
    %p3365 = scmp.le.s32.totalorder 2, %s29
    // Predicated region
    $region117: #{clip_caption_forward.1} parent=5 // pred_check
      %p3366 = pneg %p3365
    $region118: #{clip_caption_forward.1} parent=5 // pred_check_branch
      %3368 = sbr.rel (%p3366) target = $region120
    $region119: #{clip_caption_forward.1} parent=5 // pred_region
      %s3369 = ssub.s32 %s29, 2
      // Predicated region
      $region121: #{clip_caption_forward.1} parent=119 // pred_check
        %p3370 = pneg %p551
      $region122: #{clip_caption_forward.1} parent=119 // pred_check_branch
        %3372 = sbr.rel (%p3370) target = $region124
      $region123: #{clip_caption_forward.1} parent=119 // pred_region
        %s3373 = smul.u32 2, %s35
        %p3374 = scmp.lt.s32.totalorder %s3373, 3
        %s3375 = scalar_select %p3374, %s3373, 3
        %s3376 = smul.addr %s3375, 8
        %s3377 = scalar_lea.vmem %s23, %s3376
      $region124: #{clip_caption_forward.1} parent=119 // pred_fallthru
        _
    $region120: #{clip_caption_forward.1} parent=5 // pred_fallthru
      _
  $region6: #{clip_caption_forward.1} parent=0 // loop_footer
    %s33 = sadd.s32 1, %s29
  $region7: #{clip_caption_forward.1} parent=0 // loop_footer_branch
    %28 = sbr.rel target = $region3
  $region8: #{clip_caption_forward.1} parent=0 // loop_exit
    _

</llo_original>
